<compile_context>
chip_gen: v6e
topology: v6e:2x2x1
jax: 0.10.0
libtpu: 0.0.40
codegen_flags: <defaults>
</compile_context>

<pallas_src>
import functools

import jax
import jax.numpy as jnp
from jax import lax
from jax.experimental import pallas as pl
from jax.experimental.pallas import tpu as pltpu


# ----------------------------- math helpers (in & out of kernel) ------------------

def _gelu(x):
    # exact (erf) GELU — matches torch.nn.GELU() default (approximate='none')
    return 0.5 * x * (1.0 + lax.erf(x * 0.7071067811865476))


def _layernorm(x, w, b, eps=1e-5):
    mu = jnp.mean(x, axis=-1, keepdims=True)
    xc = x - mu
    var = jnp.mean(xc * xc, axis=-1, keepdims=True)
    return xc * lax.rsqrt(var + eps) * w + b


def _softmax_approx(x):
    # in-kernel softmax: exact exp, approximate reciprocal (EUP slot)
    m = jnp.max(x, axis=-1, keepdims=True)
    e = jnp.exp(x - m)
    return e * pl.reciprocal(jnp.sum(e, axis=-1, keepdims=True), approx=True)


# ----------------------------- fused Transformer kernel ---------------------------

def _fused_kernel(num_heads, head_dim, gp_num, dim, b, n,
                  x_ref, ln1w_ref, ln1b_ref, qkvw_ref, qkvb_ref, gp_ref,
                  projw_ref, projb_ref, ln2w_ref, ln2b_ref,
                  ff1w_ref, ff1b_ref, ff2w_ref, ff2b_ref,
                  finw_ref, finb_ref, alpha_ref, o_ref):
    """One TransformerBlock per (row-tile, layer) grid step.  The residual stream
    is carried in the output block (constant index along the layer axis)."""
    l = pl.program_id(1)
    last = pl.num_programs(1) - 1
    bn = b * n
    bh = b * num_heads
    f32, bf16 = jnp.float32, jnp.bfloat16

    # layer 0: seed the resident VMEM carry for this row tile.
    @pl.when(l == 0)
    def _():
        o_ref[...] = x_ref[...]

    x = o_ref[...]                                            # (b*n, dim) residual stream

    # -------- attention branch: attn(norm1(x)) + x --------
    h1 = _layernorm(x, ln1w_ref[0, 0], ln1b_ref[0, 0])
    # 1/sqrt(head_dim) is already folded into the Q columns of qkv_w / qkv_b.
    qkv = jnp.dot(h1.astype(bf16), qkvw_ref[0],
                  preferred_element_type=f32) + qkvb_ref[0, 0]          # (b*n, 3*dim)
    qkv = qkv.astype(bf16)                                              # single hoisted cast

    # Gather all heads into one (H*b, n, head_dim) batch using static lane slices
    # + a leading-dim concat only (no sublane transposes); head-major batch index.
    def to_heads(col0):
        parts = [qkv[:, col0 + h * head_dim: col0 + (h + 1) * head_dim]
                 .reshape(b, n, head_dim) for h in range(num_heads)]
        return jnp.concatenate(parts, axis=0)                           # (H*b, n, hd)

    q = to_heads(0)
    k = to_heads(dim)
    v = to_heads(2 * dim)

    # attention scores for all heads in one batched MXU einsum
    scores = jnp.einsum('bnd,bmd->bnm', q, k,
                        preferred_element_type=f32)                     # (H*b, n, n)

    # group weights: one dense head-batched contraction (no block-diag waste)
    gp_w = gp_ref[0]                                                    # (H, hd, gp) bf16
    if b == 1:
        gp_b = gp_w                                                     # (H*b, hd, gp)
    else:
        gp_b = jnp.broadcast_to(gp_w[:, None],
                                (num_heads, b, head_dim, gp_num)
                                ).reshape(bh, head_dim, gp_num)
    gw = jnp.einsum('bnd,bdm->bnm', v, gp_b,
                    preferred_element_type=f32)                         # (H*b, n, gp)
    gw = _softmax_approx(_gelu(gw)).astype(bf16)                        # one pass, all heads
    gw2 = jnp.einsum('bnm,bkm->bnk', gw, gw,
                     preferred_element_type=f32)                        # (H*b, n, n)

    attn = _softmax_approx(scores * gw2)

    # per-head alpha blend: sigmoid(alpha) scalars come from flat SMEM
    blended = []
    for h in range(num_heads):
        a_h = alpha_ref[l * num_heads + h]
        r0, r1 = h * b, (h + 1) * b
        blended.append((1.0 - a_h) * attn[r0:r1] + a_h * gw2[r0:r1])
    attn = jnp.concatenate(blended, axis=0)                             # (H*b, n, n)

    # PyTorch: attn / (attn.sum(dim=2, keepdim=True) + 1e-8) -> sum over QUERY axis
    attn = attn * pl.reciprocal(jnp.sum(attn, axis=1, keepdims=True) + 1e-8,
                                approx=True)
    # dropout is identity (inference / p = 0.0)

    ctx = jnp.einsum('bnm,bmd->bnd', attn.astype(bf16), v,
                     preferred_element_type=f32)                        # (H*b, n, hd)
    # back to (b*n, dim): static head slices + lane concat, then ONE projection
    ctx = jnp.concatenate([ctx[h * b:(h + 1) * b].reshape(bn, head_dim)
                           for h in range(num_heads)], axis=1)          # (b*n, dim)
    attn_out = jnp.dot(ctx.astype(bf16), projw_ref[0],
                       preferred_element_type=f32) + projb_ref[0, 0]
    x = x + attn_out

    # -------- feed-forward branch: ff(norm2(x)) + x --------
    h2 = _layernorm(x, ln2w_ref[0, 0], ln2b_ref[0, 0])
    h2 = jnp.dot(h2.astype(bf16), ff1w_ref[0],
                 preferred_element_type=f32) + ff1b_ref[0, 0]
    h2 = _gelu(h2)
    h2 = jnp.dot(h2.astype(bf16), ff2w_ref[0],
                 preferred_element_type=f32) + ff2b_ref[0, 0]
    y = x + h2

    # carry to the next layer; on the last layer store the final LayerNorm instead
    @pl.when(l < last)
    def _():
        o_ref[...] = y

    @pl.when(l == last)
    def _():
        o_ref[...] = _layernorm(y, finw_ref[0], finb_ref[0])


def transformer_forward_pallas(x, packed, *, depth, num_heads, gp_num, batch_tiles=1):
    b, n, dim = x.shape
    assert b % batch_tiles == 0, "batch must divide evenly into batch tiles"
    b_local = b // batch_tiles
    bn = b * n
    bn_tile = b_local * n
    head_dim = dim // num_heads
    mlp_dim = packed['ff1_w'].shape[-1]
    kernel = functools.partial(_fused_kernel, num_heads, head_dim, gp_num, dim,
                               b_local, n)

    def per_layer(arr):
        zeros = (0,) * (arr.ndim - 1)
        return pl.BlockSpec((1,) + arr.shape[1:],
                            lambda i, l, z=zeros: (l,) + z)

    x_flat = x.reshape(bn, dim)
    in_specs = [
        pl.BlockSpec((bn_tile, dim), lambda i, l: (i, 0)),         # x (read once per tile)
        per_layer(packed['ln1_w']), per_layer(packed['ln1_b']),
        per_layer(packed['qkv_w']), per_layer(packed['qkv_b']),
        per_layer(packed['gp_w']),
        per_layer(packed['proj_w']), per_layer(packed['proj_b']),
        per_layer(packed['ln2_w']), per_layer(packed['ln2_b']),
        per_layer(packed['ff1_w']), per_layer(packed['ff1_b']),
        per_layer(packed['ff2_w']), per_layer(packed['ff2_b']),
        pl.BlockSpec((1, dim), lambda i, l: (0, 0)),               # final LN weight
        pl.BlockSpec((1, dim), lambda i, l: (0, 0)),               # final LN bias
        pl.BlockSpec(memory_space=pltpu.MemorySpace.SMEM),         # sigmoid(alpha), flat 1D
    ]

    # VMEM budget: double-buffered per-layer weight set + activations, with headroom.
    def _nbytes(a):
        return a.size * a.dtype.itemsize
    wkeys = ('ln1_w', 'ln1_b', 'qkv_w', 'qkv_b', 'gp_w', 'proj_w', 'proj_b',
             'ln2_w', 'ln2_b', 'ff1_w', 'ff1_b', 'ff2_w', 'ff2_b')
    per_layer_bytes = sum(_nbytes(packed[k][0]) for k in wkeys)
    act_bytes = 4 * (6 * bn_tile * dim + 2 * bn_tile * 3 * dim + 2 * bn_tile * mlp_dim
                     + 4 * b_local * num_heads * n * n
                     + 2 * b_local * num_heads * n * gp_num)
    vmem_limit = int(min(max(2 * (2 * per_layer_bytes + act_bytes), 32 << 20), 64 << 20))

    out = pl.pallas_call(
        kernel,
        out_shape=jax.ShapeDtypeStruct((bn, dim), jnp.float32),
        grid=(batch_tiles, depth),
        in_specs=in_specs,
        # constant block index along the layer axis => residual resident in VMEM
        out_specs=pl.BlockSpec((bn_tile, dim), lambda i, l: (i, 0)),
        compiler_params=pltpu.CompilerParams(
            dimension_semantics=("parallel", "arbitrary"),
            vmem_limit_bytes=vmem_limit),
    )(x_flat,
      packed['ln1_w'], packed['ln1_b'], packed['qkv_w'], packed['qkv_b'],
      packed['gp_w'], packed['proj_w'], packed['proj_b'],
      packed['ln2_w'], packed['ln2_b'], packed['ff1_w'], packed['ff1_b'],
      packed['ff2_w'], packed['ff2_b'], packed['final_w'], packed['final_b'],
      packed['alpha_sig'])
    return out.reshape(b, n, dim)


# ----------------------------- parameter init & packing ---------------------------

def init_params(key, depth, dim, num_heads, mlp_dim, gp_num):
    def nrm(k, shape, s=0.02):
        return s * jax.random.normal(k, shape, jnp.float32)

    layers = []
    for _ in range(depth):
        key, *ks = jax.random.split(key, 11)
        layers.append(dict(
            ln1_w=jnp.ones((dim,), jnp.float32), ln1_b=jnp.zeros((dim,), jnp.float32),
            qkv_w=nrm(ks[0], (dim, 3 * dim)), qkv_b=nrm(ks[1], (3 * dim,)),
            proj_w=nrm(ks[2], (dim, dim)), proj_b=nrm(ks[3], (dim,)),
            gp_w=nrm(ks[4], (gp_num, dim)),                  # PyTorch layout (gp_num, dim)
            alpha=jax.random.normal(ks[5], (num_heads,), jnp.float32),
            ln2_w=jnp.ones((dim,), jnp.float32), ln2_b=jnp.zeros((dim,), jnp.float32),
            ff1_w=nrm(ks[6], (dim, mlp_dim)), ff1_b=nrm(ks[7], (mlp_dim,)),
            ff2_w=nrm(ks[8], (mlp_dim, dim)), ff2_b=nrm(ks[9], (dim,)),
        ))
    return dict(layers=layers,
                final_w=jnp.ones((dim,), jnp.float32),
                final_b=jnp.zeros((dim,), jnp.float32))


def pack_params(params, num_heads, gp_num):
    """Stack per-layer params along a leading depth axis for the fused kernel."""
    layers = params['layers']
    dim = layers[0]['qkv_w'].shape[0]
    hd = dim // num_heads
    scale = hd ** (-0.5)
    bf16 = jnp.bfloat16

    def vec(name, fn=lambda v: v):     # (depth, 1, len) float32
        return jnp.stack([fn(p[name]).reshape(1, -1) for p in layers])

    def mat(name, fn=lambda v: v):     # (depth, rows, cols) bfloat16 (matmul weights)
        return jnp.stack([fn(p[name]) for p in layers]).astype(bf16)

    def scale_q(w):                    # fold 1/sqrt(head_dim) into the Q third
        return jnp.concatenate([w[..., :dim] * scale, w[..., dim:]], axis=-1)

    def gp_head(w):                    # (gp_num, dim) -> (H, hd, gp_num), torch's .view
        return jnp.transpose(w.reshape(num_heads, gp_num, hd), (0, 2, 1))

    return dict(
        ln1_w=vec('ln1_w'), ln1_b=vec('ln1_b'),
        qkv_w=mat('qkv_w', scale_q), qkv_b=vec('qkv_b', scale_q),
        gp_w=jnp.stack([gp_head(p['gp_w']) for p in layers]).astype(bf16),
        proj_w=mat('proj_w'), proj_b=vec('proj_b'),
        ln2_w=vec('ln2_w'), ln2_b=vec('ln2_b'),
        ff1_w=mat('ff1_w'), ff1_b=vec('ff1_b'),
        ff2_w=mat('ff2_w'), ff2_b=vec('ff2_b'),
        # flat 1D sigmoid(alpha) for SMEM (no 2D SMEM padding): (depth*num_heads,)
        alpha_sig=jnp.concatenate([jax.nn.sigmoid(p['alpha']) for p in layers]),
        final_w=params['final_w'].reshape(1, -1),
        final_b=params['final_b'].reshape(1, -1),
    )


# ----------------------------- plain-JAX f32 reference (checking) ------------------

def _ref_ln(x, w, b, eps=1e-5):
    mu = x.mean(-1, keepdims=True)
    var = ((x - mu) ** 2).mean(-1, keepdims=True)
    return (x - mu) / jnp.sqrt(var + eps) * w + b


def _ref_softmax(x):
    m = jnp.max(x, axis=-1, keepdims=True)
    e = jnp.exp(x - m)
    return e / jnp.sum(e, axis=-1, keepdims=True)


def _ref_block(x, p, num_heads, gp_num):
    b, n, dim = x.shape
    hd = dim // num_heads
    scale = hd ** (-0.5)
    h = _ref_ln(x, p['ln1_w'], p['ln1_b'])
    qkv = h @ p['qkv_w'] + p['qkv_b']
    q, k, v = jnp.split(qkv, 3, axis=-1)
    q = q.reshape(b, n, num_heads, hd).transpose(0, 2, 1, 3)
    k = k.reshape(b, n, num_heads, hd).transpose(0, 2, 1, 3)
    v = v.reshape(b, n, num_heads, hd).transpose(0, 2, 1, 3)
    attn = jnp.einsum('bhnd,bhmd->bhnm', q, k) * scale
    gp_r = p['gp_w'].reshape(num_heads, gp_num, hd)
    gw = jnp.einsum('bhnd,hmd->bhnm', v, gp_r)
    gw = _gelu(gw)
    gw = _ref_softmax(gw)
    gw = jnp.einsum('bhnm,bhkm->bhnk', gw, gw)
    attn = _ref_softmax(attn * gw)
    a = jax.nn.sigmoid(p['alpha']).reshape(1, num_heads, 1, 1)
    attn = (1 - a) * attn + a * gw
    attn = attn / (attn.sum(axis=2, keepdims=True) + 1e-8)
    out = jnp.einsum('bhnm,bhmd->bhnd', attn, v)
    out = out.transpose(0, 2, 1, 3).reshape(b, n, dim)
    out = out @ p['proj_w'] + p['proj_b']
    x = x + out
    h = _ref_ln(x, p['ln2_w'], p['ln2_b'])
    h = _gelu(h @ p['ff1_w'] + p['ff1_b'])
    h = h @ p['ff2_w'] + p['ff2_b']
    return x + h


def _ref_forward(x, params, num_heads, gp_num):
    for p in params['layers']:
        x = _ref_block(x, p, num_heads, gp_num)
    return _ref_ln(x, params['final_w'], params['final_b'])


# ----------------------------------- main -----------------------------------------

if __name__ == "__main__":
    # lane-friendly small config: dim multiple of 128, n multiple of 8
    dim, depth, num_heads, mlp_dim, gp_num = 128, 2, 4, 256, 16
    dropout = 0.0   # Dropout layers are identity in this (inference) implementation
    b, n = 2, 32

    key = jax.random.PRNGKey(0)
    key, xk = jax.random.split(key)
    x = jax.random.normal(xk, (b, n, dim), jnp.float32)
    params = init_params(key, depth, dim, num_heads, mlp_dim, gp_num)
    packed = pack_params(params, num_heads, gp_num)

    out = transformer_forward_pallas(x, packed, depth=depth, num_heads=num_heads,
                                     gp_num=gp_num,
                                     batch_tiles=2 if b % 2 == 0 else 1)
    out = jax.block_until_ready(out)

    ref = _ref_forward(x, params, num_heads, gp_num)
    assert out.shape == (b, n, dim)
    err = float(jnp.max(jnp.abs(out - ref)))
    # kernel uses bf16 matmul operands + approx reciprocals; reference is pure f32
    if not bool(jnp.allclose(out, ref, atol=2e-2, rtol=2e-2)):
        raise AssertionError(f"kernel/reference mismatch, max abs err {err}")
    print("KERNEL_OK")
</pallas_src>

<mosaic_0001>
module attributes {stable_mosaic.version = 11 : i64} {
  func.func @_fused_kernel(%arg0: i32, %arg1: i32, %arg2: memref<32x128xf32, #tpu.memory_space<vmem>>, %arg3: memref<1x1x128xf32, #tpu.memory_space<vmem>>, %arg4: memref<1x1x128xf32, #tpu.memory_space<vmem>>, %arg5: memref<1x128x384xbf16, #tpu.memory_space<vmem>>, %arg6: memref<1x1x384xf32, #tpu.memory_space<vmem>>, %arg7: memref<1x4x32x16xbf16, #tpu.memory_space<vmem>>, %arg8: memref<1x128x128xbf16, #tpu.memory_space<vmem>>, %arg9: memref<1x1x128xf32, #tpu.memory_space<vmem>>, %arg10: memref<1x1x128xf32, #tpu.memory_space<vmem>>, %arg11: memref<1x1x128xf32, #tpu.memory_space<vmem>>, %arg12: memref<1x128x256xbf16, #tpu.memory_space<vmem>>, %arg13: memref<1x1x256xf32, #tpu.memory_space<vmem>>, %arg14: memref<1x256x128xbf16, #tpu.memory_space<vmem>>, %arg15: memref<1x1x128xf32, #tpu.memory_space<vmem>>, %arg16: memref<1x128xf32, #tpu.memory_space<vmem>>, %arg17: memref<1x128xf32, #tpu.memory_space<vmem>>, %arg18: memref<8xf32, #tpu.memory_space<smem>>, %arg19: memref<32x128xf32, #tpu.memory_space<vmem>>) attributes {dimension_semantics = [#tpu.dimension_semantics<parallel>, #tpu.dimension_semantics<arbitrary>], iteration_bounds = array<i64: 2, 2>, scalar_prefetch = 0 : i64, scratch_operands = 0 : i64, tpu.core_type = #tpu.core_type<tc>, window_params = [{transform_indices = @transform_0, window_bounds = array<i64: 32, 128>}, {transform_indices = @transform_1, window_bounds = array<i64: 1, 1, 128>}, {transform_indices = @transform_2, window_bounds = array<i64: 1, 1, 128>}, {transform_indices = @transform_3, window_bounds = array<i64: 1, 128, 384>}, {transform_indices = @transform_4, window_bounds = array<i64: 1, 1, 384>}, {transform_indices = @transform_5, window_bounds = array<i64: 1, 4, 32, 16>}, {transform_indices = @transform_6, window_bounds = array<i64: 1, 128, 128>}, {transform_indices = @transform_7, window_bounds = array<i64: 1, 1, 128>}, {transform_indices = @transform_8, window_bounds = array<i64: 1, 1, 128>}, {transform_indices = @transform_9, window_bounds = array<i64: 1, 1, 128>}, {transform_indices = @transform_10, window_bounds = array<i64: 1, 128, 256>}, {transform_indices = @transform_11, window_bounds = array<i64: 1, 1, 256>}, {transform_indices = @transform_12, window_bounds = array<i64: 1, 256, 128>}, {transform_indices = @transform_13, window_bounds = array<i64: 1, 1, 128>}, {pipeline_mode = #tpu.pipeline_mode<synchronous>, transform_indices = @transform_14, window_bounds = array<i64: 1, 128>}, {pipeline_mode = #tpu.pipeline_mode<synchronous>, transform_indices = @transform_15, window_bounds = array<i64: 1, 128>}, {transform_indices = @transform_16, window_bounds = array<i64: 8>}, {transform_indices = @transform_17, window_bounds = array<i64: 32, 128>}]} {
    %c0_i32 = arith.constant 0 : i32
    %0 = arith.cmpi eq, %arg1, %c0_i32 : i32
    %1 = arith.extui %0 : i1 to i32
    %c0_i32_0 = arith.constant 0 : i32
    %2 = arith.cmpi ne, %1, %c0_i32_0 : i32
    scf.if %2 {
      %c0_83 = arith.constant 0 : index
      %c0_84 = arith.constant 0 : index
      %238 = vector.load %arg2[%c0_83, %c0_84] : memref<32x128xf32, #tpu.memory_space<vmem>>, vector<32x128xf32>
      %c0_85 = arith.constant 0 : index
      %c0_86 = arith.constant 0 : index
      %239 = vector.load %arg19[%c0_85, %c0_86] : memref<32x128xf32, #tpu.memory_space<vmem>>, vector<32x128xf32>
      tpu.vector_store %arg19[%c0_85, %c0_86], %238 {strides = array<i32>} : memref<32x128xf32, #tpu.memory_space<vmem>>, vector<32x128xf32>,
    } else {
    }
    %c0 = arith.constant 0 : index
    %c0_1 = arith.constant 0 : index
    %3 = vector.load %arg19[%c0, %c0_1] : memref<32x128xf32, #tpu.memory_space<vmem>>, vector<32x128xf32>
    %c0_2 = arith.constant 0 : index
    %c0_3 = arith.constant 0 : index
    %c0_4 = arith.constant 0 : index
    %4 = vector.load %arg3[%c0_2, %c0_3, %c0_4] : memref<1x1x128xf32, #tpu.memory_space<vmem>>, vector<1x1x128xf32>
    %5 = vector.shape_cast %4 : vector<1x1x128xf32> to vector<128xf32>
    %c0_5 = arith.constant 0 : index
    %c0_6 = arith.constant 0 : index
    %c0_7 = arith.constant 0 : index
    %6 = vector.load %arg4[%c0_5, %c0_6, %c0_7] : memref<1x1x128xf32, #tpu.memory_space<vmem>>, vector<1x1x128xf32>
    %7 = vector.shape_cast %6 : vector<1x1x128xf32> to vector<128xf32>
    %cst = arith.constant dense<0.000000e+00> : vector<32xf32>
    %8 = vector.multi_reduction <add>, %3, %cst [1] : vector<32x128xf32> to vector<32xf32>
    %9 = vector.shape_cast %8 : vector<32xf32> to vector<32x1xf32>
    %cst_8 = arith.constant 1.280000e+02 : f32
    %10 = vector.broadcast %cst_8 : f32 to vector<32x1xf32>
    %11 = arith.divf %9, %10 : vector<32x1xf32>
    %12 = vector.broadcast %11 : vector<32x1xf32> to vector<32x128xf32>
    %13 = arith.subf %3, %12 : vector<32x128xf32>
    %14 = arith.mulf %13, %13 : vector<32x128xf32>
    %cst_9 = arith.constant dense<0.000000e+00> : vector<32xf32>
    %15 = vector.multi_reduction <add>, %14, %cst_9 [1] : vector<32x128xf32> to vector<32xf32>
    %16 = vector.shape_cast %15 : vector<32xf32> to vector<32x1xf32>
    %cst_10 = arith.constant 1.280000e+02 : f32
    %17 = vector.broadcast %cst_10 : f32 to vector<32x1xf32>
    %18 = arith.divf %16, %17 : vector<32x1xf32>
    %cst_11 = arith.constant 9.99999974E-6 : f32
    %19 = vector.broadcast %cst_11 : f32 to vector<32x1xf32>
    %20 = arith.addf %18, %19 : vector<32x1xf32>
    %21 = math.rsqrt %20 : vector<32x1xf32>
    %22 = vector.broadcast %21 : vector<32x1xf32> to vector<32x128xf32>
    %23 = arith.mulf %13, %22 : vector<32x128xf32>
    %24 = vector.shape_cast %5 : vector<128xf32> to vector<1x128xf32>
    %25 = vector.broadcast %24 : vector<1x128xf32> to vector<32x128xf32>
    %26 = arith.mulf %23, %25 : vector<32x128xf32>
    %27 = vector.shape_cast %7 : vector<128xf32> to vector<1x128xf32>
    %28 = vector.broadcast %27 : vector<1x128xf32> to vector<32x128xf32>
    %29 = arith.addf %26, %28 : vector<32x128xf32>
    %30 = arith.truncf %29 : vector<32x128xf32> to vector<32x128xbf16>
    %c0_12 = arith.constant 0 : index
    %c0_13 = arith.constant 0 : index
    %c0_14 = arith.constant 0 : index
    %31 = vector.load %arg5[%c0_12, %c0_13, %c0_14] : memref<1x128x384xbf16, #tpu.memory_space<vmem>>, vector<1x128x384xbf16>
    %32 = vector.shape_cast %31 : vector<1x128x384xbf16> to vector<128x384xbf16>
    %cst_15 = arith.constant dense<0.000000e+00> : vector<32x384xf32>
    %33 = tpu.matmul %30, %32, %cst_15 {dimension_numbers = #tpu.dot_dimension_numbers<[1], [0], [0], [1], [0, 0, 1, 1], [], []>} : vector<32x128xbf16>, vector<128x384xbf16>, vector<32x384xf32> -> vector<32x384xf32>
    %c0_16 = arith.constant 0 : index
    %c0_17 = arith.constant 0 : index
    %c0_18 = arith.constant 0 : index
    %34 = vector.load %arg6[%c0_16, %c0_17, %c0_18] : memref<1x1x384xf32, #tpu.memory_space<vmem>>, vector<1x1x384xf32>
    %35 = vector.shape_cast %34 : vector<1x1x384xf32> to vector<384xf32>
    %36 = vector.shape_cast %35 : vector<384xf32> to vector<1x384xf32>
    %37 = vector.broadcast %36 : vector<1x384xf32> to vector<32x384xf32>
    %38 = arith.addf %33, %37 : vector<32x384xf32>
    %39 = arith.truncf %38 : vector<32x384xf32> to vector<32x384xbf16>
    %40 = vector.extract_strided_slice %39 {offsets = [0, 0], sizes = [32, 32], strides = [1, 1]} : vector<32x384xbf16> to vector<32x32xbf16>
    %41 = vector.shape_cast %40 : vector<32x32xbf16> to vector<1x32x32xbf16>
    %42 = vector.extract_strided_slice %39 {offsets = [0, 32], sizes = [32, 32], strides = [1, 1]} : vector<32x384xbf16> to vector<32x32xbf16>
    %43 = vector.shape_cast %42 : vector<32x32xbf16> to vector<1x32x32xbf16>
    %44 = vector.extract_strided_slice %39 {offsets = [0, 64], sizes = [32, 32], strides = [1, 1]} : vector<32x384xbf16> to vector<32x32xbf16>
    %45 = vector.shape_cast %44 : vector<32x32xbf16> to vector<1x32x32xbf16>
    %46 = vector.extract_strided_slice %39 {offsets = [0, 96], sizes = [32, 32], strides = [1, 1]} : vector<32x384xbf16> to vector<32x32xbf16>
    %47 = vector.shape_cast %46 : vector<32x32xbf16> to vector<1x32x32xbf16>
    %48 = tpu.concatenate %41, %43, %45, %47 in 0 : vector<1x32x32xbf16>, vector<1x32x32xbf16>, vector<1x32x32xbf16>, vector<1x32x32xbf16> -> vector<4x32x32xbf16>
    %49 = vector.extract_strided_slice %39 {offsets = [0, 128], sizes = [32, 32], strides = [1, 1]} : vector<32x384xbf16> to vector<32x32xbf16>
    %50 = vector.shape_cast %49 : vector<32x32xbf16> to vector<1x32x32xbf16>
    %51 = vector.extract_strided_slice %39 {offsets = [0, 160], sizes = [32, 32], strides = [1, 1]} : vector<32x384xbf16> to vector<32x32xbf16>
    %52 = vector.shape_cast %51 : vector<32x32xbf16> to vector<1x32x32xbf16>
    %53 = vector.extract_strided_slice %39 {offsets = [0, 192], sizes = [32, 32], strides = [1, 1]} : vector<32x384xbf16> to vector<32x32xbf16>
    %54 = vector.shape_cast %53 : vector<32x32xbf16> to vector<1x32x32xbf16>
    %55 = vector.extract_strided_slice %39 {offsets = [0, 224], sizes = [32, 32], strides = [1, 1]} : vector<32x384xbf16> to vector<32x32xbf16>
    %56 = vector.shape_cast %55 : vector<32x32xbf16> to vector<1x32x32xbf16>
    %57 = tpu.concatenate %50, %52, %54, %56 in 0 : vector<1x32x32xbf16>, vector<1x32x32xbf16>, vector<1x32x32xbf16>, vector<1x32x32xbf16> -> vector<4x32x32xbf16>
    %58 = vector.extract_strided_slice %39 {offsets = [0, 256], sizes = [32, 32], strides = [1, 1]} : vector<32x384xbf16> to vector<32x32xbf16>
    %59 = vector.shape_cast %58 : vector<32x32xbf16> to vector<1x32x32xbf16>
    %60 = vector.extract_strided_slice %39 {offsets = [0, 288], sizes = [32, 32], strides = [1, 1]} : vector<32x384xbf16> to vector<32x32xbf16>
    %61 = vector.shape_cast %60 : vector<32x32xbf16> to vector<1x32x32xbf16>
    %62 = vector.extract_strided_slice %39 {offsets = [0, 320], sizes = [32, 32], strides = [1, 1]} : vector<32x384xbf16> to vector<32x32xbf16>
    %63 = vector.shape_cast %62 : vector<32x32xbf16> to vector<1x32x32xbf16>
    %64 = vector.extract_strided_slice %39 {offsets = [0, 352], sizes = [32, 32], strides = [1, 1]} : vector<32x384xbf16> to vector<32x32xbf16>
    %65 = vector.shape_cast %64 : vector<32x32xbf16> to vector<1x32x32xbf16>
    %66 = tpu.concatenate %59, %61, %63, %65 in 0 : vector<1x32x32xbf16>, vector<1x32x32xbf16>, vector<1x32x32xbf16>, vector<1x32x32xbf16> -> vector<4x32x32xbf16>
    "tpu.trace_start"() <{level = 10 : i32, message = "bnd,bmd->bnm"}> : () -> ()
    %cst_19 = arith.constant dense<0.000000e+00> : vector<4x32x32xf32>
    %67 = tpu.matmul %48, %57, %cst_19 {dimension_numbers = #tpu.dot_dimension_numbers<[2], [2], [1], [1], [0, 0, 0, 1, 1, 1], [0], [0]>} : vector<4x32x32xbf16>, vector<4x32x32xbf16>, vector<4x32x32xf32> -> vector<4x32x32xf32>
    "tpu.trace_stop"() : () -> ()
    %c0_20 = arith.constant 0 : index
    %c0_21 = arith.constant 0 : index
    %c0_22 = arith.constant 0 : index
    %c0_23 = arith.constant 0 : index
    %68 = vector.load %arg7[%c0_20, %c0_21, %c0_22, %c0_23] : memref<1x4x32x16xbf16, #tpu.memory_space<vmem>>, vector<1x4x32x16xbf16>
    %69 = vector.shape_cast %68 : vector<1x4x32x16xbf16> to vector<4x32x16xbf16>
    "tpu.trace_start"() <{level = 10 : i32, message = "bnd,bdm->bnm"}> : () -> ()
    %cst_24 = arith.constant dense<0.000000e+00> : vector<4x32x16xf32>
    %70 = tpu.matmul %66, %69, %cst_24 {dimension_numbers = #tpu.dot_dimension_numbers<[2], [1], [1], [2], [0, 0, 0, 1, 1, 2], [0], [0]>} : vector<4x32x32xbf16>, vector<4x32x16xbf16>, vector<4x32x16xf32> -> vector<4x32x16xf32>
    "tpu.trace_stop"() : () -> ()
    %cst_25 = arith.constant 5.000000e-01 : f32
    %71 = vector.broadcast %cst_25 : f32 to vector<4x32x16xf32>
    %72 = arith.mulf %71, %70 : vector<4x32x16xf32>
    %cst_26 = arith.constant 0.707106769 : f32
    %73 = vector.broadcast %cst_26 : f32 to vector<4x32x16xf32>
    %74 = arith.mulf %70, %73 : vector<4x32x16xf32>
    %75 = math.erf %74 : vector<4x32x16xf32>
    %cst_27 = arith.constant 1.000000e+00 : f32
    %76 = vector.broadcast %cst_27 : f32 to vector<4x32x16xf32>
    %77 = arith.addf %76, %75 : vector<4x32x16xf32>
    %78 = arith.mulf %72, %77 : vector<4x32x16xf32>
    %cst_28 = arith.constant dense<0xFF800000> : vector<4x32xf32>
    %79 = vector.multi_reduction <maximumf>, %78, %cst_28 [2] : vector<4x32x16xf32> to vector<4x32xf32>
    %80 = vector.shape_cast %79 : vector<4x32xf32> to vector<4x32x1xf32>
    %81 = vector.broadcast %80 : vector<4x32x1xf32> to vector<4x32x16xf32>
    %82 = arith.subf %78, %81 : vector<4x32x16xf32>
    %83 = math.exp %82 : vector<4x32x16xf32>
    %cst_29 = arith.constant dense<0.000000e+00> : vector<4x32xf32>
    %84 = vector.multi_reduction <add>, %83, %cst_29 [2] : vector<4x32x16xf32> to vector<4x32xf32>
    %85 = vector.shape_cast %84 : vector<4x32xf32> to vector<4x32x1xf32>
    %86 = tpu.reciprocal %85 {approx = true} : vector<4x32x1xf32> -> vector<4x32x1xf32>
    %87 = vector.broadcast %86 : vector<4x32x1xf32> to vector<4x32x16xf32>
    %88 = arith.mulf %83, %87 : vector<4x32x16xf32>
    %89 = arith.truncf %88 : vector<4x32x16xf32> to vector<4x32x16xbf16>
    "tpu.trace_start"() <{level = 10 : i32, message = "bnm,bkm->bnk"}> : () -> ()
    %cst_30 = arith.constant dense<0.000000e+00> : vector<4x32x32xf32>
    %90 = tpu.matmul %89, %89, %cst_30 {dimension_numbers = #tpu.dot_dimension_numbers<[2], [2], [1], [1], [0, 0, 0, 1, 1, 1], [0], [0]>} : vector<4x32x16xbf16>, vector<4x32x16xbf16>, vector<4x32x32xf32> -> vector<4x32x32xf32>
    "tpu.trace_stop"() : () -> ()
    %91 = arith.mulf %67, %90 : vector<4x32x32xf32>
    %cst_31 = arith.constant dense<0xFF800000> : vector<4x32xf32>
    %92 = vector.multi_reduction <maximumf>, %91, %cst_31 [2] : vector<4x32x32xf32> to vector<4x32xf32>
    %93 = vector.shape_cast %92 : vector<4x32xf32> to vector<4x32x1xf32>
    %94 = vector.broadcast %93 : vector<4x32x1xf32> to vector<4x32x32xf32>
    %95 = arith.subf %91, %94 : vector<4x32x32xf32>
    %96 = math.exp %95 : vector<4x32x32xf32>
    %cst_32 = arith.constant dense<0.000000e+00> : vector<4x32xf32>
    %97 = vector.multi_reduction <add>, %96, %cst_32 [2] : vector<4x32x32xf32> to vector<4x32xf32>
    %98 = vector.shape_cast %97 : vector<4x32xf32> to vector<4x32x1xf32>
    %99 = tpu.reciprocal %98 {approx = true} : vector<4x32x1xf32> -> vector<4x32x1xf32>
    %100 = vector.broadcast %99 : vector<4x32x1xf32> to vector<4x32x32xf32>
    %101 = arith.mulf %96, %100 : vector<4x32x32xf32>
    %c4_i32 = arith.constant 4 : i32
    %102 = arith.muli %arg1, %c4_i32 : i32
    %c0_i32_33 = arith.constant 0 : i32
    %103 = arith.addi %102, %c0_i32_33 : i32
    %104 = arith.index_cast %103 : i32 to index
    %105 = memref.load %arg18[%104] : memref<8xf32, #tpu.memory_space<smem>>
    %cst_34 = arith.constant 1.000000e+00 : f32
    %106 = arith.subf %cst_34, %105 : f32
    %107 = vector.extract_strided_slice %101 {offsets = [0, 0, 0], sizes = [1, 32, 32], strides = [1, 1, 1]} : vector<4x32x32xf32> to vector<1x32x32xf32>
    %108 = vector.broadcast %106 : f32 to vector<1x32x32xf32>
    %109 = arith.mulf %108, %107 : vector<1x32x32xf32>
    %110 = vector.extract_strided_slice %90 {offsets = [0, 0, 0], sizes = [1, 32, 32], strides = [1, 1, 1]} : vector<4x32x32xf32> to vector<1x32x32xf32>
    %111 = vector.broadcast %105 : f32 to vector<1x32x32xf32>
    %112 = arith.mulf %111, %110 : vector<1x32x32xf32>
    %113 = arith.addf %109, %112 : vector<1x32x32xf32>
    %c4_i32_35 = arith.constant 4 : i32
    %114 = arith.muli %arg1, %c4_i32_35 : i32
    %c1_i32 = arith.constant 1 : i32
    %115 = arith.addi %114, %c1_i32 : i32
    %116 = arith.index_cast %115 : i32 to index
    %117 = memref.load %arg18[%116] : memref<8xf32, #tpu.memory_space<smem>>
    %cst_36 = arith.constant 1.000000e+00 : f32
    %118 = arith.subf %cst_36, %117 : f32
    %119 = vector.extract_strided_slice %101 {offsets = [1, 0, 0], sizes = [1, 32, 32], strides = [1, 1, 1]} : vector<4x32x32xf32> to vector<1x32x32xf32>
    %120 = vector.broadcast %118 : f32 to vector<1x32x32xf32>
    %121 = arith.mulf %120, %119 : vector<1x32x32xf32>
    %122 = vector.extract_strided_slice %90 {offsets = [1, 0, 0], sizes = [1, 32, 32], strides = [1, 1, 1]} : vector<4x32x32xf32> to vector<1x32x32xf32>
    %123 = vector.broadcast %117 : f32 to vector<1x32x32xf32>
    %124 = arith.mulf %123, %122 : vector<1x32x32xf32>
    %125 = arith.addf %121, %124 : vector<1x32x32xf32>
    %c4_i32_37 = arith.constant 4 : i32
    %126 = arith.muli %arg1, %c4_i32_37 : i32
    %c2_i32 = arith.constant 2 : i32
    %127 = arith.addi %126, %c2_i32 : i32
    %128 = arith.index_cast %127 : i32 to index
    %129 = memref.load %arg18[%128] : memref<8xf32, #tpu.memory_space<smem>>
    %cst_38 = arith.constant 1.000000e+00 : f32
    %130 = arith.subf %cst_38, %129 : f32
    %131 = vector.extract_strided_slice %101 {offsets = [2, 0, 0], sizes = [1, 32, 32], strides = [1, 1, 1]} : vector<4x32x32xf32> to vector<1x32x32xf32>
    %132 = vector.broadcast %130 : f32 to vector<1x32x32xf32>
    %133 = arith.mulf %132, %131 : vector<1x32x32xf32>
    %134 = vector.extract_strided_slice %90 {offsets = [2, 0, 0], sizes = [1, 32, 32], strides = [1, 1, 1]} : vector<4x32x32xf32> to vector<1x32x32xf32>
    %135 = vector.broadcast %129 : f32 to vector<1x32x32xf32>
    %136 = arith.mulf %135, %134 : vector<1x32x32xf32>
    %137 = arith.addf %133, %136 : vector<1x32x32xf32>
    %c4_i32_39 = arith.constant 4 : i32
    %138 = arith.muli %arg1, %c4_i32_39 : i32
    %c3_i32 = arith.constant 3 : i32
    %139 = arith.addi %138, %c3_i32 : i32
    %140 = arith.index_cast %139 : i32 to index
    %141 = memref.load %arg18[%140] : memref<8xf32, #tpu.memory_space<smem>>
    %cst_40 = arith.constant 1.000000e+00 : f32
    %142 = arith.subf %cst_40, %141 : f32
    %143 = vector.extract_strided_slice %101 {offsets = [3, 0, 0], sizes = [1, 32, 32], strides = [1, 1, 1]} : vector<4x32x32xf32> to vector<1x32x32xf32>
    %144 = vector.broadcast %142 : f32 to vector<1x32x32xf32>
    %145 = arith.mulf %144, %143 : vector<1x32x32xf32>
    %146 = vector.extract_strided_slice %90 {offsets = [3, 0, 0], sizes = [1, 32, 32], strides = [1, 1, 1]} : vector<4x32x32xf32> to vector<1x32x32xf32>
    %147 = vector.broadcast %141 : f32 to vector<1x32x32xf32>
    %148 = arith.mulf %147, %146 : vector<1x32x32xf32>
    %149 = arith.addf %145, %148 : vector<1x32x32xf32>
    %150 = tpu.concatenate %113, %125, %137, %149 in 0 : vector<1x32x32xf32>, vector<1x32x32xf32>, vector<1x32x32xf32>, vector<1x32x32xf32> -> vector<4x32x32xf32>
    %cst_41 = arith.constant dense<0.000000e+00> : vector<4x32xf32>
    %151 = vector.multi_reduction <add>, %150, %cst_41 [1] : vector<4x32x32xf32> to vector<4x32xf32>
    %152 = vector.shape_cast %151 : vector<4x32xf32> to vector<4x1x32xf32>
    %cst_42 = arith.constant 9.99999993E-9 : f32
    %153 = vector.broadcast %cst_42 : f32 to vector<4x1x32xf32>
    %154 = arith.addf %152, %153 : vector<4x1x32xf32>
    %155 = tpu.reciprocal %154 {approx = true} : vector<4x1x32xf32> -> vector<4x1x32xf32>
    %156 = vector.broadcast %155 : vector<4x1x32xf32> to vector<4x32x32xf32>
    %157 = arith.mulf %150, %156 : vector<4x32x32xf32>
    %158 = arith.truncf %157 : vector<4x32x32xf32> to vector<4x32x32xbf16>
    "tpu.trace_start"() <{level = 10 : i32, message = "bnm,bmd->bnd"}> : () -> ()
    %cst_43 = arith.constant dense<0.000000e+00> : vector<4x32x32xf32>
    %159 = tpu.matmul %158, %66, %cst_43 {dimension_numbers = #tpu.dot_dimension_numbers<[2], [1], [1], [2], [0, 0, 0, 1, 1, 2], [0], [0]>} : vector<4x32x32xbf16>, vector<4x32x32xbf16>, vector<4x32x32xf32> -> vector<4x32x32xf32>
    "tpu.trace_stop"() : () -> ()
    %160 = vector.extract_strided_slice %159 {offsets = [0, 0, 0], sizes = [1, 32, 32], strides = [1, 1, 1]} : vector<4x32x32xf32> to vector<1x32x32xf32>
    %161 = vector.shape_cast %160 : vector<1x32x32xf32> to vector<32x32xf32>
    %162 = vector.extract_strided_slice %159 {offsets = [1, 0, 0], sizes = [1, 32, 32], strides = [1, 1, 1]} : vector<4x32x32xf32> to vector<1x32x32xf32>
    %163 = vector.shape_cast %162 : vector<1x32x32xf32> to vector<32x32xf32>
    %164 = vector.extract_strided_slice %159 {offsets = [2, 0, 0], sizes = [1, 32, 32], strides = [1, 1, 1]} : vector<4x32x32xf32> to vector<1x32x32xf32>
    %165 = vector.shape_cast %164 : vector<1x32x32xf32> to vector<32x32xf32>
    %166 = vector.extract_strided_slice %159 {offsets = [3, 0, 0], sizes = [1, 32, 32], strides = [1, 1, 1]} : vector<4x32x32xf32> to vector<1x32x32xf32>
    %167 = vector.shape_cast %166 : vector<1x32x32xf32> to vector<32x32xf32>
    %168 = tpu.concatenate %161, %163, %165, %167 in 1 : vector<32x32xf32>, vector<32x32xf32>, vector<32x32xf32>, vector<32x32xf32> -> vector<32x128xf32>
    %169 = arith.truncf %168 : vector<32x128xf32> to vector<32x128xbf16>
    %c0_44 = arith.constant 0 : index
    %c0_45 = arith.constant 0 : index
    %c0_46 = arith.constant 0 : index
    %170 = vector.load %arg8[%c0_44, %c0_45, %c0_46] : memref<1x128x128xbf16, #tpu.memory_space<vmem>>, vector<1x128x128xbf16>
    %171 = vector.shape_cast %170 : vector<1x128x128xbf16> to vector<128x128xbf16>
    %cst_47 = arith.constant dense<0.000000e+00> : vector<32x128xf32>
    %172 = tpu.matmul %169, %171, %cst_47 {dimension_numbers = #tpu.dot_dimension_numbers<[1], [0], [0], [1], [0, 0, 1, 1], [], []>} : vector<32x128xbf16>, vector<128x128xbf16>, vector<32x128xf32> -> vector<32x128xf32>
    %c0_48 = arith.constant 0 : index
    %c0_49 = arith.constant 0 : index
    %c0_50 = arith.constant 0 : index
    %173 = vector.load %arg9[%c0_48, %c0_49, %c0_50] : memref<1x1x128xf32, #tpu.memory_space<vmem>>, vector<1x1x128xf32>
    %174 = vector.shape_cast %173 : vector<1x1x128xf32> to vector<128xf32>
    %175 = vector.shape_cast %174 : vector<128xf32> to vector<1x128xf32>
    %176 = vector.broadcast %175 : vector<1x128xf32> to vector<32x128xf32>
    %177 = arith.addf %172, %176 : vector<32x128xf32>
    %178 = arith.addf %3, %177 : vector<32x128xf32>
    %c0_51 = arith.constant 0 : index
    %c0_52 = arith.constant 0 : index
    %c0_53 = arith.constant 0 : index
    %179 = vector.load %arg10[%c0_51, %c0_52, %c0_53] : memref<1x1x128xf32, #tpu.memory_space<vmem>>, vector<1x1x128xf32>
    %180 = vector.shape_cast %179 : vector<1x1x128xf32> to vector<128xf32>
    %c0_54 = arith.constant 0 : index
    %c0_55 = arith.constant 0 : index
    %c0_56 = arith.constant 0 : index
    %181 = vector.load %arg11[%c0_54, %c0_55, %c0_56] : memref<1x1x128xf32, #tpu.memory_space<vmem>>, vector<1x1x128xf32>
    %182 = vector.shape_cast %181 : vector<1x1x128xf32> to vector<128xf32>
    %cst_57 = arith.constant dense<0.000000e+00> : vector<32xf32>
    %183 = vector.multi_reduction <add>, %178, %cst_57 [1] : vector<32x128xf32> to vector<32xf32>
    %184 = vector.shape_cast %183 : vector<32xf32> to vector<32x1xf32>
    %cst_58 = arith.constant 1.280000e+02 : f32
    %185 = vector.broadcast %cst_58 : f32 to vector<32x1xf32>
    %186 = arith.divf %184, %185 : vector<32x1xf32>
    %187 = vector.broadcast %186 : vector<32x1xf32> to vector<32x128xf32>
    %188 = arith.subf %178, %187 : vector<32x128xf32>
    %189 = arith.mulf %188, %188 : vector<32x128xf32>
    %cst_59 = arith.constant dense<0.000000e+00> : vector<32xf32>
    %190 = vector.multi_reduction <add>, %189, %cst_59 [1] : vector<32x128xf32> to vector<32xf32>
    %191 = vector.shape_cast %190 : vector<32xf32> to vector<32x1xf32>
    %cst_60 = arith.constant 1.280000e+02 : f32
    %192 = vector.broadcast %cst_60 : f32 to vector<32x1xf32>
    %193 = arith.divf %191, %192 : vector<32x1xf32>
    %cst_61 = arith.constant 9.99999974E-6 : f32
    %194 = vector.broadcast %cst_61 : f32 to vector<32x1xf32>
    %195 = arith.addf %193, %194 : vector<32x1xf32>
    %196 = math.rsqrt %195 : vector<32x1xf32>
    %197 = vector.broadcast %196 : vector<32x1xf32> to vector<32x128xf32>
    %198 = arith.mulf %188, %197 : vector<32x128xf32>
    %199 = vector.shape_cast %180 : vector<128xf32> to vector<1x128xf32>
    %200 = vector.broadcast %199 : vector<1x128xf32> to vector<32x128xf32>
    %201 = arith.mulf %198, %200 : vector<32x128xf32>
    %202 = vector.shape_cast %182 : vector<128xf32> to vector<1x128xf32>
    %203 = vector.broadcast %202 : vector<1x128xf32> to vector<32x128xf32>
    %204 = arith.addf %201, %203 : vector<32x128xf32>
    %205 = arith.truncf %204 : vector<32x128xf32> to vector<32x128xbf16>
    %c0_62 = arith.constant 0 : index
    %c0_63 = arith.constant 0 : index
    %c0_64 = arith.constant 0 : index
    %206 = vector.load %arg12[%c0_62, %c0_63, %c0_64] : memref<1x128x256xbf16, #tpu.memory_space<vmem>>, vector<1x128x256xbf16>
    %207 = vector.shape_cast %206 : vector<1x128x256xbf16> to vector<128x256xbf16>
    %cst_65 = arith.constant dense<0.000000e+00> : vector<32x256xf32>
    %208 = tpu.matmul %205, %207, %cst_65 {dimension_numbers = #tpu.dot_dimension_numbers<[1], [0], [0], [1], [0, 0, 1, 1], [], []>} : vector<32x128xbf16>, vector<128x256xbf16>, vector<32x256xf32> -> vector<32x256xf32>
    %c0_66 = arith.constant 0 : index
    %c0_67 = arith.constant 0 : index
    %c0_68 = arith.constant 0 : index
    %209 = vector.load %arg13[%c0_66, %c0_67, %c0_68] : memref<1x1x256xf32, #tpu.memory_space<vmem>>, vector<1x1x256xf32>
    %210 = vector.shape_cast %209 : vector<1x1x256xf32> to vector<256xf32>
    %211 = vector.shape_cast %210 : vector<256xf32> to vector<1x256xf32>
    %212 = vector.broadcast %211 : vector<1x256xf32> to vector<32x256xf32>
    %213 = arith.addf %208, %212 : vector<32x256xf32>
    %cst_69 = arith.constant 5.000000e-01 : f32
    %214 = vector.broadcast %cst_69 : f32 to vector<32x256xf32>
    %215 = arith.mulf %214, %213 : vector<32x256xf32>
    %cst_70 = arith.constant 0.707106769 : f32
    %216 = vector.broadcast %cst_70 : f32 to vector<32x256xf32>
    %217 = arith.mulf %213, %216 : vector<32x256xf32>
    %218 = math.erf %217 : vector<32x256xf32>
    %cst_71 = arith.constant 1.000000e+00 : f32
    %219 = vector.broadcast %cst_71 : f32 to vector<32x256xf32>
    %220 = arith.addf %219, %218 : vector<32x256xf32>
    %221 = arith.mulf %215, %220 : vector<32x256xf32>
    %222 = arith.truncf %221 : vector<32x256xf32> to vector<32x256xbf16>
    %c0_72 = arith.constant 0 : index
    %c0_73 = arith.constant 0 : index
    %c0_74 = arith.constant 0 : index
    %223 = vector.load %arg14[%c0_72, %c0_73, %c0_74] : memref<1x256x128xbf16, #tpu.memory_space<vmem>>, vector<1x256x128xbf16>
    %224 = vector.shape_cast %223 : vector<1x256x128xbf16> to vector<256x128xbf16>
    %cst_75 = arith.constant dense<0.000000e+00> : vector<32x128xf32>
    %225 = tpu.matmul %222, %224, %cst_75 {dimension_numbers = #tpu.dot_dimension_numbers<[1], [0], [0], [1], [0, 0, 1, 1], [], []>} : vector<32x256xbf16>, vector<256x128xbf16>, vector<32x128xf32> -> vector<32x128xf32>
    %c0_76 = arith.constant 0 : index
    %c0_77 = arith.constant 0 : index
    %c0_78 = arith.constant 0 : index
    %226 = vector.load %arg15[%c0_76, %c0_77, %c0_78] : memref<1x1x128xf32, #tpu.memory_space<vmem>>, vector<1x1x128xf32>
    %227 = vector.shape_cast %226 : vector<1x1x128xf32> to vector<128xf32>
    %228 = vector.shape_cast %227 : vector<128xf32> to vector<1x128xf32>
    %229 = vector.broadcast %228 : vector<1x128xf32> to vector<32x128xf32>
    %230 = arith.addf %225, %229 : vector<32x128xf32>
    %231 = arith.addf %178, %230 : vector<32x128xf32>
    %c1_i32_79 = arith.constant 1 : i32
    %232 = arith.cmpi slt, %arg1, %c1_i32_79 : i32
    %233 = arith.extui %232 : i1 to i32
    %c0_i32_80 = arith.constant 0 : i32
    %234 = arith.cmpi ne, %233, %c0_i32_80 : i32
    scf.if %234 {
      %c0_83 = arith.constant 0 : index
      %c0_84 = arith.constant 0 : index
      %238 = vector.load %arg19[%c0_83, %c0_84] : memref<32x128xf32, #tpu.memory_space<vmem>>, vector<32x128xf32>
      tpu.vector_store %arg19[%c0_83, %c0_84], %231 {strides = array<i32>} : memref<32x128xf32, #tpu.memory_space<vmem>>, vector<32x128xf32>,
    } else {
    }
    %c1_i32_81 = arith.constant 1 : i32
    %235 = arith.cmpi eq, %arg1, %c1_i32_81 : i32
    %236 = arith.extui %235 : i1 to i32
    %c0_i32_82 = arith.constant 0 : i32
    %237 = arith.cmpi ne, %236, %c0_i32_82 : i32
    scf.if %237 {
      %c0_83 = arith.constant 0 : index
      %c0_84 = arith.constant 0 : index
      %238 = vector.load %arg16[%c0_83, %c0_84] : memref<1x128xf32, #tpu.memory_space<vmem>>, vector<1x128xf32>
      %239 = vector.shape_cast %238 : vector<1x128xf32> to vector<128xf32>
      %c0_85 = arith.constant 0 : index
      %c0_86 = arith.constant 0 : index
      %240 = vector.load %arg17[%c0_85, %c0_86] : memref<1x128xf32, #tpu.memory_space<vmem>>, vector<1x128xf32>
      %241 = vector.shape_cast %240 : vector<1x128xf32> to vector<128xf32>
      %cst_87 = arith.constant dense<0.000000e+00> : vector<32xf32>
      %242 = vector.multi_reduction <add>, %231, %cst_87 [1] : vector<32x128xf32> to vector<32xf32>
      %243 = vector.shape_cast %242 : vector<32xf32> to vector<32x1xf32>
      %cst_88 = arith.constant 1.280000e+02 : f32
      %244 = vector.broadcast %cst_88 : f32 to vector<32x1xf32>
      %245 = arith.divf %243, %244 : vector<32x1xf32>
      %246 = vector.broadcast %245 : vector<32x1xf32> to vector<32x128xf32>
      %247 = arith.subf %231, %246 : vector<32x128xf32>
      %248 = arith.mulf %247, %247 : vector<32x128xf32>
      %cst_89 = arith.constant dense<0.000000e+00> : vector<32xf32>
      %249 = vector.multi_reduction <add>, %248, %cst_89 [1] : vector<32x128xf32> to vector<32xf32>
      %250 = vector.shape_cast %249 : vector<32xf32> to vector<32x1xf32>
      %cst_90 = arith.constant 1.280000e+02 : f32
      %251 = vector.broadcast %cst_90 : f32 to vector<32x1xf32>
      %252 = arith.divf %250, %251 : vector<32x1xf32>
      %cst_91 = arith.constant 9.99999974E-6 : f32
      %253 = vector.broadcast %cst_91 : f32 to vector<32x1xf32>
      %254 = arith.addf %252, %253 : vector<32x1xf32>
      %255 = math.rsqrt %254 : vector<32x1xf32>
      %256 = vector.broadcast %255 : vector<32x1xf32> to vector<32x128xf32>
      %257 = arith.mulf %247, %256 : vector<32x128xf32>
      %258 = vector.shape_cast %239 : vector<128xf32> to vector<1x128xf32>
      %259 = vector.broadcast %258 : vector<1x128xf32> to vector<32x128xf32>
      %260 = arith.mulf %257, %259 : vector<32x128xf32>
      %261 = vector.shape_cast %241 : vector<128xf32> to vector<1x128xf32>
      %262 = vector.broadcast %261 : vector<1x128xf32> to vector<32x128xf32>
      %263 = arith.addf %260, %262 : vector<32x128xf32>
      %c0_92 = arith.constant 0 : index
      %c0_93 = arith.constant 0 : index
      %264 = vector.load %arg19[%c0_92, %c0_93] : memref<32x128xf32, #tpu.memory_space<vmem>>, vector<32x128xf32>
      tpu.vector_store %arg19[%c0_92, %c0_93], %263 {strides = array<i32>} : memref<32x128xf32, #tpu.memory_space<vmem>>, vector<32x128xf32>,
    } else {
    }
    return
  }
  func.func @transform_0(%arg0: i32, %arg1: i32) -> (i32, i32) {
    %c0_i32 = arith.constant 0 : i32
    %c0_i32_0 = arith.constant 0 : i32
    return %arg0, %c0_i32 : i32, i32
  }
  func.func @transform_1(%arg0: i32, %arg1: i32) -> (i32, i32, i32) {
    %c0_i32 = arith.constant 0 : i32
    %c0_i32_0 = arith.constant 0 : i32
    %c0_i32_1 = arith.constant 0 : i32
    return %arg1, %c0_i32, %c0_i32_0 : i32, i32, i32
  }
  func.func @transform_2(%arg0: i32, %arg1: i32) -> (i32, i32, i32) {
    %c0_i32 = arith.constant 0 : i32
    %c0_i32_0 = arith.constant 0 : i32
    %c0_i32_1 = arith.constant 0 : i32
    return %arg1, %c0_i32, %c0_i32_0 : i32, i32, i32
  }
  func.func @transform_3(%arg0: i32, %arg1: i32) -> (i32, i32, i32) {
    %c0_i32 = arith.constant 0 : i32
    %c0_i32_0 = arith.constant 0 : i32
    %c0_i32_1 = arith.constant 0 : i32
    return %arg1, %c0_i32, %c0_i32_0 : i32, i32, i32
  }
  func.func @transform_4(%arg0: i32, %arg1: i32) -> (i32, i32, i32) {
    %c0_i32 = arith.constant 0 : i32
    %c0_i32_0 = arith.constant 0 : i32
    %c0_i32_1 = arith.constant 0 : i32
    return %arg1, %c0_i32, %c0_i32_0 : i32, i32, i32
  }
  func.func @transform_5(%arg0: i32, %arg1: i32) -> (i32, i32, i32, i32) {
    %c0_i32 = arith.constant 0 : i32
    %c0_i32_0 = arith.constant 0 : i32
    %c0_i32_1 = arith.constant 0 : i32
    %c0_i32_2 = arith.constant 0 : i32
    return %arg1, %c0_i32, %c0_i32_0, %c0_i32_1 : i32, i32, i32, i32
  }
  func.func @transform_6(%arg0: i32, %arg1: i32) -> (i32, i32, i32) {
    %c0_i32 = arith.constant 0 : i32
    %c0_i32_0 = arith.constant 0 : i32
    %c0_i32_1 = arith.constant 0 : i32
    return %arg1, %c0_i32, %c0_i32_0 : i32, i32, i32
  }
  func.func @transform_7(%arg0: i32, %arg1: i32) -> (i32, i32, i32) {
    %c0_i32 = arith.constant 0 : i32
    %c0_i32_0 = arith.constant 0 : i32
    %c0_i32_1 = arith.constant 0 : i32
    return %arg1, %c0_i32, %c0_i32_0 : i32, i32, i32
  }
  func.func @transform_8(%arg0: i32, %arg1: i32) -> (i32, i32, i32) {
    %c0_i32 = arith.constant 0 : i32
    %c0_i32_0 = arith.constant 0 : i32
    %c0_i32_1 = arith.constant 0 : i32
    return %arg1, %c0_i32, %c0_i32_0 : i32, i32, i32
  }
  func.func @transform_9(%arg0: i32, %arg1: i32) -> (i32, i32, i32) {
    %c0_i32 = arith.constant 0 : i32
    %c0_i32_0 = arith.constant 0 : i32
    %c0_i32_1 = arith.constant 0 : i32
    return %arg1, %c0_i32, %c0_i32_0 : i32, i32, i32
  }
  func.func @transform_10(%arg0: i32, %arg1: i32) -> (i32, i32, i32) {
    %c0_i32 = arith.constant 0 : i32
    %c0_i32_0 = arith.constant 0 : i32
    %c0_i32_1 = arith.constant 0 : i32
    return %arg1, %c0_i32, %c0_i32_0 : i32, i32, i32
  }
  func.func @transform_11(%arg0: i32, %arg1: i32) -> (i32, i32, i32) {
    %c0_i32 = arith.constant 0 : i32
    %c0_i32_0 = arith.constant 0 : i32
    %c0_i32_1 = arith.constant 0 : i32
    return %arg1, %c0_i32, %c0_i32_0 : i32, i32, i32
  }
  func.func @transform_12(%arg0: i32, %arg1: i32) -> (i32, i32, i32) {
    %c0_i32 = arith.constant 0 : i32
    %c0_i32_0 = arith.constant 0 : i32
    %c0_i32_1 = arith.constant 0 : i32
    return %arg1, %c0_i32, %c0_i32_0 : i32, i32, i32
  }
  func.func @transform_13(%arg0: i32, %arg1: i32) -> (i32, i32, i32) {
    %c0_i32 = arith.constant 0 : i32
    %c0_i32_0 = arith.constant 0 : i32
    %c0_i32_1 = arith.constant 0 : i32
    return %arg1, %c0_i32, %c0_i32_0 : i32, i32, i32
  }
  func.func @transform_14(%arg0: i32, %arg1: i32) -> (i32, i32) {
    %c0_i32 = arith.constant 0 : i32
    %c0_i32_0 = arith.constant 0 : i32
    %c0_i32_1 = arith.constant 0 : i32
    return %c0_i32, %c0_i32_0 : i32, i32
  }
  func.func @transform_15(%arg0: i32, %arg1: i32) -> (i32, i32) {
    %c0_i32 = arith.constant 0 : i32
    %c0_i32_0 = arith.constant 0 : i32
    %c0_i32_1 = arith.constant 0 : i32
    return %c0_i32, %c0_i32_0 : i32, i32
  }
  func.func @transform_16(%arg0: i32, %arg1: i32) -> i32 {
    %c0_i32 = arith.constant 0 : i32
    %c0_i32_0 = arith.constant 0 : i32
    return %c0_i32 : i32
  }
  func.func @transform_17(%arg0: i32, %arg1: i32) -> (i32, i32) {
    %c0_i32 = arith.constant 0 : i32
    %c0_i32_0 = arith.constant 0 : i32
    return %arg0, %c0_i32 : i32, i32
  }
}

</mosaic_0001>

<llo_original>
// kernel: tpu_custom_call.1
$region0: #{tpu_custom_call.1}
  #allocation0 [shape = 'u32[]', space=smem, size = 0x4, offset = 0x4, fixed_abs, tag = 'smem constant byte address 0x4 - core index']
  #allocation1 [shape = 'u32[144,128]{1,0:T(1,128)}', space=vmem, size = 0x12000, scoped, tag = 'internal scratch']
  %s0 = inlined_call_operand.vmem [shape: f32[64,128], index: 0, kind: input, shape index: {}]
  %s1 = inlined_call_operand.hbm [shape: f32[2,1,128], index: 1, kind: input, shape index: {}]
  %s2 = inlined_call_operand.hbm [shape: f32[2,1,128], index: 2, kind: input, shape index: {}]
  %s3 = inlined_call_operand.hbm [shape: bf16[2,128,384], index: 3, kind: input, shape index: {}]
  %s4 = inlined_call_operand.vmem [shape: f32[2,1,384], index: 4, kind: input, shape index: {}]
  %s5 = inlined_call_operand.vmem [shape: bf16[2,4,32,16], index: 5, kind: input, shape index: {}]
  %s6 = inlined_call_operand.vmem [shape: bf16[2,128,128], index: 6, kind: input, shape index: {}]
  %s7 = inlined_call_operand.hbm [shape: f32[2,1,128], index: 7, kind: input, shape index: {}]
  %s8 = inlined_call_operand.vmem [shape: f32[2,1,128], index: 8, kind: input, shape index: {}]
  %s9 = inlined_call_operand.vmem [shape: f32[2,1,128], index: 9, kind: input, shape index: {}]
  %s10 = inlined_call_operand.hbm [shape: bf16[2,128,256], index: 10, kind: input, shape index: {}]
  %s11 = inlined_call_operand.vmem [shape: f32[2,1,256], index: 11, kind: input, shape index: {}]
  %s12 = inlined_call_operand.hbm [shape: bf16[2,256,128], index: 12, kind: input, shape index: {}]
  %s13 = inlined_call_operand.vmem [shape: f32[2,1,128], index: 13, kind: input, shape index: {}]
  %s14 = inlined_call_operand.vmem [shape: f32[1,128], index: 14, kind: input, shape index: {}]
  %s15 = inlined_call_operand.vmem [shape: f32[1,128], index: 15, kind: input, shape index: {}]
  %s16 = inlined_call_operand.vmem [shape: f32[8], index: 16, kind: input, shape index: {}]
  %s17 = inlined_call_operand.hbm [shape: f32[64,128], index: 17, kind: output, shape index: {}]
  %s18 = sld [smem:[#allocation0]]
  $region141: #{tpu_custom_call.1} parent=0
    _
  %s20 = ssub.s32 1, %s18
  %s21 = scalar_select 0, %s20, %s18
  $region1: #{tpu_custom_call.1} parent=0
    #allocation2 [shape = 'u8[1024]{0}', space=vmem, size = 0x400, scoped, tag = 'input window, operand 1']
    #allocation3 [shape = 's32[2]{0}', space=sflag, size = 0x8, scoped, tag = 'scoped memory for tpu_custom_call.1']
    #allocation4 [shape = 's32[2]{0}', space=sflag, size = 0x8, scoped, tag = 'scoped memory for tpu_custom_call.1']
    #allocation5 [shape = 's32[2]{0}', space=sflag, size = 0x8, scoped, tag = 'scoped memory for tpu_custom_call.1']
    #allocation6 [shape = 'u8[1024]{0}', space=vmem, size = 0x400, scoped, tag = 'input window, operand 2']
    #allocation7 [shape = 's32[2]{0}', space=sflag, size = 0x8, scoped, tag = 'scoped memory for tpu_custom_call.1']
    #allocation8 [shape = 'u8[196608]{0}', space=vmem, size = 0x30000, scoped, tag = 'input window, operand 3']
    #allocation9 [shape = 'u8[1024]{0}', space=vmem, size = 0x400, scoped, tag = 'input window, operand 7']
    #allocation10 [shape = 's32[2]{0}', space=sflag, size = 0x8, scoped, tag = 'scoped memory for tpu_custom_call.1']
    #allocation11 [shape = 'u8[131072]{0}', space=vmem, size = 0x20000, scoped, tag = 'input window, operand 10']
    #allocation12 [shape = 'u8[131072]{0}', space=vmem, size = 0x20000, scoped, tag = 'input window, operand 12']
    #allocation13 [shape = 's32[2]{0}', space=sflag, size = 0x8, scoped, tag = 'scoped memory for tpu_custom_call.1']
    #allocation14 [shape = 'u8[512]{0}', space=smem, size = 0x200, scoped, tag = 'input window, operand 16, single buffered']
    #allocation15 [shape = 'u8[32768]{0}', space=vmem, size = 0x8000, scoped, tag = 'output window, operand 0']
    %22 = vsyncpa [#allocation3], 0
    %s23 = scalar_lea.sflag [#allocation3], 1
    %24 = vsyncpa %s23, 0
    %25 = vsyncpa [#allocation7], 0
    %s26 = scalar_lea.sflag [#allocation7], 1
    %27 = vsyncpa %s26, 0
    %28 = vsyncpa [#allocation10], 0
    %s29 = scalar_lea.sflag [#allocation10], 1
    %30 = vsyncpa %s29, 0
    %31 = vsyncpa [#allocation13], 0
    %s32 = scalar_lea.sflag [#allocation13], 1
    %33 = vsyncpa %s32, 0
    %34 = vsyncpa [#allocation5], 0
    %35 = vsyncpa [#allocation4], 0
    %s36 = scalar_lea.sflag [#allocation4], 1
    %37 = vsyncpa %s36, 0
    loop: start=0, step=1, limit=6
    $region2: #{tpu_custom_call.1} parent=1 // loop_pre_header
      _
    $region3: #{tpu_custom_call.1} parent=1 // loop_header
      %s39 = sphi 0, %s43
      %p40 = scmp.ge.s32.totalorder %s39, 6
      %s46 = sphi 0, %s58
      %s47 = sphi 0, %s54
      %s48 = sphi 0, %s46
      %s49 = sphi 0, %s47
      %s50 = sphi 0, %s48
      %s51 = sphi 0, %s49
      %s61 = sphi 0, %s63
      %s64 = sphi 0, %s61
      %s65 = sphi 0, %s64
      %s81 = sphi 0, %s65
      %s87 = sphi 0, %s89
      %s90 = sphi 0, %s87
      %s91 = sphi 0, %s90
      %s107 = sphi 0, %s91
      %s113 = sphi 0, %s115
      %s116 = sphi 0, %s113
      %s117 = sphi 0, %s116
      %s133 = sphi 0, %s117
      %s139 = sphi 0, %s141
      %s142 = sphi 0, %s139
      %s143 = sphi 0, %s142
      %s159 = sphi 0, %s143
      %s165 = sphi 0, %s167
      %s168 = sphi 0, %s165
      %s169 = sphi 0, %s168
      %s185 = sphi 0, %s169
      %s191 = sphi 0, %s193
      %s194 = sphi 0, %s191
      %s195 = sphi 0, %s194
      %s211 = sphi 0, %s195
      %s217 = sphi 0, %s219
      %s220 = sphi 0, %s217
      %s221 = sphi 0, %s220
      %s237 = sphi 0, %s221
      %s243 = sphi 0, %s245
      %s246 = sphi 0, %s243
      %s247 = sphi 0, %s246
      %s263 = sphi 0, %s247
      %s269 = sphi 0, %s271
      %s272 = sphi 0, %s269
      %s273 = sphi 0, %s272
      %s289 = sphi 0, %s273
      %s295 = sphi 0, %s297
      %s298 = sphi 0, %s295
      %s299 = sphi 0, %s298
      %s315 = sphi 0, %s299
      %s321 = sphi 0, %s323
      %s324 = sphi 0, %s321
      %s325 = sphi 0, %s324
      %s341 = sphi 0, %s325
      %s347 = sphi 0, %s349
      %s350 = sphi 0, %s347
      %s351 = sphi 0, %s350
      %s367 = sphi 0, %s351
      %s373 = sphi 0, %s375
      %s376 = sphi 0, %s373
      %s377 = sphi 0, %s376
      %s393 = sphi 0, %s377
      %s399 = sphi 0, %s401
      %s402 = sphi 0, %s399
      %s403 = sphi 0, %s402
      %s419 = sphi 0, %s403
      %s423 = sphi 0, %s423
      %s425 = sphi 0, %s423
      %s426 = sphi 0, %s425
      %s440 = sphi 0, %s426
      %s444 = sphi 0, %s444
      %s446 = sphi 0, %s444
      %s447 = sphi 0, %s446
      %s461 = sphi 0, %s447
      %s465 = sphi 0, %s465
      %s467 = sphi 0, %s465
      %s468 = sphi 0, %s467
      %s482 = sphi 0, %s468
      %s488 = sphi 0, %s490
      %s491 = sphi 0, %s488
      %s492 = sphi 0, %s491
      %s508 = sphi 0, %s492
    $region4: #{tpu_custom_call.1} parent=1 // loop_header_branch
      %42 = sbr.rel (%p40) target = $region8
    $region5: #{tpu_custom_call.1} parent=1 // loop_body
      %s44 = ssub.s32 %s39, 1
      %s45 = ssub.s32 %s39, 2
      %s52 = sadd.s32 1, %s47
      %p53 = scmp.ge.s32.totalorder %s52, 2
      %s54 = scalar_select %p53, 0, %s52
      %s55 = sadd.s32 1, %s46
      %s56 = scalar_select %p53, %s55, %s46
      %p57 = scmp.ge.s32.totalorder %s56, 2
      %s58 = scalar_select %p57, 0, %s56
      %s59 = ssub.s32 %s46, %s58
      %p60 = scmp.eq.s32.totalorder %s59, 0
      %s62 = sadd.s32 %s61, 1
      %s63 = scalar_select %p60, %s61, %s62
      %p66 = pneg %p60
      %p67 = scmp.eq.s32.totalorder %s39, 3
      %p68 = por %p66, %p67
      %p69 = scmp.ne.s32.totalorder %s61, %s64
      %p70 = scmp.eq.s32.totalorder %s39, 0
      %p71 = por %p69, %p70
      %p72 = scmp.ne.s32.totalorder %s61, %s64
      %p73 = scmp.eq.s32.totalorder %s44, 3
      %p74 = por %p72, %p73
      %p75 = scmp.ne.s32.totalorder %s64, %s65
      %p76 = scmp.eq.s32.totalorder %s44, 0
      %p77 = por %p75, %p76
      %p78 = scmp.ne.s32.totalorder %s64, %s65
      %p79 = scmp.eq.s32.totalorder %s45, 3
      %p80 = por %p78, %p79
      %p82 = scmp.ne.s32.totalorder %s65, %s81
      %p83 = scmp.eq.s32.totalorder %s45, 0
      %p84 = por %p82, %p83
      %s85 = ssub.s32 %s47, %s54
      %p86 = scmp.eq.s32.totalorder %s85, 0
      %s88 = sadd.s32 %s87, 1
      %s89 = scalar_select %p86, %s87, %s88
      %p92 = pneg %p86
      %p93 = scmp.eq.s32.totalorder %s39, 3
      %p94 = por %p92, %p93
      %p95 = scmp.ne.s32.totalorder %s87, %s90
      %p96 = scmp.eq.s32.totalorder %s39, 0
      %p97 = por %p95, %p96
      %p98 = scmp.ne.s32.totalorder %s87, %s90
      %p99 = scmp.eq.s32.totalorder %s44, 3
      %p100 = por %p98, %p99
      %p101 = scmp.ne.s32.totalorder %s90, %s91
      %p102 = scmp.eq.s32.totalorder %s44, 0
      %p103 = por %p101, %p102
      %p104 = scmp.ne.s32.totalorder %s90, %s91
      %p105 = scmp.eq.s32.totalorder %s45, 3
      %p106 = por %p104, %p105
      %p108 = scmp.ne.s32.totalorder %s91, %s107
      %p109 = scmp.eq.s32.totalorder %s45, 0
      %p110 = por %p108, %p109
      %s111 = ssub.s32 %s47, %s54
      %p112 = scmp.eq.s32.totalorder %s111, 0
      %s114 = sadd.s32 %s113, 1
      %s115 = scalar_select %p112, %s113, %s114
      %p118 = pneg %p112
      %p119 = scmp.eq.s32.totalorder %s39, 3
      %p120 = por %p118, %p119
      %p121 = scmp.ne.s32.totalorder %s113, %s116
      %p122 = scmp.eq.s32.totalorder %s39, 0
      %p123 = por %p121, %p122
      %p124 = scmp.ne.s32.totalorder %s113, %s116
      %p125 = scmp.eq.s32.totalorder %s44, 3
      %p126 = por %p124, %p125
      %p127 = scmp.ne.s32.totalorder %s116, %s117
      %p128 = scmp.eq.s32.totalorder %s44, 0
      %p129 = por %p127, %p128
      %p130 = scmp.ne.s32.totalorder %s116, %s117
      %p131 = scmp.eq.s32.totalorder %s45, 3
      %p132 = por %p130, %p131
      %p134 = scmp.ne.s32.totalorder %s117, %s133
      %p135 = scmp.eq.s32.totalorder %s45, 0
      %p136 = por %p134, %p135
      %s137 = ssub.s32 %s47, %s54
      %p138 = scmp.eq.s32.totalorder %s137, 0
      %s140 = sadd.s32 %s139, 1
      %s141 = scalar_select %p138, %s139, %s140
      %p144 = pneg %p138
      %p145 = scmp.eq.s32.totalorder %s39, 3
      %p146 = por %p144, %p145
      %p147 = scmp.ne.s32.totalorder %s139, %s142
      %p148 = scmp.eq.s32.totalorder %s39, 0
      %p149 = por %p147, %p148
      %p150 = scmp.ne.s32.totalorder %s139, %s142
      %p151 = scmp.eq.s32.totalorder %s44, 3
      %p152 = por %p150, %p151
      %p153 = scmp.ne.s32.totalorder %s142, %s143
      %p154 = scmp.eq.s32.totalorder %s44, 0
      %p155 = por %p153, %p154
      %p156 = scmp.ne.s32.totalorder %s142, %s143
      %p157 = scmp.eq.s32.totalorder %s45, 3
      %p158 = por %p156, %p157
      %p160 = scmp.ne.s32.totalorder %s143, %s159
      %p161 = scmp.eq.s32.totalorder %s45, 0
      %p162 = por %p160, %p161
      %s163 = ssub.s32 %s47, %s54
      %p164 = scmp.eq.s32.totalorder %s163, 0
      %s166 = sadd.s32 %s165, 1
      %s167 = scalar_select %p164, %s165, %s166
      %p170 = pneg %p164
      %p171 = scmp.eq.s32.totalorder %s39, 3
      %p172 = por %p170, %p171
      %p173 = scmp.ne.s32.totalorder %s165, %s168
      %p174 = scmp.eq.s32.totalorder %s39, 0
      %p175 = por %p173, %p174
      %p176 = scmp.ne.s32.totalorder %s165, %s168
      %p177 = scmp.eq.s32.totalorder %s44, 3
      %p178 = por %p176, %p177
      %p179 = scmp.ne.s32.totalorder %s168, %s169
      %p180 = scmp.eq.s32.totalorder %s44, 0
      %p181 = por %p179, %p180
      %p182 = scmp.ne.s32.totalorder %s168, %s169
      %p183 = scmp.eq.s32.totalorder %s45, 3
      %p184 = por %p182, %p183
      %p186 = scmp.ne.s32.totalorder %s169, %s185
      %p187 = scmp.eq.s32.totalorder %s45, 0
      %p188 = por %p186, %p187
      %s189 = ssub.s32 %s47, %s54
      %p190 = scmp.eq.s32.totalorder %s189, 0
      %s192 = sadd.s32 %s191, 1
      %s193 = scalar_select %p190, %s191, %s192
      %p196 = pneg %p190
      %p197 = scmp.eq.s32.totalorder %s39, 3
      %p198 = por %p196, %p197
      %p199 = scmp.ne.s32.totalorder %s191, %s194
      %p200 = scmp.eq.s32.totalorder %s39, 0
      %p201 = por %p199, %p200
      %p202 = scmp.ne.s32.totalorder %s191, %s194
      %p203 = scmp.eq.s32.totalorder %s44, 3
      %p204 = por %p202, %p203
      %p205 = scmp.ne.s32.totalorder %s194, %s195
      %p206 = scmp.eq.s32.totalorder %s44, 0
      %p207 = por %p205, %p206
      %p208 = scmp.ne.s32.totalorder %s194, %s195
      %p209 = scmp.eq.s32.totalorder %s45, 3
      %p210 = por %p208, %p209
      %p212 = scmp.ne.s32.totalorder %s195, %s211
      %p213 = scmp.eq.s32.totalorder %s45, 0
      %p214 = por %p212, %p213
      %s215 = ssub.s32 %s47, %s54
      %p216 = scmp.eq.s32.totalorder %s215, 0
      %s218 = sadd.s32 %s217, 1
      %s219 = scalar_select %p216, %s217, %s218
      %p222 = pneg %p216
      %p223 = scmp.eq.s32.totalorder %s39, 3
      %p224 = por %p222, %p223
      %p225 = scmp.ne.s32.totalorder %s217, %s220
      %p226 = scmp.eq.s32.totalorder %s39, 0
      %p227 = por %p225, %p226
      %p228 = scmp.ne.s32.totalorder %s217, %s220
      %p229 = scmp.eq.s32.totalorder %s44, 3
      %p230 = por %p228, %p229
      %p231 = scmp.ne.s32.totalorder %s220, %s221
      %p232 = scmp.eq.s32.totalorder %s44, 0
      %p233 = por %p231, %p232
      %p234 = scmp.ne.s32.totalorder %s220, %s221
      %p235 = scmp.eq.s32.totalorder %s45, 3
      %p236 = por %p234, %p235
      %p238 = scmp.ne.s32.totalorder %s221, %s237
      %p239 = scmp.eq.s32.totalorder %s45, 0
      %p240 = por %p238, %p239
      %s241 = ssub.s32 %s47, %s54
      %p242 = scmp.eq.s32.totalorder %s241, 0
      %s244 = sadd.s32 %s243, 1
      %s245 = scalar_select %p242, %s243, %s244
      %p248 = pneg %p242
      %p249 = scmp.eq.s32.totalorder %s39, 3
      %p250 = por %p248, %p249
      %p251 = scmp.ne.s32.totalorder %s243, %s246
      %p252 = scmp.eq.s32.totalorder %s39, 0
      %p253 = por %p251, %p252
      %p254 = scmp.ne.s32.totalorder %s243, %s246
      %p255 = scmp.eq.s32.totalorder %s44, 3
      %p256 = por %p254, %p255
      %p257 = scmp.ne.s32.totalorder %s246, %s247
      %p258 = scmp.eq.s32.totalorder %s44, 0
      %p259 = por %p257, %p258
      %p260 = scmp.ne.s32.totalorder %s246, %s247
      %p261 = scmp.eq.s32.totalorder %s45, 3
      %p262 = por %p260, %p261
      %p264 = scmp.ne.s32.totalorder %s247, %s263
      %p265 = scmp.eq.s32.totalorder %s45, 0
      %p266 = por %p264, %p265
      %s267 = ssub.s32 %s47, %s54
      %p268 = scmp.eq.s32.totalorder %s267, 0
      %s270 = sadd.s32 %s269, 1
      %s271 = scalar_select %p268, %s269, %s270
      %p274 = pneg %p268
      %p275 = scmp.eq.s32.totalorder %s39, 3
      %p276 = por %p274, %p275
      %p277 = scmp.ne.s32.totalorder %s269, %s272
      %p278 = scmp.eq.s32.totalorder %s39, 0
      %p279 = por %p277, %p278
      %p280 = scmp.ne.s32.totalorder %s269, %s272
      %p281 = scmp.eq.s32.totalorder %s44, 3
      %p282 = por %p280, %p281
      %p283 = scmp.ne.s32.totalorder %s272, %s273
      %p284 = scmp.eq.s32.totalorder %s44, 0
      %p285 = por %p283, %p284
      %p286 = scmp.ne.s32.totalorder %s272, %s273
      %p287 = scmp.eq.s32.totalorder %s45, 3
      %p288 = por %p286, %p287
      %p290 = scmp.ne.s32.totalorder %s273, %s289
      %p291 = scmp.eq.s32.totalorder %s45, 0
      %p292 = por %p290, %p291
      %s293 = ssub.s32 %s47, %s54
      %p294 = scmp.eq.s32.totalorder %s293, 0
      %s296 = sadd.s32 %s295, 1
      %s297 = scalar_select %p294, %s295, %s296
      %p300 = pneg %p294
      %p301 = scmp.eq.s32.totalorder %s39, 3
      %p302 = por %p300, %p301
      %p303 = scmp.ne.s32.totalorder %s295, %s298
      %p304 = scmp.eq.s32.totalorder %s39, 0
      %p305 = por %p303, %p304
      %p306 = scmp.ne.s32.totalorder %s295, %s298
      %p307 = scmp.eq.s32.totalorder %s44, 3
      %p308 = por %p306, %p307
      %p309 = scmp.ne.s32.totalorder %s298, %s299
      %p310 = scmp.eq.s32.totalorder %s44, 0
      %p311 = por %p309, %p310
      %p312 = scmp.ne.s32.totalorder %s298, %s299
      %p313 = scmp.eq.s32.totalorder %s45, 3
      %p314 = por %p312, %p313
      %p316 = scmp.ne.s32.totalorder %s299, %s315
      %p317 = scmp.eq.s32.totalorder %s45, 0
      %p318 = por %p316, %p317
      %s319 = ssub.s32 %s47, %s54
      %p320 = scmp.eq.s32.totalorder %s319, 0
      %s322 = sadd.s32 %s321, 1
      %s323 = scalar_select %p320, %s321, %s322
      %p326 = pneg %p320
      %p327 = scmp.eq.s32.totalorder %s39, 3
      %p328 = por %p326, %p327
      %p329 = scmp.ne.s32.totalorder %s321, %s324
      %p330 = scmp.eq.s32.totalorder %s39, 0
      %p331 = por %p329, %p330
      %p332 = scmp.ne.s32.totalorder %s321, %s324
      %p333 = scmp.eq.s32.totalorder %s44, 3
      %p334 = por %p332, %p333
      %p335 = scmp.ne.s32.totalorder %s324, %s325
      %p336 = scmp.eq.s32.totalorder %s44, 0
      %p337 = por %p335, %p336
      %p338 = scmp.ne.s32.totalorder %s324, %s325
      %p339 = scmp.eq.s32.totalorder %s45, 3
      %p340 = por %p338, %p339
      %p342 = scmp.ne.s32.totalorder %s325, %s341
      %p343 = scmp.eq.s32.totalorder %s45, 0
      %p344 = por %p342, %p343
      %s345 = ssub.s32 %s47, %s54
      %p346 = scmp.eq.s32.totalorder %s345, 0
      %s348 = sadd.s32 %s347, 1
      %s349 = scalar_select %p346, %s347, %s348
      %p352 = pneg %p346
      %p353 = scmp.eq.s32.totalorder %s39, 3
      %p354 = por %p352, %p353
      %p355 = scmp.ne.s32.totalorder %s347, %s350
      %p356 = scmp.eq.s32.totalorder %s39, 0
      %p357 = por %p355, %p356
      %p358 = scmp.ne.s32.totalorder %s347, %s350
      %p359 = scmp.eq.s32.totalorder %s44, 3
      %p360 = por %p358, %p359
      %p361 = scmp.ne.s32.totalorder %s350, %s351
      %p362 = scmp.eq.s32.totalorder %s44, 0
      %p363 = por %p361, %p362
      %p364 = scmp.ne.s32.totalorder %s350, %s351
      %p365 = scmp.eq.s32.totalorder %s45, 3
      %p366 = por %p364, %p365
      %p368 = scmp.ne.s32.totalorder %s351, %s367
      %p369 = scmp.eq.s32.totalorder %s45, 0
      %p370 = por %p368, %p369
      %s371 = ssub.s32 %s47, %s54
      %p372 = scmp.eq.s32.totalorder %s371, 0
      %s374 = sadd.s32 %s373, 1
      %s375 = scalar_select %p372, %s373, %s374
      %p378 = pneg %p372
      %p379 = scmp.eq.s32.totalorder %s39, 3
      %p380 = por %p378, %p379
      %p381 = scmp.ne.s32.totalorder %s373, %s376
      %p382 = scmp.eq.s32.totalorder %s39, 0
      %p383 = por %p381, %p382
      %p384 = scmp.ne.s32.totalorder %s373, %s376
      %p385 = scmp.eq.s32.totalorder %s44, 3
      %p386 = por %p384, %p385
      %p387 = scmp.ne.s32.totalorder %s376, %s377
      %p388 = scmp.eq.s32.totalorder %s44, 0
      %p389 = por %p387, %p388
      %p390 = scmp.ne.s32.totalorder %s376, %s377
      %p391 = scmp.eq.s32.totalorder %s45, 3
      %p392 = por %p390, %p391
      %p394 = scmp.ne.s32.totalorder %s377, %s393
      %p395 = scmp.eq.s32.totalorder %s45, 0
      %p396 = por %p394, %p395
      %s397 = ssub.s32 %s47, %s54
      %p398 = scmp.eq.s32.totalorder %s397, 0
      %s400 = sadd.s32 %s399, 1
      %s401 = scalar_select %p398, %s399, %s400
      %p404 = pneg %p398
      %p405 = scmp.eq.s32.totalorder %s39, 3
      %p406 = por %p404, %p405
      %p407 = scmp.ne.s32.totalorder %s399, %s402
      %p408 = scmp.eq.s32.totalorder %s39, 0
      %p409 = por %p407, %p408
      %p410 = scmp.ne.s32.totalorder %s399, %s402
      %p411 = scmp.eq.s32.totalorder %s44, 3
      %p412 = por %p410, %p411
      %p413 = scmp.ne.s32.totalorder %s402, %s403
      %p414 = scmp.eq.s32.totalorder %s44, 0
      %p415 = por %p413, %p414
      %p416 = scmp.ne.s32.totalorder %s402, %s403
      %p417 = scmp.eq.s32.totalorder %s45, 3
      %p418 = por %p416, %p417
      %p420 = scmp.ne.s32.totalorder %s403, %s419
      %p421 = scmp.eq.s32.totalorder %s45, 0
      %p422 = por %p420, %p421
      %s424 = sadd.s32 %s423, 1
      %p427 = scmp.eq.s32.totalorder %s39, 3
      %p428 = scmp.ne.s32.totalorder %s423, %s425
      %p429 = scmp.eq.s32.totalorder %s39, 0
      %p430 = por %p428, %p429
      %p431 = scmp.ne.s32.totalorder %s423, %s425
      %p432 = scmp.eq.s32.totalorder %s44, 3
      %p433 = por %p431, %p432
      %p434 = scmp.ne.s32.totalorder %s425, %s426
      %p435 = scmp.eq.s32.totalorder %s44, 0
      %p436 = por %p434, %p435
      %p437 = scmp.ne.s32.totalorder %s425, %s426
      %p438 = scmp.eq.s32.totalorder %s45, 3
      %p439 = por %p437, %p438
      %p441 = scmp.ne.s32.totalorder %s426, %s440
      %p442 = scmp.eq.s32.totalorder %s45, 0
      %p443 = por %p441, %p442
      %s445 = sadd.s32 %s444, 1
      %p448 = scmp.eq.s32.totalorder %s39, 3
      %p449 = scmp.ne.s32.totalorder %s444, %s446
      %p450 = scmp.eq.s32.totalorder %s39, 0
      %p451 = por %p449, %p450
      %p452 = scmp.ne.s32.totalorder %s444, %s446
      %p453 = scmp.eq.s32.totalorder %s44, 3
      %p454 = por %p452, %p453
      %p455 = scmp.ne.s32.totalorder %s446, %s447
      %p456 = scmp.eq.s32.totalorder %s44, 0
      %p457 = por %p455, %p456
      %p458 = scmp.ne.s32.totalorder %s446, %s447
      %p459 = scmp.eq.s32.totalorder %s45, 3
      %p460 = por %p458, %p459
      %p462 = scmp.ne.s32.totalorder %s447, %s461
      %p463 = scmp.eq.s32.totalorder %s45, 0
      %p464 = por %p462, %p463
      %s466 = sadd.s32 %s465, 1
      %p469 = scmp.eq.s32.totalorder %s39, 3
      %p470 = scmp.ne.s32.totalorder %s465, %s467
      %p471 = scmp.eq.s32.totalorder %s39, 0
      %p472 = por %p470, %p471
      %p473 = scmp.ne.s32.totalorder %s465, %s467
      %p474 = scmp.eq.s32.totalorder %s44, 3
      %p475 = por %p473, %p474
      %p476 = scmp.ne.s32.totalorder %s467, %s468
      %p477 = scmp.eq.s32.totalorder %s44, 0
      %p478 = por %p476, %p477
      %p479 = scmp.ne.s32.totalorder %s467, %s468
      %p480 = scmp.eq.s32.totalorder %s45, 3
      %p481 = por %p479, %p480
      %p483 = scmp.ne.s32.totalorder %s468, %s482
      %p484 = scmp.eq.s32.totalorder %s45, 0
      %p485 = por %p483, %p484
      %s486 = ssub.s32 %s46, %s58
      %p487 = scmp.eq.s32.totalorder %s486, 0
      %s489 = sadd.s32 %s488, 1
      %s490 = scalar_select %p487, %s488, %s489
      %p493 = pneg %p487
      %p494 = scmp.eq.s32.totalorder %s39, 3
      %p495 = por %p493, %p494
      %p496 = scmp.ne.s32.totalorder %s488, %s491
      %p497 = scmp.eq.s32.totalorder %s39, 0
      %p498 = por %p496, %p497
      %p499 = scmp.ne.s32.totalorder %s488, %s491
      %p500 = scmp.eq.s32.totalorder %s44, 3
      %p501 = por %p499, %p500
      %p502 = scmp.ne.s32.totalorder %s491, %s492
      %p503 = scmp.eq.s32.totalorder %s44, 0
      %p504 = por %p502, %p503
      %p505 = scmp.ne.s32.totalorder %s491, %s492
      %p506 = scmp.eq.s32.totalorder %s45, 3
      %p507 = por %p505, %p506
      %p509 = scmp.ne.s32.totalorder %s492, %s508
      %p510 = scmp.eq.s32.totalorder %s45, 0
      %p511 = por %p509, %p510
      %p512 = scmp.le.s32.totalorder 1, %s39
      %p513 = scmp.lt.s32.totalorder %s39, 5
      %p514 = pnand %p512, %p513
      %p515 = pneg %p514
      // Predicated region
      $region9: #{tpu_custom_call.1} parent=5 // pred_check
        _
      $region10: #{tpu_custom_call.1} parent=5 // pred_check_branch
        %517 = sbr.rel (%p514) target = $region12
      $region11: #{tpu_custom_call.1} parent=5 // pred_region
        %s518 = ssub.s32 %s39, 1
        // Predicated region
        $region13: #{tpu_custom_call.1} parent=11 // pred_check
          %p519 = pneg %p436
        $region14: #{tpu_custom_call.1} parent=11 // pred_check_branch
          %521 = sbr.rel (%p519) target = $region16
        $region15: #{tpu_custom_call.1} parent=11 // pred_region
          _
        $region16: #{tpu_custom_call.1} parent=11 // pred_fallthru
          _
        // Predicated region
        $region17: #{tpu_custom_call.1} parent=11 // pred_check
          %p522 = pneg %p457
        $region18: #{tpu_custom_call.1} parent=11 // pred_check_branch
          %524 = sbr.rel (%p522) target = $region20
        $region19: #{tpu_custom_call.1} parent=11 // pred_region
          _
        $region20: #{tpu_custom_call.1} parent=11 // pred_fallthru
          _
        // Predicated region
        $region21: #{tpu_custom_call.1} parent=11 // pred_check
          %p525 = pneg %p478
        $region22: #{tpu_custom_call.1} parent=11 // pred_check_branch
          %527 = sbr.rel (%p525) target = $region24
        $region23: #{tpu_custom_call.1} parent=11 // pred_region
          %s529 = ssub.s32 16, 16
          %530 = vsyncadd [#allocation5], %s529
          %s532 = sshll.u32 %s16, 4
          %s533 = int_to_ptr.vmem [resolvable:$true] %s532
          %535 = dma.vmem_to_smem %s533, 16, [#allocation14], [#allocation5]
        $region24: #{tpu_custom_call.1} parent=11 // pred_fallthru
          _
      $region12: #{tpu_custom_call.1} parent=5 // pred_fallthru
        _
      %p536 = scmp.lt.s32.totalorder %s39, 4
      // Predicated region
      $region25: #{tpu_custom_call.1} parent=5 // pred_check
        %p537 = pneg %p536
      $region26: #{tpu_custom_call.1} parent=5 // pred_check_branch
        %539 = sbr.rel (%p537) target = $region28
      $region27: #{tpu_custom_call.1} parent=5 // pred_region
        // Predicated region
        $region29: #{tpu_custom_call.1} parent=27 // pred_check
          %p540 = pneg %p71
        $region30: #{tpu_custom_call.1} parent=27 // pred_check_branch
          %542 = sbr.rel (%p540) target = $region32
        $region31: #{tpu_custom_call.1} parent=27 // pred_region
          %s543 = smul.u32 4, %s46
          %p544 = scmp.lt.s32.totalorder %s543, 7
          %s545 = scalar_select %p544, %s543, 7
          %s546 = smul.addr %s545, 8
          %s547 = scalar_lea.vmem %s0, %s546
          %s548 = smul.u32 4, %s46
        $region32: #{tpu_custom_call.1} parent=27 // pred_fallthru
          _
        // Predicated region
        $region33: #{tpu_custom_call.1} parent=27 // pred_check
          %p549 = pneg %p97
        $region34: #{tpu_custom_call.1} parent=27 // pred_check_branch
          %551 = sbr.rel (%p549) target = $region36
        $region35: #{tpu_custom_call.1} parent=27 // pred_region
          %s552 = sand.u32 %s87, 1
          %s553 = scalar_lea.sflag [#allocation3], %s552
          %s554 = sand.u32 %s87, 1
          %s555 = scalar_lea.vmem [#allocation2], %s554
          %s557 = ssub.s32 16, 16
          %558 = vsyncadd %s553, %s557
          %s559 = smul.addr %s47, 16
          %s560 = scalar_lea.hbm %s1, %s559
          %s562 = sshll.u32 %s555, 4
          %s563 = int_to_ptr.vmem [resolvable:$true] %s562
          %565 = dma.hbm_to_vmem [thread:$0]  %s560, 16, %s563, %s553
        $region36: #{tpu_custom_call.1} parent=27 // pred_fallthru
          _
        // Predicated region
        $region37: #{tpu_custom_call.1} parent=27 // pred_check
          %p566 = pneg %p123
        $region38: #{tpu_custom_call.1} parent=27 // pred_check_branch
          %568 = sbr.rel (%p566) target = $region40
        $region39: #{tpu_custom_call.1} parent=27 // pred_region
          %s569 = sand.u32 %s39, 1
          %s570 = scalar_lea.sflag [#allocation7], %s569
          %s571 = sand.u32 %s113, 1
          %s572 = scalar_lea.vmem [#allocation6], %s571
          %s574 = ssub.s32 16, 16
          %575 = vsyncadd %s570, %s574
          %s576 = smul.addr %s47, 16
          %s577 = scalar_lea.hbm %s2, %s576
          %s579 = sshll.u32 %s572, 4
          %s580 = int_to_ptr.vmem [resolvable:$true] %s579
          %582 = dma.hbm_to_vmem [thread:$0]  %s577, 16, %s580, %s570
        $region40: #{tpu_custom_call.1} parent=27 // pred_fallthru
          _
        // Predicated region
        $region41: #{tpu_custom_call.1} parent=27 // pred_check
          %p583 = pneg %p149
        $region42: #{tpu_custom_call.1} parent=27 // pred_check_branch
          %585 = sbr.rel (%p583) target = $region44
        $region43: #{tpu_custom_call.1} parent=27 // pred_region
          %s586 = sand.u32 %s39, 1
          %s587 = scalar_lea.sflag [#allocation7], %s586
          %s588 = sand.u32 %s139, 1
          %s589 = smul.addr %s588, 192
          %s590 = scalar_lea.vmem [#allocation8], %s589
          %s592 = ssub.s32 3072, 3072
          %593 = vsyncadd %s587, %s592
          %s594 = smul.addr %s47, 48
          %s595 = smul.addr %s594, 64
          %s596 = scalar_lea.hbm %s3, %s595
          %s597 = sshll.u32 %s590, 4
          %s598 = int_to_ptr.vmem [resolvable:$true] %s597
          %603 = dma.hbm_to_vmem [thread:$0]  %s596, 3072, %s598, %s587, 192, 192, 12
        $region44: #{tpu_custom_call.1} parent=27 // pred_fallthru
          _
        // Predicated region
        $region45: #{tpu_custom_call.1} parent=27 // pred_check
          %p604 = pneg %p175
        $region46: #{tpu_custom_call.1} parent=27 // pred_check_branch
          %606 = sbr.rel (%p604) target = $region48
        $region47: #{tpu_custom_call.1} parent=27 // pred_region
          %p607 = scmp.lt.s32.totalorder %s47, 1
          %s608 = scalar_select %p607, %s47, 1
          %s609 = smul.addr %s608, 3
          %s610 = scalar_lea.vmem %s4, %s609
        $region48: #{tpu_custom_call.1} parent=27 // pred_fallthru
          _
        // Predicated region
        $region49: #{tpu_custom_call.1} parent=27 // pred_check
          %p611 = pneg %p201
        $region50: #{tpu_custom_call.1} parent=27 // pred_check_branch
          %613 = sbr.rel (%p611) target = $region52
        $region51: #{tpu_custom_call.1} parent=27 // pred_region
          %p614 = scmp.lt.s32.totalorder %s47, 1
          %s615 = scalar_select %p614, %s47, 1
          %s616 = smul.addr %s615, 16
          %s617 = smul.addr %s616, 4
          %s618 = scalar_lea.vmem %s5, %s617
        $region52: #{tpu_custom_call.1} parent=27 // pred_fallthru
          _
        // Predicated region
        $region53: #{tpu_custom_call.1} parent=27 // pred_check
          %p619 = pneg %p227
        $region54: #{tpu_custom_call.1} parent=27 // pred_check_branch
          %621 = sbr.rel (%p619) target = $region56
        $region55: #{tpu_custom_call.1} parent=27 // pred_region
          %p622 = scmp.lt.s32.totalorder %s47, 1
          %s623 = scalar_select %p622, %s47, 1
          %s624 = smul.addr %s623, 16
          %s625 = smul.addr %s624, 4
          %s626 = scalar_lea.vmem %s6, %s625
        $region56: #{tpu_custom_call.1} parent=27 // pred_fallthru
          _
        // Predicated region
        $region57: #{tpu_custom_call.1} parent=27 // pred_check
          %p627 = pneg %p253
        $region58: #{tpu_custom_call.1} parent=27 // pred_check_branch
          %629 = sbr.rel (%p627) target = $region60
        $region59: #{tpu_custom_call.1} parent=27 // pred_region
          %s630 = sand.u32 %s39, 1
          %s631 = scalar_lea.sflag [#allocation10], %s630
          %s632 = sand.u32 %s243, 1
          %s633 = scalar_lea.vmem [#allocation9], %s632
          %s635 = ssub.s32 16, 16
          %636 = vsyncadd %s631, %s635
          %s637 = smul.addr %s47, 16
          %s638 = scalar_lea.hbm %s7, %s637
          %s640 = sshll.u32 %s633, 4
          %s641 = int_to_ptr.vmem [resolvable:$true] %s640
          %643 = dma.hbm_to_vmem [thread:$0]  %s638, 16, %s641, %s631
        $region60: #{tpu_custom_call.1} parent=27 // pred_fallthru
          _
        // Predicated region
        $region61: #{tpu_custom_call.1} parent=27 // pred_check
          %p644 = pneg %p279
        $region62: #{tpu_custom_call.1} parent=27 // pred_check_branch
          %646 = sbr.rel (%p644) target = $region64
        $region63: #{tpu_custom_call.1} parent=27 // pred_region
          %p647 = scmp.lt.s32.totalorder %s47, 1
          %s648 = scalar_select %p647, %s47, 1
          %s649 = scalar_lea.vmem %s8, %s648
        $region64: #{tpu_custom_call.1} parent=27 // pred_fallthru
          _
        // Predicated region
        $region65: #{tpu_custom_call.1} parent=27 // pred_check
          %p650 = pneg %p305
        $region66: #{tpu_custom_call.1} parent=27 // pred_check_branch
          %652 = sbr.rel (%p650) target = $region68
        $region67: #{tpu_custom_call.1} parent=27 // pred_region
          %p653 = scmp.lt.s32.totalorder %s47, 1
          %s654 = scalar_select %p653, %s47, 1
          %s655 = scalar_lea.vmem %s9, %s654
        $region68: #{tpu_custom_call.1} parent=27 // pred_fallthru
          _
        // Predicated region
        $region69: #{tpu_custom_call.1} parent=27 // pred_check
          %p656 = pneg %p331
        $region70: #{tpu_custom_call.1} parent=27 // pred_check_branch
          %658 = sbr.rel (%p656) target = $region72
        $region71: #{tpu_custom_call.1} parent=27 // pred_region
          %s659 = sand.u32 %s39, 1
          %s660 = scalar_lea.sflag [#allocation10], %s659
          %s661 = sand.u32 %s321, 1
          %s662 = smul.addr %s661, 128
          %s663 = scalar_lea.vmem [#allocation11], %s662
          %s665 = ssub.s32 2048, 2048
          %666 = vsyncadd %s660, %s665
          %s667 = smul.addr %s47, 32
          %s668 = smul.addr %s667, 64
          %s669 = scalar_lea.hbm %s10, %s668
          %s670 = sshll.u32 %s663, 4
          %s671 = int_to_ptr.vmem [resolvable:$true] %s670
          %676 = dma.hbm_to_vmem [thread:$0]  %s669, 2048, %s671, %s660, 128, 128, 8
        $region72: #{tpu_custom_call.1} parent=27 // pred_fallthru
          _
        // Predicated region
        $region73: #{tpu_custom_call.1} parent=27 // pred_check
          %p677 = pneg %p357
        $region74: #{tpu_custom_call.1} parent=27 // pred_check_branch
          %679 = sbr.rel (%p677) target = $region76
        $region75: #{tpu_custom_call.1} parent=27 // pred_region
          %p680 = scmp.lt.s32.totalorder %s47, 1
          %s681 = scalar_select %p680, %s47, 1
          %s682 = smul.addr %s681, 2
          %s683 = scalar_lea.vmem %s11, %s682
        $region76: #{tpu_custom_call.1} parent=27 // pred_fallthru
          _
        // Predicated region
        $region77: #{tpu_custom_call.1} parent=27 // pred_check
          %p684 = pneg %p383
        $region78: #{tpu_custom_call.1} parent=27 // pred_check_branch
          %686 = sbr.rel (%p684) target = $region80
        $region79: #{tpu_custom_call.1} parent=27 // pred_region
          %s687 = sand.u32 %s373, 1
          %s688 = scalar_lea.sflag [#allocation13], %s687
          %s689 = sand.u32 %s373, 1
          %s690 = smul.addr %s689, 128
          %s691 = scalar_lea.vmem [#allocation12], %s690
          %s693 = ssub.s32 2048, 2048
          %694 = vsyncadd %s688, %s693
          %s695 = smul.addr %s47, 32
          %s696 = smul.addr %s695, 64
          %s697 = scalar_lea.hbm %s12, %s696
          %s698 = sshll.u32 %s691, 4
          %s699 = int_to_ptr.vmem [resolvable:$true] %s698
          %704 = dma.hbm_to_vmem [thread:$0]  %s697, 2048, %s699, %s688, 64, 64, 4
        $region80: #{tpu_custom_call.1} parent=27 // pred_fallthru
          _
        // Predicated region
        $region81: #{tpu_custom_call.1} parent=27 // pred_check
          %p705 = pneg %p409
        $region82: #{tpu_custom_call.1} parent=27 // pred_check_branch
          %707 = sbr.rel (%p705) target = $region84
        $region83: #{tpu_custom_call.1} parent=27 // pred_region
          %p708 = scmp.lt.s32.totalorder %s47, 1
          %s709 = scalar_select %p708, %s47, 1
          %s710 = scalar_lea.vmem %s13, %s709
        $region84: #{tpu_custom_call.1} parent=27 // pred_fallthru
          _
      $region28: #{tpu_custom_call.1} parent=5 // pred_fallthru
        _
      %p711 = scmp.le.s32.totalorder 1, %s39
      %p712 = scmp.lt.s32.totalorder %s39, 5
      %p713 = pnand %p711, %p712
      %p714 = pneg %p713
      // Predicated region
      $region85: #{tpu_custom_call.1} parent=5 // pred_check
        _
      $region86: #{tpu_custom_call.1} parent=5 // pred_check_branch
        %716 = sbr.rel (%p713) target = $region88
      $region87: #{tpu_custom_call.1} parent=5 // pred_region
        %s717 = ssub.s32 %s39, 1
        %s718 = sand.u32 %s90, 1
        %s719 = scalar_lea.sflag [#allocation3], %s718
        %s720 = sand.u32 %s90, 1
        %s721 = scalar_lea.vmem [#allocation2], %s720
        // Predicated region
        $region89: #{tpu_custom_call.1} parent=87 // pred_check
          %p722 = pneg %p103
        $region90: #{tpu_custom_call.1} parent=87 // pred_check_branch
          %724 = sbr.rel (%p722) target = $region92
        $region91: #{tpu_custom_call.1} parent=87 // pred_region
          %725 = dma.done %s719, 16
        $region92: #{tpu_custom_call.1} parent=87 // pred_fallthru
          _
        %s726 = sand.u32 %s44, 1
        %s727 = scalar_lea.sflag [#allocation7], %s726
        %s728 = sand.u32 %s116, 1
        %s729 = scalar_lea.vmem [#allocation6], %s728
        // Predicated region
        $region93: #{tpu_custom_call.1} parent=87 // pred_check
          %p730 = pneg %p129
        $region94: #{tpu_custom_call.1} parent=87 // pred_check_branch
          %732 = sbr.rel (%p730) target = $region96
        $region95: #{tpu_custom_call.1} parent=87 // pred_region
          %733 = dma.done %s727, 16
        $region96: #{tpu_custom_call.1} parent=87 // pred_fallthru
          _
        %s734 = sand.u32 %s44, 1
        %s735 = scalar_lea.sflag [#allocation7], %s734
        %s736 = sand.u32 %s142, 1
        %s737 = smul.addr %s736, 192
        %s738 = scalar_lea.vmem [#allocation8], %s737
        // Predicated region
        $region97: #{tpu_custom_call.1} parent=87 // pred_check
          %p739 = pneg %p155
        $region98: #{tpu_custom_call.1} parent=87 // pred_check_branch
          %741 = sbr.rel (%p739) target = $region100
        $region99: #{tpu_custom_call.1} parent=87 // pred_region
          %742 = dma.done %s735, 3072
        $region100: #{tpu_custom_call.1} parent=87 // pred_fallthru
          _
        %s743 = sand.u32 %s44, 1
        %s744 = scalar_lea.sflag [#allocation10], %s743
        %s745 = sand.u32 %s246, 1
        %s746 = scalar_lea.vmem [#allocation9], %s745
        // Predicated region
        $region101: #{tpu_custom_call.1} parent=87 // pred_check
          %p747 = pneg %p259
        $region102: #{tpu_custom_call.1} parent=87 // pred_check_branch
          %749 = sbr.rel (%p747) target = $region104
        $region103: #{tpu_custom_call.1} parent=87 // pred_region
          %750 = dma.done %s744, 16
        $region104: #{tpu_custom_call.1} parent=87 // pred_fallthru
          _
        %s751 = sand.u32 %s44, 1
        %s752 = scalar_lea.sflag [#allocation10], %s751
        %s753 = sand.u32 %s324, 1
        %s754 = smul.addr %s753, 128
        %s755 = scalar_lea.vmem [#allocation11], %s754
        // Predicated region
        $region105: #{tpu_custom_call.1} parent=87 // pred_check
          %p756 = pneg %p337
        $region106: #{tpu_custom_call.1} parent=87 // pred_check_branch
          %758 = sbr.rel (%p756) target = $region108
        $region107: #{tpu_custom_call.1} parent=87 // pred_region
          %759 = dma.done %s752, 2048
        $region108: #{tpu_custom_call.1} parent=87 // pred_fallthru
          _
        %s760 = sand.u32 %s376, 1
        %s761 = scalar_lea.sflag [#allocation13], %s760
        %s762 = sand.u32 %s376, 1
        %s763 = smul.addr %s762, 128
        %s764 = scalar_lea.vmem [#allocation12], %s763
        // Predicated region
        $region109: #{tpu_custom_call.1} parent=87 // pred_check
          %p765 = pneg %p389
        $region110: #{tpu_custom_call.1} parent=87 // pred_check_branch
          %767 = sbr.rel (%p765) target = $region112
        $region111: #{tpu_custom_call.1} parent=87 // pred_region
          %768 = dma.done %s761, 2048
        $region112: #{tpu_custom_call.1} parent=87 // pred_fallthru
          _
        // Predicated region
        $region113: #{tpu_custom_call.1} parent=87 // pred_check
          %p769 = pneg %p478
        $region114: #{tpu_custom_call.1} parent=87 // pred_check_branch
          %771 = sbr.rel (%p769) target = $region116
        $region115: #{tpu_custom_call.1} parent=87 // pred_region
          %772 = dma.done [#allocation5], 16
        $region116: #{tpu_custom_call.1} parent=87 // pred_fallthru
          _
        %773 = sfence
        %s774 = smul.u32 4, %s48
        %p775 = scmp.lt.s32.totalorder %s774, 7
        %s776 = scalar_select %p775, %s774, 7
        %s777 = smul.addr %s776, 8
        %s778 = scalar_lea.vmem %s0, %s777
        %p779 = pneg %p77
        %p780 = pneg %p74
        %s781 = sand.u32 %s90, 1
        %s782 = scalar_lea.sflag [#allocation3], %s781
        %s783 = sand.u32 %s90, 1
        %s784 = scalar_lea.vmem [#allocation2], %s783
        %p785 = pneg %p103
        %p786 = pneg %p100
        %s787 = sand.u32 %s44, 1
        %s788 = scalar_lea.sflag [#allocation7], %s787
        %s789 = sand.u32 %s116, 1
        %s790 = scalar_lea.vmem [#allocation6], %s789
        %p791 = pneg %p129
        %p792 = pneg %p126
        %s793 = sand.u32 %s44, 1
        %s794 = scalar_lea.sflag [#allocation7], %s793
        %s795 = sand.u32 %s142, 1
        %s796 = smul.addr %s795, 192
        %s797 = scalar_lea.vmem [#allocation8], %s796
        %p798 = pneg %p155
        %p799 = pneg %p152
        %p800 = scmp.lt.s32.totalorder %s49, 1
        %s801 = scalar_select %p800, %s49, 1
        %s802 = smul.addr %s801, 3
        %s803 = scalar_lea.vmem %s4, %s802
        %p804 = pneg %p181
        %p805 = pneg %p178
        %p806 = scmp.lt.s32.totalorder %s49, 1
        %s807 = scalar_select %p806, %s49, 1
        %s808 = smul.addr %s807, 16
        %s809 = smul.addr %s808, 4
        %s810 = scalar_lea.vmem %s5, %s809
        %p811 = pneg %p207
        %p812 = pneg %p204
        %p813 = scmp.lt.s32.totalorder %s49, 1
        %s814 = scalar_select %p813, %s49, 1
        %s815 = smul.addr %s814, 16
        %s816 = smul.addr %s815, 4
        %s817 = scalar_lea.vmem %s6, %s816
        %p818 = pneg %p233
        %p819 = pneg %p230
        %s820 = sand.u32 %s44, 1
        %s821 = scalar_lea.sflag [#allocation10], %s820
        %s822 = sand.u32 %s246, 1
        %s823 = scalar_lea.vmem [#allocation9], %s822
        %p824 = pneg %p259
        %p825 = pneg %p256
        %p826 = scmp.lt.s32.totalorder %s49, 1
        %s827 = scalar_select %p826, %s49, 1
        %s828 = scalar_lea.vmem %s8, %s827
        %p829 = pneg %p285
        %p830 = pneg %p282
        %p831 = scmp.lt.s32.totalorder %s49, 1
        %s832 = scalar_select %p831, %s49, 1
        %s833 = scalar_lea.vmem %s9, %s832
        %p834 = pneg %p311
        %p835 = pneg %p308
        %s836 = sand.u32 %s44, 1
        %s837 = scalar_lea.sflag [#allocation10], %s836
        %s838 = sand.u32 %s324, 1
        %s839 = smul.addr %s838, 128
        %s840 = scalar_lea.vmem [#allocation11], %s839
        %p841 = pneg %p337
        %p842 = pneg %p334
        %p843 = scmp.lt.s32.totalorder %s49, 1
        %s844 = scalar_select %p843, %s49, 1
        %s845 = smul.addr %s844, 2
        %s846 = scalar_lea.vmem %s11, %s845
        %p847 = pneg %p363
        %p848 = pneg %p360
        %s849 = sand.u32 %s376, 1
        %s850 = scalar_lea.sflag [#allocation13], %s849
        %s851 = sand.u32 %s376, 1
        %s852 = smul.addr %s851, 128
        %s853 = scalar_lea.vmem [#allocation12], %s852
        %p854 = pneg %p389
        %p855 = pneg %p386
        %p856 = scmp.lt.s32.totalorder %s49, 1
        %s857 = scalar_select %p856, %s49, 1
        %s858 = scalar_lea.vmem %s13, %s857
        %p859 = pneg %p415
        %p860 = pneg %p412
        %p861 = pneg %p436
        %p862 = pneg %p433
        %p863 = pneg %p457
        %p864 = pneg %p454
        %p865 = pneg %p478
        %p866 = pneg %p475
        %p867 = pneg %p504
        %p868 = pneg %p501
        %s869 = sand.u32 %s491, 1
        %s870 = scalar_lea.sflag [#allocation4], %s869
        %s871 = sand.u32 %s491, 1
        %s872 = smul.addr %s871, 32
        %s873 = scalar_lea.vmem [#allocation15], %s872
        %s874 = smul.u32 4, %s48
        %p875 = scmp.lt.s32.totalorder %s874, 7
        %s876 = scalar_select %p875, %s874, 7
        %s877 = smul.addr %s876, 8
        %s878 = scalar_lea.vmem %s0, %s877
        %s879 = smul.u32 4, %s48
        %p880 = scmp.lt.s32.totalorder %s49, 1
        %s881 = scalar_select %p880, %s49, 1
        %s882 = smul.addr %s881, 3
        %s883 = scalar_lea.vmem %s4, %s882
        %p884 = scmp.lt.s32.totalorder %s49, 1
        %s885 = scalar_select %p884, %s49, 1
        %s886 = smul.addr %s885, 16
        %s887 = smul.addr %s886, 4
        %s888 = scalar_lea.vmem %s5, %s887
        %p889 = scmp.lt.s32.totalorder %s49, 1
        %s890 = scalar_select %p889, %s49, 1
        %s891 = smul.addr %s890, 16
        %s892 = smul.addr %s891, 4
        %s893 = scalar_lea.vmem %s6, %s892
        %p894 = scmp.lt.s32.totalorder %s49, 1
        %s895 = scalar_select %p894, %s49, 1
        %s896 = scalar_lea.vmem %s8, %s895
        %p897 = scmp.lt.s32.totalorder %s49, 1
        %s898 = scalar_select %p897, %s49, 1
        %s899 = scalar_lea.vmem %s9, %s898
        %p900 = scmp.lt.s32.totalorder %s49, 1
        %s901 = scalar_select %p900, %s49, 1
        %s902 = smul.addr %s901, 2
        %s903 = scalar_lea.vmem %s11, %s902
        %p904 = scmp.lt.s32.totalorder %s49, 1
        %s905 = scalar_select %p904, %s49, 1
        %s906 = scalar_lea.vmem %s13, %s905
        %s907 = smul.u32 4, %s48
        %p909 = scmp.eq.s32.totalorder %s49, 0
        // Predicated region
        $region117: #{tpu_custom_call.1} parent=87 // pred_check
          %p910 = pneg %p909
        $region118: #{tpu_custom_call.1} parent=87 // pred_check_branch
          %912 = sbr.rel (%p910) target = $region120
        $region119: #{tpu_custom_call.1} parent=87 // pred_region
          %v913 = vld [vmem:[%s878] sm:$0xff]
          %v914 = vld [vmem:[%s878 + $0x8] sm:$0xff]
          %v915 = vld [vmem:[%s878 + $0x10] sm:$0xff]
          %v916 = vld [vmem:[%s878 + $0x18] sm:$0xff]
          %917 = vst [vmem:[%s873] sm:$0xff] %v913
          %918 = vst [vmem:[%s873 + $0x8] sm:$0xff] %v914
          %919 = vst [vmem:[%s873 + $0x10] sm:$0xff] %v915
          %920 = vst [vmem:[%s873 + $0x18] sm:$0xff] %v916
        $region120: #{tpu_custom_call.1} parent=87 // pred_fallthru
          _
        %v921 = vld [vmem:[%s873] sm:$0xff]
        %v922 = vld [vmem:[%s873 + $0x8] sm:$0xff]
        %v923 = vld [vmem:[%s873 + $0x10] sm:$0xff]
        %v924 = vld [vmem:[%s873 + $0x18] sm:$0xff]
        %v925 = vld [vmem:[%s721] sm:$0x1]
        %v926 = vld [vmem:[%s729] sm:$0x1]
        %927 = vadd.xlane.f32.xlu0 %v921
        %v928 = vpop.xlane.xlu0 %927
        %929 = vadd.xlane.f32.xlu0 %v922
        %v930 = vpop.xlane.xlu0 %929
        %931 = vadd.xlane.f32.xlu0 %v923
        %v932 = vpop.xlane.xlu0 %931
        %933 = vadd.xlane.f32.xlu0 %v924
        %v934 = vpop.xlane.xlu0 %933
        %v935 = vrcp.pop 128.0
        %v936 = vmul.f32 %v928, %v935
        %v937 = vmul.f32 %v930, %v935
        %v938 = vmul.f32 %v932, %v935
        %v939 = vmul.f32 %v934, %v935
        %v940 = vsub.f32 %v921, %v936
        %v941 = vsub.f32 %v922, %v937
        %v942 = vsub.f32 %v923, %v938
        %v943 = vsub.f32 %v924, %v939
        %v944 = vmul.f32 %v940, %v940
        %v945 = vmul.f32 %v941, %v941
        %v946 = vmul.f32 %v942, %v942
        %v947 = vmul.f32 %v943, %v943
        %948 = vadd.xlane.f32.xlu0 %v944
        %v949 = vpop.xlane.xlu0 %948
        %950 = vadd.xlane.f32.xlu0 %v945
        %v951 = vpop.xlane.xlu0 %950
        %952 = vadd.xlane.f32.xlu0 %v946
        %v953 = vpop.xlane.xlu0 %952
        %954 = vadd.xlane.f32.xlu0 %v947
        %v955 = vpop.xlane.xlu0 %954
        %v956 = vmul.f32 %v949, %v935
        %v957 = vmul.f32 %v951, %v935
        %v958 = vmul.f32 %v953, %v935
        %v959 = vmul.f32 %v955, %v935
        %v960 = vadd.f32 %v956, 1e-05
        %v961 = vadd.f32 %v957, 1e-05
        %v962 = vadd.f32 %v958, 1e-05
        %v963 = vadd.f32 %v959, 1e-05
        %v964 = vrsqrt.pop %v960
        %v965 = vrsqrt.pop %v961
        %v966 = vrsqrt.pop %v962
        %v967 = vrsqrt.pop %v963
        %v968 = vmul.f32 %v940, %v964
        %v969 = vmul.f32 %v941, %v965
        %v970 = vmul.f32 %v942, %v966
        %v971 = vmul.f32 %v943, %v967
        %v973 = vlaneseq
        %v974 = vshrl.u32 %v973, 7
        %v975 = vsub.s32 0, %v974
        %v976 = vrot.slane %v925, %v975
        %v978 = vmul.f32 %v968, %v976
        %v979 = vmul.f32 %v969, %v976
        %v980 = vmul.f32 %v970, %v976
        %v981 = vmul.f32 %v971, %v976
        %v983 = vlaneseq
        %v984 = vshrl.u32 %v983, 7
        %v985 = vsub.s32 0, %v984
        %v986 = vrot.slane %v926, %v985
        %v988 = vadd.f32 %v978, %v986
        %v989 = vadd.f32 %v979, %v986
        %v990 = vadd.f32 %v980, %v986
        %v991 = vadd.f32 %v981, %v986
        %v992 = vpack.c.bf16 %v989, %v988
        %v993 = vpack.c.bf16 %v991, %v990
        %v994 = vld [vmem:[%s738] sm:$0xff]
        %v995 = vld [vmem:[%s738 + $0x8] sm:$0xf]
        %v996 = vld [vmem:[%s738 + $0xc] sm:$0xff]
        %v997 = vld [vmem:[%s738 + $0x14] sm:$0xf]
        %v998 = vld [vmem:[%s738 + $0x18] sm:$0xff]
        %v999 = vld [vmem:[%s738 + $0x20] sm:$0xf]
        %v1000 = vld [vmem:[%s738 + $0x24] sm:$0xff]
        %v1001 = vld [vmem:[%s738 + $0x2c] sm:$0xf]
        %v1002 = vld [vmem:[%s738 + $0x30] sm:$0xff]
        %v1003 = vld [vmem:[%s738 + $0x38] sm:$0xf]
        %v1004 = vld [vmem:[%s738 + $0x3c] sm:$0xff]
        %v1005 = vld [vmem:[%s738 + $0x44] sm:$0xf]
        %v1006 = vld [vmem:[%s738 + $0x48] sm:$0xff]
        %v1007 = vld [vmem:[%s738 + $0x50] sm:$0xf]
        %v1008 = vld [vmem:[%s738 + $0x54] sm:$0xff]
        %v1009 = vld [vmem:[%s738 + $0x5c] sm:$0xf]
        %v1010 = vld [vmem:[%s738 + $0x60] sm:$0xff]
        %v1011 = vld [vmem:[%s738 + $0x68] sm:$0xf]
        %v1012 = vld [vmem:[%s738 + $0x6c] sm:$0xff]
        %v1013 = vld [vmem:[%s738 + $0x74] sm:$0xf]
        %v1014 = vld [vmem:[%s738 + $0x78] sm:$0xff]
        %v1015 = vld [vmem:[%s738 + $0x80] sm:$0xf]
        %v1016 = vld [vmem:[%s738 + $0x84] sm:$0xff]
        %v1017 = vld [vmem:[%s738 + $0x8c] sm:$0xf]
        %v1018 = vld [vmem:[%s738 + $0x90] sm:$0xff]
        %v1019 = vld [vmem:[%s738 + $0x98] sm:$0xf]
        %v1020 = vld [vmem:[%s738 + $0x9c] sm:$0xff]
        %v1021 = vld [vmem:[%s738 + $0xa4] sm:$0xf]
        %v1022 = vld [vmem:[%s738 + $0xa8] sm:$0xff]
        %v1023 = vld [vmem:[%s738 + $0xb0] sm:$0xf]
        %v1024 = vld [vmem:[%s738 + $0xb4] sm:$0xff]
        %v1025 = vld [vmem:[%s738 + $0xbc] sm:$0xf]
        %v1026 = vld [vmem:[%s883] sm:$0x7]
        %v1028 = vlaneseq
        %v1029 = vshrl.u32 %v1028, 7
        %v1030 = vsub.s32 0, %v1029
        %v1031 = vrot.slane %v1026, %v1030
        %v1032 = vlaneseq
        %v1033 = vshrl.u32 %v1032, 7
        %v1034 = vsub.s32 1, %v1033
        %v1035 = vrot.slane %v1026, %v1034
        %v1036 = vlaneseq
        %v1037 = vshrl.u32 %v1036, 7
        %v1038 = vsub.s32 2, %v1037
        %v1039 = vrot.slane %v1026, %v1038
        %v1075 = vunpack.c.l.b16 %v994
        %v1076 = vunpack.c.h.b16 %v994
        %v1077 = vunpack.c.l.b16 %v995
        %v1078 = vunpack.c.l.b16 %v996
        %v1079 = vunpack.c.h.b16 %v996
        %v1080 = vunpack.c.l.b16 %v997
        %v1081 = vunpack.c.l.b16 %v998
        %v1082 = vunpack.c.h.b16 %v998
        %v1083 = vunpack.c.l.b16 %v999
        %v1084 = vunpack.c.l.b16 %v1000
        %v1085 = vunpack.c.h.b16 %v1000
        %v1086 = vunpack.c.l.b16 %v1001
        %v1087 = vunpack.c.l.b16 %v1002
        %v1088 = vunpack.c.h.b16 %v1002
        %v1089 = vunpack.c.l.b16 %v1003
        %v1090 = vunpack.c.l.b16 %v1004
        %v1091 = vunpack.c.h.b16 %v1004
        %v1092 = vunpack.c.l.b16 %v1005
        %v1093 = vunpack.c.l.b16 %v1006
        %v1094 = vunpack.c.h.b16 %v1006
        %v1095 = vunpack.c.l.b16 %v1007
        %v1096 = vunpack.c.l.b16 %v1008
        %v1097 = vunpack.c.h.b16 %v1008
        %v1098 = vunpack.c.l.b16 %v1009
        %v1099 = vunpack.c.l.b16 %v1010
        %v1100 = vunpack.c.h.b16 %v1010
        %v1101 = vunpack.c.l.b16 %v1011
        %v1102 = vunpack.c.l.b16 %v1012
        %v1103 = vunpack.c.h.b16 %v1012
        %v1104 = vunpack.c.l.b16 %v1013
        %v1105 = vunpack.c.l.b16 %v1014
        %v1106 = vunpack.c.h.b16 %v1014
        %v1107 = vunpack.c.l.b16 %v1015
        %v1108 = vunpack.c.l.b16 %v1016
        %v1109 = vunpack.c.h.b16 %v1016
        %v1110 = vunpack.c.l.b16 %v1017
        %v1111 = vunpack.c.l.b16 %v1018
        %v1112 = vunpack.c.h.b16 %v1018
        %v1113 = vunpack.c.l.b16 %v1019
        %v1114 = vunpack.c.l.b16 %v1020
        %v1115 = vunpack.c.h.b16 %v1020
        %v1116 = vunpack.c.l.b16 %v1021
        %v1117 = vunpack.c.l.b16 %v1022
        %v1118 = vunpack.c.h.b16 %v1022
        %v1119 = vunpack.c.l.b16 %v1023
        %v1120 = vunpack.c.l.b16 %v1024
        %v1121 = vunpack.c.h.b16 %v1024
        %v1122 = vunpack.c.l.b16 %v1025
        %v1123 = vpack.c.b16 %v1078, %v1075
        %v1124 = vpack.c.b16 %v1079, %v1076
        %v1125 = vpack.c.b16 %v1080, %v1077
        %v1126 = vpack.c.b16 %v1084, %v1081
        %v1127 = vpack.c.b16 %v1085, %v1082
        %v1128 = vpack.c.b16 %v1086, %v1083
        %v1129 = vpack.c.b16 %v1090, %v1087
        %v1130 = vpack.c.b16 %v1091, %v1088
        %v1131 = vpack.c.b16 %v1092, %v1089
        %v1132 = vpack.c.b16 %v1096, %v1093
        %v1133 = vpack.c.b16 %v1097, %v1094
        %v1134 = vpack.c.b16 %v1098, %v1095
        %v1135 = vpack.c.b16 %v1102, %v1099
        %v1136 = vpack.c.b16 %v1103, %v1100
        %v1137 = vpack.c.b16 %v1104, %v1101
        %v1138 = vpack.c.b16 %v1108, %v1105
        %v1139 = vpack.c.b16 %v1109, %v1106
        %v1140 = vpack.c.b16 %v1110, %v1107
        %v1141 = vpack.c.b16 %v1114, %v1111
        %v1142 = vpack.c.b16 %v1115, %v1112
        %v1143 = vpack.c.b16 %v1116, %v1113
        %v1144 = vpack.c.b16 %v1120, %v1117
        %v1145 = vpack.c.b16 %v1121, %v1118
        %v1146 = vpack.c.b16 %v1122, %v1119
        %1171 = vmatprep.subr.bf16.mxu0 %v1145
        %1172 = vmatpush1.bf16.msra.mxu0 %v1144
        %1173 = vmatprep.subr.bf16.mxu0 %v1142
        %1174 = vmatpush1.bf16.msra.mxu0 %v1141
        %1175 = vmatprep.subr.bf16.mxu0 %v1139
        %1176 = vmatpush1.bf16.msra.mxu0 %v1138
        %1177 = vmatprep.subr.bf16.mxu0 %v1136
        %1178 = vmatpush1.bf16.msra.mxu0 %v1135
        %1179 = vmatprep.subr.bf16.mxu0 %v1133
        %1180 = vmatpush1.bf16.msra.mxu0 %v1132
        %1181 = vmatprep.subr.bf16.mxu0 %v1130
        %1182 = vmatpush1.bf16.msra.mxu0 %v1129
        %1183 = vmatprep.subr.bf16.mxu0 %v1127
        %1184 = vmatpush1.bf16.msra.mxu0 %v1126
        %1185 = vmatprep.subr.bf16.mxu0 %v1124
        %1186 = vmatpush1.bf16.msra.mxu0 %v1123
        %1187 = vmatprep.subr.bf16.mxu0 0
        %1188 = vmatpush2.bf16.msra.mxu0 0
        %1189 = vmatprep.subr.bf16.mxu0 0
        %1190 = vmatpush2.bf16.msra.mxu0 0
        %1191 = vmatprep.subr.bf16.mxu0 0
        %1192 = vmatpush2.bf16.msra.mxu0 0
        %1193 = vmatprep.subr.bf16.mxu0 0
        %1194 = vmatpush2.bf16.msra.mxu0 0
        %1195 = vmatprep.subr.bf16.mxu0 0
        %1196 = vmatpush2.bf16.msra.mxu0 0
        %1197 = vmatprep.subr.bf16.mxu0 0
        %1198 = vmatpush2.bf16.msra.mxu0 0
        %1199 = vmatprep.subr.bf16.mxu0 0
        %1200 = vmatpush2.bf16.msra.mxu0 0
        %1201 = vmatprep.subr.bf16.mxu0 0
        %1202 = vmatpush2.bf16.msra.mxu0 0
        %1203 = vmatprep.mubr.bf16.mxu0 0
        %1204 = vmatmul.mubr.bf16.gmra.mxu0 %v992
        %v1205 = vpop.f32.mrf.mxu0
        %v1206 = vadd.f32 %v1031, %v1205
        %v1207 = vpop.f32.mrf.mxu0
        %v1208 = vadd.f32 %v1035, %v1207
        %v1209 = vpop.f32.mrf.mxu0
        %v1210 = vadd.f32 %v1031, %v1209
        %v1211 = vpop.f32.mrf.mxu0
        %v1212 = vadd.f32 %v1035, %v1211
        %1213 = vmatprep.mubr.bf16.mxu0 0
        %1214 = vmatmul.mubr.bf16.gmra.mxu0 %v993
        %v1215 = vpop.f32.mrf.mxu0
        %v1216 = vadd.f32 %v1031, %v1215
        %v1217 = vpop.f32.mrf.mxu0
        %v1218 = vadd.f32 %v1035, %v1217
        %v1219 = vpop.f32.mrf.mxu0
        %v1220 = vadd.f32 %v1031, %v1219
        %v1221 = vpop.f32.mrf.mxu0
        %v1222 = vadd.f32 %v1035, %v1221
        %1223 = vdwg.mxu0
        %1224 = vmatprep.subr.bf16.mxu0 0
        %1225 = vmatpush1.bf16.msra.mxu0 %v1146
        %1226 = vmatprep.subr.bf16.mxu0 0
        %1227 = vmatpush1.bf16.msra.mxu0 %v1143
        %1228 = vmatprep.subr.bf16.mxu0 0
        %1229 = vmatpush1.bf16.msra.mxu0 %v1140
        %1230 = vmatprep.subr.bf16.mxu0 0
        %1231 = vmatpush1.bf16.msra.mxu0 %v1137
        %1232 = vmatprep.subr.bf16.mxu0 0
        %1233 = vmatpush1.bf16.msra.mxu0 %v1134
        %1234 = vmatprep.subr.bf16.mxu0 0
        %1235 = vmatpush1.bf16.msra.mxu0 %v1131
        %1236 = vmatprep.subr.bf16.mxu0 0
        %1237 = vmatpush1.bf16.msra.mxu0 %v1128
        %1238 = vmatprep.subr.bf16.mxu0 0
        %1239 = vmatpush1.bf16.msra.mxu0 %v1125
        %1240 = vmatprep.subr.bf16.mxu0 0
        %1241 = vmatpush2.bf16.msra.mxu0 0
        %1242 = vmatprep.subr.bf16.mxu0 0
        %1243 = vmatpush2.bf16.msra.mxu0 0
        %1244 = vmatprep.subr.bf16.mxu0 0
        %1245 = vmatpush2.bf16.msra.mxu0 0
        %1246 = vmatprep.subr.bf16.mxu0 0
        %1247 = vmatpush2.bf16.msra.mxu0 0
        %1248 = vmatprep.subr.bf16.mxu0 0
        %1249 = vmatpush2.bf16.msra.mxu0 0
        %1250 = vmatprep.subr.bf16.mxu0 0
        %1251 = vmatpush2.bf16.msra.mxu0 0
        %1252 = vmatprep.subr.bf16.mxu0 0
        %1253 = vmatpush2.bf16.msra.mxu0 0
        %1254 = vmatprep.subr.bf16.mxu0 0
        %1255 = vmatpush2.bf16.msra.mxu0 0
        %1256 = vmatprep.mubr.bf16.mxu0 0
        %1257 = vmatmul.mubr.bf16.gmra.mxu0 %v992
        %v1258 = vpop.f32.mrf.mxu0
        %v1259 = vadd.f32 %v1039, %v1258
        %v1260 = vpop.f32.mrf.mxu0
        %v1261 = vpop.f32.mrf.mxu0
        %v1262 = vadd.f32 %v1039, %v1261
        %v1263 = vpop.f32.mrf.mxu0
        %1264 = vmatprep.mubr.bf16.mxu0 0
        %1265 = vmatmul.mubr.bf16.gmra.mxu0 %v993
        %v1266 = vpop.f32.mrf.mxu0
        %v1267 = vadd.f32 %v1039, %v1266
        %v1268 = vpop.f32.mrf.mxu0
        %v1269 = vpop.f32.mrf.mxu0
        %v1270 = vadd.f32 %v1039, %v1269
        %v1271 = vpop.f32.mrf.mxu0
        %1272 = vdwg.mxu0
        %v1273 = vpack.c.bf16 %v1210, %v1206
        %v1274 = vpack.c.bf16 %v1212, %v1208
        %v1275 = vpack.c.bf16 %v1262, %v1259
        %v1276 = vpack.c.bf16 %v1220, %v1216
        %v1277 = vpack.c.bf16 %v1222, %v1218
        %v1278 = vpack.c.bf16 %v1270, %v1267
        %1281 = vrot.lane.b32.xlu0 %v1273, 96
        %v1282 = vpop.permute.xlu0 %1281
        %1283 = vrot.lane.b32.xlu0 %v1276, 96
        %v1284 = vpop.permute.xlu0 %1283
        %1285 = vrot.lane.b32.xlu0 %v1273, 64
        %v1286 = vpop.permute.xlu0 %1285
        %1287 = vrot.lane.b32.xlu0 %v1276, 64
        %v1288 = vpop.permute.xlu0 %1287
        %1289 = vrot.lane.b32.xlu0 %v1273, 32
        %v1290 = vpop.permute.xlu0 %1289
        %1291 = vrot.lane.b32.xlu0 %v1276, 32
        %v1292 = vpop.permute.xlu0 %1291
        %1295 = vrot.lane.b32.xlu0 %v1274, 96
        %v1296 = vpop.permute.xlu0 %1295
        %1297 = vrot.lane.b32.xlu0 %v1277, 96
        %v1298 = vpop.permute.xlu0 %1297
        %1299 = vrot.lane.b32.xlu0 %v1274, 64
        %v1300 = vpop.permute.xlu0 %1299
        %1301 = vrot.lane.b32.xlu0 %v1277, 64
        %v1302 = vpop.permute.xlu0 %1301
        %1303 = vrot.lane.b32.xlu0 %v1274, 32
        %v1304 = vpop.permute.xlu0 %1303
        %1305 = vrot.lane.b32.xlu0 %v1277, 32
        %v1306 = vpop.permute.xlu0 %1305
        %1309 = vrot.lane.b32.xlu0 %v1275, 96
        %v1310 = vpop.permute.xlu0 %1309
        %1311 = vrot.lane.b32.xlu0 %v1278, 96
        %v1312 = vpop.permute.xlu0 %1311
        %1315 = vrot.lane.b32.xlu0 %v1275, 64
        %v1316 = vpop.permute.xlu0 %1315
        %1317 = vrot.lane.b32.xlu0 %v1278, 64
        %v1318 = vpop.permute.xlu0 %1317
        %1321 = vrot.lane.b32.xlu0 %v1275, 32
        %v1322 = vpop.permute.xlu0 %1321
        %1323 = vrot.lane.b32.xlu0 %v1278, 32
        %v1324 = vpop.permute.xlu0 %1323
        %vm1327 = vcmask 261120
        %v1329 = vsel %vm1327, %v1273, 0
        %v1332 = vsel %vm1327, %v1276, 0
        %v1335 = vsel %vm1327, %v1274, 0
        %v1338 = vsel %vm1327, %v1277, 0
        %1340 = vmatprep.subr.bf16.mxu0 0
        %1341 = vmatpush1.bf16.xpose.msra.mxu0 0
        %1342 = vmatprep.subr.bf16.mxu0 0
        %1343 = vmatpush1.bf16.xpose.msra.mxu0 0
        %1344 = vmatprep.subr.bf16.mxu0 0
        %1345 = vmatpush1.bf16.xpose.msra.mxu0 0
        %1346 = vmatprep.subr.bf16.mxu0 0
        %1347 = vmatpush1.bf16.xpose.msra.mxu0 0
        %1348 = vmatprep.subr.bf16.mxu0 0
        %1349 = vmatpush1.bf16.xpose.msra.mxu0 0
        %1350 = vmatprep.subr.bf16.mxu0 0
        %1351 = vmatpush1.bf16.xpose.msra.mxu0 0
        %1352 = vmatprep.subr.bf16.mxu0 0
        %1353 = vmatpush1.bf16.xpose.msra.mxu0 %v1338
        %1354 = vmatprep.subr.bf16.mxu0 0
        %1355 = vmatpush1.bf16.xpose.msra.mxu0 %v1335
        %1356 = vmatprep.subr.bf16.mxu0 0
        %1357 = vmatpush2.bf16.xpose.msra.mxu0 0
        %1358 = vmatprep.subr.bf16.mxu0 0
        %1359 = vmatpush2.bf16.xpose.msra.mxu0 0
        %1360 = vmatprep.subr.bf16.mxu0 0
        %1361 = vmatpush2.bf16.xpose.msra.mxu0 0
        %1362 = vmatprep.subr.bf16.mxu0 0
        %1363 = vmatpush2.bf16.xpose.msra.mxu0 0
        %1364 = vmatprep.subr.bf16.mxu0 0
        %1365 = vmatpush2.bf16.xpose.msra.mxu0 0
        %1366 = vmatprep.subr.bf16.mxu0 0
        %1367 = vmatpush2.bf16.xpose.msra.mxu0 0
        %1368 = vmatprep.subr.bf16.mxu0 0
        %1369 = vmatpush2.bf16.xpose.msra.mxu0 0
        %1370 = vmatprep.subr.bf16.mxu0 0
        %1371 = vmatpush2.bf16.xpose.msra.mxu0 0
        %1372 = vmatprep.mubr.bf16.mxu0 0
        %1373 = vmatmul.mubr.bf16.gmra.mxu0 %v1329
        %v1374 = vpop.f32.mrf.mxu0
        %v1375 = vadd.f32 0.0, %v1374
        %v1376 = vpop.f32.mrf.mxu0
        %v1377 = vpop.f32.mrf.mxu0
        %v1378 = vadd.f32 0.0, %v1377
        %v1379 = vpop.f32.mrf.mxu0
        %1380 = vmatprep.mubr.bf16.mxu0 0
        %1381 = vmatmul.mubr.bf16.gmra.mxu0 %v1332
        %v1382 = vpop.f32.mrf.mxu0
        %v1383 = vadd.f32 0.0, %v1382
        %v1384 = vpop.f32.mrf.mxu0
        %v1385 = vpop.f32.mrf.mxu0
        %v1386 = vadd.f32 0.0, %v1385
        %v1387 = vpop.f32.mrf.mxu0
        %1388 = vdwg.mxu0
        %v1390 = vsel %vm1327, %v1282, 0
        %v1393 = vsel %vm1327, %v1284, 0
        %v1396 = vsel %vm1327, %v1296, 0
        %v1399 = vsel %vm1327, %v1298, 0
        %1401 = vmatprep.subr.bf16.mxu0 0
        %1402 = vmatpush1.bf16.xpose.msra.mxu0 0
        %1403 = vmatprep.subr.bf16.mxu0 0
        %1404 = vmatpush1.bf16.xpose.msra.mxu0 0
        %1405 = vmatprep.subr.bf16.mxu0 0
        %1406 = vmatpush1.bf16.xpose.msra.mxu0 0
        %1407 = vmatprep.subr.bf16.mxu0 0
        %1408 = vmatpush1.bf16.xpose.msra.mxu0 0
        %1409 = vmatprep.subr.bf16.mxu0 0
        %1410 = vmatpush1.bf16.xpose.msra.mxu0 0
        %1411 = vmatprep.subr.bf16.mxu0 0
        %1412 = vmatpush1.bf16.xpose.msra.mxu0 0
        %1413 = vmatprep.subr.bf16.mxu0 0
        %1414 = vmatpush1.bf16.xpose.msra.mxu0 %v1399
        %1415 = vmatprep.subr.bf16.mxu0 0
        %1416 = vmatpush1.bf16.xpose.msra.mxu0 %v1396
        %1417 = vmatprep.subr.bf16.mxu0 0
        %1418 = vmatpush2.bf16.xpose.msra.mxu0 0
        %1419 = vmatprep.subr.bf16.mxu0 0
        %1420 = vmatpush2.bf16.xpose.msra.mxu0 0
        %1421 = vmatprep.subr.bf16.mxu0 0
        %1422 = vmatpush2.bf16.xpose.msra.mxu0 0
        %1423 = vmatprep.subr.bf16.mxu0 0
        %1424 = vmatpush2.bf16.xpose.msra.mxu0 0
        %1425 = vmatprep.subr.bf16.mxu0 0
        %1426 = vmatpush2.bf16.xpose.msra.mxu0 0
        %1427 = vmatprep.subr.bf16.mxu0 0
        %1428 = vmatpush2.bf16.xpose.msra.mxu0 0
        %1429 = vmatprep.subr.bf16.mxu0 0
        %1430 = vmatpush2.bf16.xpose.msra.mxu0 0
        %1431 = vmatprep.subr.bf16.mxu0 0
        %1432 = vmatpush2.bf16.xpose.msra.mxu0 0
        %1433 = vmatprep.mubr.bf16.mxu0 0
        %1434 = vmatmul.mubr.bf16.gmra.mxu0 %v1390
        %v1435 = vpop.f32.mrf.mxu0
        %v1436 = vadd.f32 0.0, %v1435
        %v1437 = vpop.f32.mrf.mxu0
        %v1438 = vpop.f32.mrf.mxu0
        %v1439 = vadd.f32 0.0, %v1438
        %v1440 = vpop.f32.mrf.mxu0
        %1441 = vmatprep.mubr.bf16.mxu0 0
        %1442 = vmatmul.mubr.bf16.gmra.mxu0 %v1393
        %v1443 = vpop.f32.mrf.mxu0
        %v1444 = vadd.f32 0.0, %v1443
        %v1445 = vpop.f32.mrf.mxu0
        %v1446 = vpop.f32.mrf.mxu0
        %v1447 = vadd.f32 0.0, %v1446
        %v1448 = vpop.f32.mrf.mxu0
        %1449 = vdwg.mxu0
        %v1451 = vsel %vm1327, %v1286, 0
        %v1454 = vsel %vm1327, %v1288, 0
        %v1457 = vsel %vm1327, %v1300, 0
        %v1460 = vsel %vm1327, %v1302, 0
        %1462 = vmatprep.subr.bf16.mxu0 0
        %1463 = vmatpush1.bf16.xpose.msra.mxu0 0
        %1464 = vmatprep.subr.bf16.mxu0 0
        %1465 = vmatpush1.bf16.xpose.msra.mxu0 0
        %1466 = vmatprep.subr.bf16.mxu0 0
        %1467 = vmatpush1.bf16.xpose.msra.mxu0 0
        %1468 = vmatprep.subr.bf16.mxu0 0
        %1469 = vmatpush1.bf16.xpose.msra.mxu0 0
        %1470 = vmatprep.subr.bf16.mxu0 0
        %1471 = vmatpush1.bf16.xpose.msra.mxu0 0
        %1472 = vmatprep.subr.bf16.mxu0 0
        %1473 = vmatpush1.bf16.xpose.msra.mxu0 0
        %1474 = vmatprep.subr.bf16.mxu0 0
        %1475 = vmatpush1.bf16.xpose.msra.mxu0 %v1460
        %1476 = vmatprep.subr.bf16.mxu0 0
        %1477 = vmatpush1.bf16.xpose.msra.mxu0 %v1457
        %1478 = vmatprep.subr.bf16.mxu0 0
        %1479 = vmatpush2.bf16.xpose.msra.mxu0 0
        %1480 = vmatprep.subr.bf16.mxu0 0
        %1481 = vmatpush2.bf16.xpose.msra.mxu0 0
        %1482 = vmatprep.subr.bf16.mxu0 0
        %1483 = vmatpush2.bf16.xpose.msra.mxu0 0
        %1484 = vmatprep.subr.bf16.mxu0 0
        %1485 = vmatpush2.bf16.xpose.msra.mxu0 0
        %1486 = vmatprep.subr.bf16.mxu0 0
        %1487 = vmatpush2.bf16.xpose.msra.mxu0 0
        %1488 = vmatprep.subr.bf16.mxu0 0
        %1489 = vmatpush2.bf16.xpose.msra.mxu0 0
        %1490 = vmatprep.subr.bf16.mxu0 0
        %1491 = vmatpush2.bf16.xpose.msra.mxu0 0
        %1492 = vmatprep.subr.bf16.mxu0 0
        %1493 = vmatpush2.bf16.xpose.msra.mxu0 0
        %1494 = vmatprep.mubr.bf16.mxu0 0
        %1495 = vmatmul.mubr.bf16.gmra.mxu0 %v1451
        %v1496 = vpop.f32.mrf.mxu0
        %v1497 = vadd.f32 0.0, %v1496
        %v1498 = vpop.f32.mrf.mxu0
        %v1499 = vpop.f32.mrf.mxu0
        %v1500 = vadd.f32 0.0, %v1499
        %v1501 = vpop.f32.mrf.mxu0
        %1502 = vmatprep.mubr.bf16.mxu0 0
        %1503 = vmatmul.mubr.bf16.gmra.mxu0 %v1454
        %v1504 = vpop.f32.mrf.mxu0
        %v1505 = vadd.f32 0.0, %v1504
        %v1506 = vpop.f32.mrf.mxu0
        %v1507 = vpop.f32.mrf.mxu0
        %v1508 = vadd.f32 0.0, %v1507
        %v1509 = vpop.f32.mrf.mxu0
        %1510 = vdwg.mxu0
        %v1512 = vsel %vm1327, %v1290, 0
        %v1515 = vsel %vm1327, %v1292, 0
        %v1518 = vsel %vm1327, %v1304, 0
        %v1521 = vsel %vm1327, %v1306, 0
        %1523 = vmatprep.subr.bf16.mxu0 0
        %1524 = vmatpush1.bf16.xpose.msra.mxu0 0
        %1525 = vmatprep.subr.bf16.mxu0 0
        %1526 = vmatpush1.bf16.xpose.msra.mxu0 0
        %1527 = vmatprep.subr.bf16.mxu0 0
        %1528 = vmatpush1.bf16.xpose.msra.mxu0 0
        %1529 = vmatprep.subr.bf16.mxu0 0
        %1530 = vmatpush1.bf16.xpose.msra.mxu0 0
        %1531 = vmatprep.subr.bf16.mxu0 0
        %1532 = vmatpush1.bf16.xpose.msra.mxu0 0
        %1533 = vmatprep.subr.bf16.mxu0 0
        %1534 = vmatpush1.bf16.xpose.msra.mxu0 0
        %1535 = vmatprep.subr.bf16.mxu0 0
        %1536 = vmatpush1.bf16.xpose.msra.mxu0 %v1521
        %1537 = vmatprep.subr.bf16.mxu0 0
        %1538 = vmatpush1.bf16.xpose.msra.mxu0 %v1518
        %1539 = vmatprep.subr.bf16.mxu0 0
        %1540 = vmatpush2.bf16.xpose.msra.mxu0 0
        %1541 = vmatprep.subr.bf16.mxu0 0
        %1542 = vmatpush2.bf16.xpose.msra.mxu0 0
        %1543 = vmatprep.subr.bf16.mxu0 0
        %1544 = vmatpush2.bf16.xpose.msra.mxu0 0
        %1545 = vmatprep.subr.bf16.mxu0 0
        %1546 = vmatpush2.bf16.xpose.msra.mxu0 0
        %1547 = vmatprep.subr.bf16.mxu0 0
        %1548 = vmatpush2.bf16.xpose.msra.mxu0 0
        %1549 = vmatprep.subr.bf16.mxu0 0
        %1550 = vmatpush2.bf16.xpose.msra.mxu0 0
        %1551 = vmatprep.subr.bf16.mxu0 0
        %1552 = vmatpush2.bf16.xpose.msra.mxu0 0
        %1553 = vmatprep.subr.bf16.mxu0 0
        %1554 = vmatpush2.bf16.xpose.msra.mxu0 0
        %1555 = vmatprep.mubr.bf16.mxu0 0
        %1556 = vmatmul.mubr.bf16.gmra.mxu0 %v1512
        %v1557 = vpop.f32.mrf.mxu0
        %v1558 = vadd.f32 0.0, %v1557
        %v1559 = vpop.f32.mrf.mxu0
        %v1560 = vpop.f32.mrf.mxu0
        %v1561 = vadd.f32 0.0, %v1560
        %v1562 = vpop.f32.mrf.mxu0
        %1563 = vmatprep.mubr.bf16.mxu0 0
        %1564 = vmatmul.mubr.bf16.gmra.mxu0 %v1515
        %v1565 = vpop.f32.mrf.mxu0
        %v1566 = vadd.f32 0.0, %v1565
        %v1567 = vpop.f32.mrf.mxu0
        %v1568 = vpop.f32.mrf.mxu0
        %v1569 = vadd.f32 0.0, %v1568
        %v1570 = vpop.f32.mrf.mxu0
        %1571 = vdwg.mxu0
        %v1572 = vld [vmem:[%s888] sm:$0xf]
        %v1573 = vld [vmem:[%s888 + $0x4] sm:$0xf]
        %v1574 = vld [vmem:[%s888 + $0x8] sm:$0xf]
        %v1575 = vld [vmem:[%s888 + $0xc] sm:$0xf]
        %v1576 = vld [vmem:[%s888 + $0x10] sm:$0xf]
        %v1577 = vld [vmem:[%s888 + $0x14] sm:$0xf]
        %v1578 = vld [vmem:[%s888 + $0x18] sm:$0xf]
        %v1579 = vld [vmem:[%s888 + $0x1c] sm:$0xf]
        %v1580 = vld [vmem:[%s888 + $0x20] sm:$0xf]
        %v1581 = vld [vmem:[%s888 + $0x24] sm:$0xf]
        %v1582 = vld [vmem:[%s888 + $0x28] sm:$0xf]
        %v1583 = vld [vmem:[%s888 + $0x2c] sm:$0xf]
        %v1584 = vld [vmem:[%s888 + $0x30] sm:$0xf]
        %v1585 = vld [vmem:[%s888 + $0x34] sm:$0xf]
        %v1586 = vld [vmem:[%s888 + $0x38] sm:$0xf]
        %v1587 = vld [vmem:[%s888 + $0x3c] sm:$0xf]
        %v1592 = vunpack.c.l.b16 %v1572
        %v1593 = vunpack.c.l.b16 %v1573
        %v1594 = vunpack.c.l.b16 %v1574
        %v1595 = vunpack.c.l.b16 %v1575
        %v1596 = vpack.c.b16 %v1593, %v1592
        %v1597 = vpack.c.b16 %v1595, %v1594
        %v1601 = vsel %vm1327, %v1275, 0
        %v1604 = vsel %vm1327, %v1278, 0
        %1606 = vmatprep.subr.bf16.mxu0 0
        %1607 = vmatpush1.bf16.msra.mxu0 0
        %1608 = vmatprep.subr.bf16.mxu0 0
        %1609 = vmatpush1.bf16.msra.mxu0 0
        %1610 = vmatprep.subr.bf16.mxu0 0
        %1611 = vmatpush1.bf16.msra.mxu0 0
        %1612 = vmatprep.subr.bf16.mxu0 0
        %1613 = vmatpush1.bf16.msra.mxu0 0
        %1614 = vmatprep.subr.bf16.mxu0 0
        %1615 = vmatpush1.bf16.msra.mxu0 0
        %1616 = vmatprep.subr.bf16.mxu0 0
        %1617 = vmatpush1.bf16.msra.mxu0 0
        %1618 = vmatprep.subr.bf16.mxu0 0
        %1619 = vmatpush1.bf16.msra.mxu0 %v1597
        %1620 = vmatprep.subr.bf16.mxu0 0
        %1621 = vmatpush1.bf16.msra.mxu0 %v1596
        %1622 = vmatprep.subr.bf16.mxu0 0
        %1623 = vmatpush2.bf16.msra.mxu0 0
        %1624 = vmatprep.subr.bf16.mxu0 0
        %1625 = vmatpush2.bf16.msra.mxu0 0
        %1626 = vmatprep.subr.bf16.mxu0 0
        %1627 = vmatpush2.bf16.msra.mxu0 0
        %1628 = vmatprep.subr.bf16.mxu0 0
        %1629 = vmatpush2.bf16.msra.mxu0 0
        %1630 = vmatprep.subr.bf16.mxu0 0
        %1631 = vmatpush2.bf16.msra.mxu0 0
        %1632 = vmatprep.subr.bf16.mxu0 0
        %1633 = vmatpush2.bf16.msra.mxu0 0
        %1634 = vmatprep.subr.bf16.mxu0 0
        %1635 = vmatpush2.bf16.msra.mxu0 0
        %1636 = vmatprep.subr.bf16.mxu0 0
        %1637 = vmatpush2.bf16.msra.mxu0 0
        %1638 = vmatprep.mubr.bf16.mxu0 0
        %1639 = vmatmul.mubr.bf16.gmra.mxu0 %v1601
        %v1640 = vpop.f32.mrf.mxu0
        %v1641 = vadd.f32 0.0, %v1640
        %v1642 = vpop.f32.mrf.mxu0
        %v1643 = vpop.f32.mrf.mxu0
        %v1644 = vadd.f32 0.0, %v1643
        %v1645 = vpop.f32.mrf.mxu0
        %1646 = vmatprep.mubr.bf16.mxu0 0
        %1647 = vmatmul.mubr.bf16.gmra.mxu0 %v1604
        %v1648 = vpop.f32.mrf.mxu0
        %v1649 = vadd.f32 0.0, %v1648
        %v1650 = vpop.f32.mrf.mxu0
        %v1651 = vpop.f32.mrf.mxu0
        %v1652 = vadd.f32 0.0, %v1651
        %v1653 = vpop.f32.mrf.mxu0
        %1654 = vdwg.mxu0
        %v1659 = vunpack.c.l.b16 %v1576
        %v1660 = vunpack.c.l.b16 %v1577
        %v1661 = vunpack.c.l.b16 %v1578
        %v1662 = vunpack.c.l.b16 %v1579
        %v1663 = vpack.c.b16 %v1660, %v1659
        %v1664 = vpack.c.b16 %v1662, %v1661
        %v1668 = vsel %vm1327, %v1310, 0
        %v1671 = vsel %vm1327, %v1312, 0
        %1673 = vmatprep.subr.bf16.mxu0 0
        %1674 = vmatpush1.bf16.msra.mxu0 0
        %1675 = vmatprep.subr.bf16.mxu0 0
        %1676 = vmatpush1.bf16.msra.mxu0 0
        %1677 = vmatprep.subr.bf16.mxu0 0
        %1678 = vmatpush1.bf16.msra.mxu0 0
        %1679 = vmatprep.subr.bf16.mxu0 0
        %1680 = vmatpush1.bf16.msra.mxu0 0
        %1681 = vmatprep.subr.bf16.mxu0 0
        %1682 = vmatpush1.bf16.msra.mxu0 0
        %1683 = vmatprep.subr.bf16.mxu0 0
        %1684 = vmatpush1.bf16.msra.mxu0 0
        %1685 = vmatprep.subr.bf16.mxu0 0
        %1686 = vmatpush1.bf16.msra.mxu0 %v1664
        %1687 = vmatprep.subr.bf16.mxu0 0
        %1688 = vmatpush1.bf16.msra.mxu0 %v1663
        %1689 = vmatprep.subr.bf16.mxu0 0
        %1690 = vmatpush2.bf16.msra.mxu0 0
        %1691 = vmatprep.subr.bf16.mxu0 0
        %1692 = vmatpush2.bf16.msra.mxu0 0
        %1693 = vmatprep.subr.bf16.mxu0 0
        %1694 = vmatpush2.bf16.msra.mxu0 0
        %1695 = vmatprep.subr.bf16.mxu0 0
        %1696 = vmatpush2.bf16.msra.mxu0 0
        %1697 = vmatprep.subr.bf16.mxu0 0
        %1698 = vmatpush2.bf16.msra.mxu0 0
        %1699 = vmatprep.subr.bf16.mxu0 0
        %1700 = vmatpush2.bf16.msra.mxu0 0
        %1701 = vmatprep.subr.bf16.mxu0 0
        %1702 = vmatpush2.bf16.msra.mxu0 0
        %1703 = vmatprep.subr.bf16.mxu0 0
        %1704 = vmatpush2.bf16.msra.mxu0 0
        %1705 = vmatprep.mubr.bf16.mxu0 0
        %1706 = vmatmul.mubr.bf16.gmra.mxu0 %v1668
        %v1707 = vpop.f32.mrf.mxu0
        %v1708 = vadd.f32 0.0, %v1707
        %v1709 = vpop.f32.mrf.mxu0
        %v1710 = vpop.f32.mrf.mxu0
        %v1711 = vadd.f32 0.0, %v1710
        %v1712 = vpop.f32.mrf.mxu0
        %1713 = vmatprep.mubr.bf16.mxu0 0
        %1714 = vmatmul.mubr.bf16.gmra.mxu0 %v1671
        %v1715 = vpop.f32.mrf.mxu0
        %v1716 = vadd.f32 0.0, %v1715
        %v1717 = vpop.f32.mrf.mxu0
        %v1718 = vpop.f32.mrf.mxu0
        %v1719 = vadd.f32 0.0, %v1718
        %v1720 = vpop.f32.mrf.mxu0
        %1721 = vdwg.mxu0
        %v1726 = vunpack.c.l.b16 %v1580
        %v1727 = vunpack.c.l.b16 %v1581
        %v1728 = vunpack.c.l.b16 %v1582
        %v1729 = vunpack.c.l.b16 %v1583
        %v1730 = vpack.c.b16 %v1727, %v1726
        %v1731 = vpack.c.b16 %v1729, %v1728
        %v1735 = vsel %vm1327, %v1316, 0
        %v1738 = vsel %vm1327, %v1318, 0
        %1740 = vmatprep.subr.bf16.mxu0 0
        %1741 = vmatpush1.bf16.msra.mxu0 0
        %1742 = vmatprep.subr.bf16.mxu0 0
        %1743 = vmatpush1.bf16.msra.mxu0 0
        %1744 = vmatprep.subr.bf16.mxu0 0
        %1745 = vmatpush1.bf16.msra.mxu0 0
        %1746 = vmatprep.subr.bf16.mxu0 0
        %1747 = vmatpush1.bf16.msra.mxu0 0
        %1748 = vmatprep.subr.bf16.mxu0 0
        %1749 = vmatpush1.bf16.msra.mxu0 0
        %1750 = vmatprep.subr.bf16.mxu0 0
        %1751 = vmatpush1.bf16.msra.mxu0 0
        %1752 = vmatprep.subr.bf16.mxu0 0
        %1753 = vmatpush1.bf16.msra.mxu0 %v1731
        %1754 = vmatprep.subr.bf16.mxu0 0
        %1755 = vmatpush1.bf16.msra.mxu0 %v1730
        %1756 = vmatprep.subr.bf16.mxu0 0
        %1757 = vmatpush2.bf16.msra.mxu0 0
        %1758 = vmatprep.subr.bf16.mxu0 0
        %1759 = vmatpush2.bf16.msra.mxu0 0
        %1760 = vmatprep.subr.bf16.mxu0 0
        %1761 = vmatpush2.bf16.msra.mxu0 0
        %1762 = vmatprep.subr.bf16.mxu0 0
        %1763 = vmatpush2.bf16.msra.mxu0 0
        %1764 = vmatprep.subr.bf16.mxu0 0
        %1765 = vmatpush2.bf16.msra.mxu0 0
        %1766 = vmatprep.subr.bf16.mxu0 0
        %1767 = vmatpush2.bf16.msra.mxu0 0
        %1768 = vmatprep.subr.bf16.mxu0 0
        %1769 = vmatpush2.bf16.msra.mxu0 0
        %1770 = vmatprep.subr.bf16.mxu0 0
        %1771 = vmatpush2.bf16.msra.mxu0 0
        %1772 = vmatprep.mubr.bf16.mxu0 0
        %1773 = vmatmul.mubr.bf16.gmra.mxu0 %v1735
        %v1774 = vpop.f32.mrf.mxu0
        %v1775 = vadd.f32 0.0, %v1774
        %v1776 = vpop.f32.mrf.mxu0
        %v1777 = vpop.f32.mrf.mxu0
        %v1778 = vadd.f32 0.0, %v1777
        %v1779 = vpop.f32.mrf.mxu0
        %1780 = vmatprep.mubr.bf16.mxu0 0
        %1781 = vmatmul.mubr.bf16.gmra.mxu0 %v1738
        %v1782 = vpop.f32.mrf.mxu0
        %v1783 = vadd.f32 0.0, %v1782
        %v1784 = vpop.f32.mrf.mxu0
        %v1785 = vpop.f32.mrf.mxu0
        %v1786 = vadd.f32 0.0, %v1785
        %v1787 = vpop.f32.mrf.mxu0
        %1788 = vdwg.mxu0
        %v1793 = vunpack.c.l.b16 %v1584
        %v1794 = vunpack.c.l.b16 %v1585
        %v1795 = vunpack.c.l.b16 %v1586
        %v1796 = vunpack.c.l.b16 %v1587
        %v1797 = vpack.c.b16 %v1794, %v1793
        %v1798 = vpack.c.b16 %v1796, %v1795
        %v1802 = vsel %vm1327, %v1322, 0
        %v1805 = vsel %vm1327, %v1324, 0
        %1807 = vmatprep.subr.bf16.mxu0 0
        %1808 = vmatpush1.bf16.msra.mxu0 0
        %1809 = vmatprep.subr.bf16.mxu0 0
        %1810 = vmatpush1.bf16.msra.mxu0 0
        %1811 = vmatprep.subr.bf16.mxu0 0
        %1812 = vmatpush1.bf16.msra.mxu0 0
        %1813 = vmatprep.subr.bf16.mxu0 0
        %1814 = vmatpush1.bf16.msra.mxu0 0
        %1815 = vmatprep.subr.bf16.mxu0 0
        %1816 = vmatpush1.bf16.msra.mxu0 0
        %1817 = vmatprep.subr.bf16.mxu0 0
        %1818 = vmatpush1.bf16.msra.mxu0 0
        %1819 = vmatprep.subr.bf16.mxu0 0
        %1820 = vmatpush1.bf16.msra.mxu0 %v1798
        %1821 = vmatprep.subr.bf16.mxu0 0
        %1822 = vmatpush1.bf16.msra.mxu0 %v1797
        %1823 = vmatprep.subr.bf16.mxu0 0
        %1824 = vmatpush2.bf16.msra.mxu0 0
        %1825 = vmatprep.subr.bf16.mxu0 0
        %1826 = vmatpush2.bf16.msra.mxu0 0
        %1827 = vmatprep.subr.bf16.mxu0 0
        %1828 = vmatpush2.bf16.msra.mxu0 0
        %1829 = vmatprep.subr.bf16.mxu0 0
        %1830 = vmatpush2.bf16.msra.mxu0 0
        %1831 = vmatprep.subr.bf16.mxu0 0
        %1832 = vmatpush2.bf16.msra.mxu0 0
        %1833 = vmatprep.subr.bf16.mxu0 0
        %1834 = vmatpush2.bf16.msra.mxu0 0
        %1835 = vmatprep.subr.bf16.mxu0 0
        %1836 = vmatpush2.bf16.msra.mxu0 0
        %1837 = vmatprep.subr.bf16.mxu0 0
        %1838 = vmatpush2.bf16.msra.mxu0 0
        %1839 = vmatprep.mubr.bf16.mxu0 0
        %1840 = vmatmul.mubr.bf16.gmra.mxu0 %v1802
        %v1841 = vpop.f32.mrf.mxu0
        %v1842 = vadd.f32 0.0, %v1841
        %v1843 = vpop.f32.mrf.mxu0
        %v1844 = vpop.f32.mrf.mxu0
        %v1845 = vadd.f32 0.0, %v1844
        %v1846 = vpop.f32.mrf.mxu0
        %1847 = vmatprep.mubr.bf16.mxu0 0
        %1848 = vmatmul.mubr.bf16.gmra.mxu0 %v1805
        %v1849 = vpop.f32.mrf.mxu0
        %v1850 = vadd.f32 0.0, %v1849
        %v1851 = vpop.f32.mrf.mxu0
        %v1852 = vpop.f32.mrf.mxu0
        %v1853 = vadd.f32 0.0, %v1852
        %v1854 = vpop.f32.mrf.mxu0
        %1855 = vdwg.mxu0
        %v1856 = vmul.f32 %v1641, 0.5
        %v1857 = vmul.f32 %v1644, 0.5
        %v1858 = vmul.f32 %v1649, 0.5
        %v1859 = vmul.f32 %v1652, 0.5
        %v1860 = vmul.f32 %v1708, 0.5
        %v1861 = vmul.f32 %v1711, 0.5
        %v1862 = vmul.f32 %v1716, 0.5
        %v1863 = vmul.f32 %v1719, 0.5
        %v1864 = vmul.f32 %v1775, 0.5
        %v1865 = vmul.f32 %v1778, 0.5
        %v1866 = vmul.f32 %v1783, 0.5
        %v1867 = vmul.f32 %v1786, 0.5
        %v1868 = vmul.f32 %v1842, 0.5
        %v1869 = vmul.f32 %v1845, 0.5
        %v1870 = vmul.f32 %v1850, 0.5
        %v1871 = vmul.f32 %v1853, 0.5
        %v1872 = vmul.f32 %v1641, 0.70710677
        %v1873 = vmul.f32 %v1644, 0.70710677
        %v1874 = vmul.f32 %v1649, 0.70710677
        %v1875 = vmul.f32 %v1652, 0.70710677
        %v1876 = vmul.f32 %v1708, 0.70710677
        %v1877 = vmul.f32 %v1711, 0.70710677
        %v1878 = vmul.f32 %v1716, 0.70710677
        %v1879 = vmul.f32 %v1719, 0.70710677
        %v1880 = vmul.f32 %v1775, 0.70710677
        %v1881 = vmul.f32 %v1778, 0.70710677
        %v1882 = vmul.f32 %v1783, 0.70710677
        %v1883 = vmul.f32 %v1786, 0.70710677
        %v1884 = vmul.f32 %v1842, 0.70710677
        %v1885 = vmul.f32 %v1845, 0.70710677
        %v1886 = vmul.f32 %v1850, 0.70710677
        %v1887 = vmul.f32 %v1853, 0.70710677
        %v1888 = verf.f32.pop %v1872
        %v1889 = verf.f32.pop %v1873
        %v1890 = verf.f32.pop %v1874
        %v1891 = verf.f32.pop %v1875
        %v1892 = verf.f32.pop %v1876
        %v1893 = verf.f32.pop %v1877
        %v1894 = verf.f32.pop %v1878
        %v1895 = verf.f32.pop %v1879
        %v1896 = verf.f32.pop %v1880
        %v1897 = verf.f32.pop %v1881
        %v1898 = verf.f32.pop %v1882
        %v1899 = verf.f32.pop %v1883
        %v1900 = verf.f32.pop %v1884
        %v1901 = verf.f32.pop %v1885
        %v1902 = verf.f32.pop %v1886
        %v1903 = verf.f32.pop %v1887
        %v1904 = vadd.f32 %v1888, 1.0
        %v1905 = vadd.f32 %v1889, 1.0
        %v1906 = vadd.f32 %v1890, 1.0
        %v1907 = vadd.f32 %v1891, 1.0
        %v1908 = vadd.f32 %v1892, 1.0
        %v1909 = vadd.f32 %v1893, 1.0
        %v1910 = vadd.f32 %v1894, 1.0
        %v1911 = vadd.f32 %v1895, 1.0
        %v1912 = vadd.f32 %v1896, 1.0
        %v1913 = vadd.f32 %v1897, 1.0
        %v1914 = vadd.f32 %v1898, 1.0
        %v1915 = vadd.f32 %v1899, 1.0
        %v1916 = vadd.f32 %v1900, 1.0
        %v1917 = vadd.f32 %v1901, 1.0
        %v1918 = vadd.f32 %v1902, 1.0
        %v1919 = vadd.f32 %v1903, 1.0
        %v1920 = vmul.f32 %v1856, %v1904
        %v1921 = vmul.f32 %v1857, %v1905
        %v1922 = vmul.f32 %v1858, %v1906
        %v1923 = vmul.f32 %v1859, %v1907
        %v1924 = vmul.f32 %v1860, %v1908
        %v1925 = vmul.f32 %v1861, %v1909
        %v1926 = vmul.f32 %v1862, %v1910
        %v1927 = vmul.f32 %v1863, %v1911
        %v1928 = vmul.f32 %v1864, %v1912
        %v1929 = vmul.f32 %v1865, %v1913
        %v1930 = vmul.f32 %v1866, %v1914
        %v1931 = vmul.f32 %v1867, %v1915
        %v1932 = vmul.f32 %v1868, %v1916
        %v1933 = vmul.f32 %v1869, %v1917
        %v1934 = vmul.f32 %v1870, %v1918
        %v1935 = vmul.f32 %v1871, %v1919
        %vm1936 = vcmask 130048
        %v1937 = vsel %vm1936, %v1920, -inf
        %1938 = vmax.xlane.f32.xlu0 %v1937
        %v1939 = vpop.xlane.xlu0 %1938
        %v1940 = vsel %vm1936, %v1921, -inf
        %1941 = vmax.xlane.f32.xlu0 %v1940
        %v1942 = vpop.xlane.xlu0 %1941
        %v1943 = vsel %vm1936, %v1922, -inf
        %1944 = vmax.xlane.f32.xlu0 %v1943
        %v1945 = vpop.xlane.xlu0 %1944
        %v1946 = vsel %vm1936, %v1923, -inf
        %1947 = vmax.xlane.f32.xlu0 %v1946
        %v1948 = vpop.xlane.xlu0 %1947
        %v1949 = vsel %vm1936, %v1924, -inf
        %1950 = vmax.xlane.f32.xlu0 %v1949
        %v1951 = vpop.xlane.xlu0 %1950
        %v1952 = vsel %vm1936, %v1925, -inf
        %1953 = vmax.xlane.f32.xlu0 %v1952
        %v1954 = vpop.xlane.xlu0 %1953
        %v1955 = vsel %vm1936, %v1926, -inf
        %1956 = vmax.xlane.f32.xlu0 %v1955
        %v1957 = vpop.xlane.xlu0 %1956
        %v1958 = vsel %vm1936, %v1927, -inf
        %1959 = vmax.xlane.f32.xlu0 %v1958
        %v1960 = vpop.xlane.xlu0 %1959
        %v1961 = vsel %vm1936, %v1928, -inf
        %1962 = vmax.xlane.f32.xlu0 %v1961
        %v1963 = vpop.xlane.xlu0 %1962
        %v1964 = vsel %vm1936, %v1929, -inf
        %1965 = vmax.xlane.f32.xlu0 %v1964
        %v1966 = vpop.xlane.xlu0 %1965
        %v1967 = vsel %vm1936, %v1930, -inf
        %1968 = vmax.xlane.f32.xlu0 %v1967
        %v1969 = vpop.xlane.xlu0 %1968
        %v1970 = vsel %vm1936, %v1931, -inf
        %1971 = vmax.xlane.f32.xlu0 %v1970
        %v1972 = vpop.xlane.xlu0 %1971
        %v1973 = vsel %vm1936, %v1932, -inf
        %1974 = vmax.xlane.f32.xlu0 %v1973
        %v1975 = vpop.xlane.xlu0 %1974
        %v1976 = vsel %vm1936, %v1933, -inf
        %1977 = vmax.xlane.f32.xlu0 %v1976
        %v1978 = vpop.xlane.xlu0 %1977
        %v1979 = vsel %vm1936, %v1934, -inf
        %1980 = vmax.xlane.f32.xlu0 %v1979
        %v1981 = vpop.xlane.xlu0 %1980
        %v1982 = vsel %vm1936, %v1935, -inf
        %1983 = vmax.xlane.f32.xlu0 %v1982
        %v1984 = vpop.xlane.xlu0 %1983
        %v1985 = vsub.f32 %v1920, %v1939
        %v1986 = vsub.f32 %v1921, %v1942
        %v1987 = vsub.f32 %v1922, %v1945
        %v1988 = vsub.f32 %v1923, %v1948
        %v1989 = vsub.f32 %v1924, %v1951
        %v1990 = vsub.f32 %v1925, %v1954
        %v1991 = vsub.f32 %v1926, %v1957
        %v1992 = vsub.f32 %v1927, %v1960
        %v1993 = vsub.f32 %v1928, %v1963
        %v1994 = vsub.f32 %v1929, %v1966
        %v1995 = vsub.f32 %v1930, %v1969
        %v1996 = vsub.f32 %v1931, %v1972
        %v1997 = vsub.f32 %v1932, %v1975
        %v1998 = vsub.f32 %v1933, %v1978
        %v1999 = vsub.f32 %v1934, %v1981
        %v2000 = vsub.f32 %v1935, %v1984
        %v2001 = vmul.f32 %v1985, 1.442695
        %v2002 = vpow.pop %v2001
        %v2003 = vmul.f32 %v1986, 1.442695
        %v2004 = vpow.pop %v2003
        %v2005 = vmul.f32 %v1987, 1.442695
        %v2006 = vpow.pop %v2005
        %v2007 = vmul.f32 %v1988, 1.442695
        %v2008 = vpow.pop %v2007
        %v2009 = vmul.f32 %v1989, 1.442695
        %v2010 = vpow.pop %v2009
        %v2011 = vmul.f32 %v1990, 1.442695
        %v2012 = vpow.pop %v2011
        %v2013 = vmul.f32 %v1991, 1.442695
        %v2014 = vpow.pop %v2013
        %v2015 = vmul.f32 %v1992, 1.442695
        %v2016 = vpow.pop %v2015
        %v2017 = vmul.f32 %v1993, 1.442695
        %v2018 = vpow.pop %v2017
        %v2019 = vmul.f32 %v1994, 1.442695
        %v2020 = vpow.pop %v2019
        %v2021 = vmul.f32 %v1995, 1.442695
        %v2022 = vpow.pop %v2021
        %v2023 = vmul.f32 %v1996, 1.442695
        %v2024 = vpow.pop %v2023
        %v2025 = vmul.f32 %v1997, 1.442695
        %v2026 = vpow.pop %v2025
        %v2027 = vmul.f32 %v1998, 1.442695
        %v2028 = vpow.pop %v2027
        %v2029 = vmul.f32 %v1999, 1.442695
        %v2030 = vpow.pop %v2029
        %v2031 = vmul.f32 %v2000, 1.442695
        %v2032 = vpow.pop %v2031
        %v2033 = vsel %vm1936, %v2002, 0.0
        %2034 = vadd.xlane.f32.xlu0 %v2033
        %v2035 = vpop.xlane.xlu0 %2034
        %v2036 = vsel %vm1936, %v2004, 0.0
        %2037 = vadd.xlane.f32.xlu0 %v2036
        %v2038 = vpop.xlane.xlu0 %2037
        %v2039 = vsel %vm1936, %v2006, 0.0
        %2040 = vadd.xlane.f32.xlu0 %v2039
        %v2041 = vpop.xlane.xlu0 %2040
        %v2042 = vsel %vm1936, %v2008, 0.0
        %2043 = vadd.xlane.f32.xlu0 %v2042
        %v2044 = vpop.xlane.xlu0 %2043
        %v2045 = vsel %vm1936, %v2010, 0.0
        %2046 = vadd.xlane.f32.xlu0 %v2045
        %v2047 = vpop.xlane.xlu0 %2046
        %v2048 = vsel %vm1936, %v2012, 0.0
        %2049 = vadd.xlane.f32.xlu0 %v2048
        %v2050 = vpop.xlane.xlu0 %2049
        %v2051 = vsel %vm1936, %v2014, 0.0
        %2052 = vadd.xlane.f32.xlu0 %v2051
        %v2053 = vpop.xlane.xlu0 %2052
        %v2054 = vsel %vm1936, %v2016, 0.0
        %2055 = vadd.xlane.f32.xlu0 %v2054
        %v2056 = vpop.xlane.xlu0 %2055
        %v2057 = vsel %vm1936, %v2018, 0.0
        %2058 = vadd.xlane.f32.xlu0 %v2057
        %v2059 = vpop.xlane.xlu0 %2058
        %v2060 = vsel %vm1936, %v2020, 0.0
        %2061 = vadd.xlane.f32.xlu0 %v2060
        %v2062 = vpop.xlane.xlu0 %2061
        %v2063 = vsel %vm1936, %v2022, 0.0
        %2064 = vadd.xlane.f32.xlu0 %v2063
        %v2065 = vpop.xlane.xlu0 %2064
        %v2066 = vsel %vm1936, %v2024, 0.0
        %2067 = vadd.xlane.f32.xlu0 %v2066
        %v2068 = vpop.xlane.xlu0 %2067
        %v2069 = vsel %vm1936, %v2026, 0.0
        %2070 = vadd.xlane.f32.xlu0 %v2069
        %v2071 = vpop.xlane.xlu0 %2070
        %v2072 = vsel %vm1936, %v2028, 0.0
        %2073 = vadd.xlane.f32.xlu0 %v2072
        %v2074 = vpop.xlane.xlu0 %2073
        %v2075 = vsel %vm1936, %v2030, 0.0
        %2076 = vadd.xlane.f32.xlu0 %v2075
        %v2077 = vpop.xlane.xlu0 %2076
        %v2078 = vsel %vm1936, %v2032, 0.0
        %2079 = vadd.xlane.f32.xlu0 %v2078
        %v2080 = vpop.xlane.xlu0 %2079
        %v2081 = vrcp.pop %v2035
        %v2082 = vrcp.pop %v2038
        %v2083 = vrcp.pop %v2041
        %v2084 = vrcp.pop %v2044
        %v2085 = vrcp.pop %v2047
        %v2086 = vrcp.pop %v2050
        %v2087 = vrcp.pop %v2053
        %v2088 = vrcp.pop %v2056
        %v2089 = vrcp.pop %v2059
        %v2090 = vrcp.pop %v2062
        %v2091 = vrcp.pop %v2065
        %v2092 = vrcp.pop %v2068
        %v2093 = vrcp.pop %v2071
        %v2094 = vrcp.pop %v2074
        %v2095 = vrcp.pop %v2077
        %v2096 = vrcp.pop %v2080
        %v2097 = vmul.f32 %v2002, %v2081
        %v2098 = vmul.f32 %v2004, %v2082
        %v2099 = vmul.f32 %v2006, %v2083
        %v2100 = vmul.f32 %v2008, %v2084
        %v2101 = vmul.f32 %v2010, %v2085
        %v2102 = vmul.f32 %v2012, %v2086
        %v2103 = vmul.f32 %v2014, %v2087
        %v2104 = vmul.f32 %v2016, %v2088
        %v2105 = vmul.f32 %v2018, %v2089
        %v2106 = vmul.f32 %v2020, %v2090
        %v2107 = vmul.f32 %v2022, %v2091
        %v2108 = vmul.f32 %v2024, %v2092
        %v2109 = vmul.f32 %v2026, %v2093
        %v2110 = vmul.f32 %v2028, %v2094
        %v2111 = vmul.f32 %v2030, %v2095
        %v2112 = vmul.f32 %v2032, %v2096
        %v2113 = vpack.c.bf16 %v2098, %v2097
        %v2114 = vpack.c.bf16 %v2100, %v2099
        %v2115 = vpack.c.bf16 %v2102, %v2101
        %v2116 = vpack.c.bf16 %v2104, %v2103
        %v2117 = vpack.c.bf16 %v2106, %v2105
        %v2118 = vpack.c.bf16 %v2108, %v2107
        %v2119 = vpack.c.bf16 %v2110, %v2109
        %v2120 = vpack.c.bf16 %v2112, %v2111
        %v2122 = vsel %vm1936, %v2113, 0
        %v2125 = vsel %vm1936, %v2114, 0
        %2127 = vmatprep.subr.bf16.mxu0 0
        %2128 = vmatpush1.bf16.xpose.msra.mxu0 0
        %2129 = vmatprep.subr.bf16.mxu0 0
        %2130 = vmatpush1.bf16.xpose.msra.mxu0 0
        %2131 = vmatprep.subr.bf16.mxu0 0
        %2132 = vmatpush1.bf16.xpose.msra.mxu0 0
        %2133 = vmatprep.subr.bf16.mxu0 0
        %2134 = vmatpush1.bf16.xpose.msra.mxu0 0
        %2135 = vmatprep.subr.bf16.mxu0 0
        %2136 = vmatpush1.bf16.xpose.msra.mxu0 0
        %2137 = vmatprep.subr.bf16.mxu0 0
        %2138 = vmatpush1.bf16.xpose.msra.mxu0 0
        %2139 = vmatprep.subr.bf16.mxu0 0
        %2140 = vmatpush1.bf16.xpose.msra.mxu0 %v2125
        %2141 = vmatprep.subr.bf16.mxu0 0
        %2142 = vmatpush1.bf16.xpose.msra.mxu0 %v2122
        %2143 = vmatprep.subr.bf16.mxu0 0
        %2144 = vmatpush2.bf16.xpose.msra.mxu0 0
        %2145 = vmatprep.subr.bf16.mxu0 0
        %2146 = vmatpush2.bf16.xpose.msra.mxu0 0
        %2147 = vmatprep.subr.bf16.mxu0 0
        %2148 = vmatpush2.bf16.xpose.msra.mxu0 0
        %2149 = vmatprep.subr.bf16.mxu0 0
        %2150 = vmatpush2.bf16.xpose.msra.mxu0 0
        %2151 = vmatprep.subr.bf16.mxu0 0
        %2152 = vmatpush2.bf16.xpose.msra.mxu0 0
        %2153 = vmatprep.subr.bf16.mxu0 0
        %2154 = vmatpush2.bf16.xpose.msra.mxu0 0
        %2155 = vmatprep.subr.bf16.mxu0 0
        %2156 = vmatpush2.bf16.xpose.msra.mxu0 0
        %2157 = vmatprep.subr.bf16.mxu0 0
        %2158 = vmatpush2.bf16.xpose.msra.mxu0 0
        %2159 = vmatprep.mubr.bf16.mxu0 0
        %2160 = vmatmul.mubr.bf16.gmra.mxu0 %v2122
        %v2161 = vpop.f32.mrf.mxu0
        %v2162 = vadd.f32 0.0, %v2161
        %v2163 = vpop.f32.mrf.mxu0
        %v2164 = vpop.f32.mrf.mxu0
        %v2165 = vadd.f32 0.0, %v2164
        %v2166 = vpop.f32.mrf.mxu0
        %2167 = vmatprep.mubr.bf16.mxu0 0
        %2168 = vmatmul.mubr.bf16.gmra.mxu0 %v2125
        %v2169 = vpop.f32.mrf.mxu0
        %v2170 = vadd.f32 0.0, %v2169
        %v2171 = vpop.f32.mrf.mxu0
        %v2172 = vpop.f32.mrf.mxu0
        %v2173 = vadd.f32 0.0, %v2172
        %v2174 = vpop.f32.mrf.mxu0
        %2175 = vdwg.mxu0
        %v2177 = vsel %vm1936, %v2115, 0
        %v2180 = vsel %vm1936, %v2116, 0
        %2182 = vmatprep.subr.bf16.mxu0 0
        %2183 = vmatpush1.bf16.xpose.msra.mxu0 0
        %2184 = vmatprep.subr.bf16.mxu0 0
        %2185 = vmatpush1.bf16.xpose.msra.mxu0 0
        %2186 = vmatprep.subr.bf16.mxu0 0
        %2187 = vmatpush1.bf16.xpose.msra.mxu0 0
        %2188 = vmatprep.subr.bf16.mxu0 0
        %2189 = vmatpush1.bf16.xpose.msra.mxu0 0
        %2190 = vmatprep.subr.bf16.mxu0 0
        %2191 = vmatpush1.bf16.xpose.msra.mxu0 0
        %2192 = vmatprep.subr.bf16.mxu0 0
        %2193 = vmatpush1.bf16.xpose.msra.mxu0 0
        %2194 = vmatprep.subr.bf16.mxu0 0
        %2195 = vmatpush1.bf16.xpose.msra.mxu0 %v2180
        %2196 = vmatprep.subr.bf16.mxu0 0
        %2197 = vmatpush1.bf16.xpose.msra.mxu0 %v2177
        %2198 = vmatprep.subr.bf16.mxu0 0
        %2199 = vmatpush2.bf16.xpose.msra.mxu0 0
        %2200 = vmatprep.subr.bf16.mxu0 0
        %2201 = vmatpush2.bf16.xpose.msra.mxu0 0
        %2202 = vmatprep.subr.bf16.mxu0 0
        %2203 = vmatpush2.bf16.xpose.msra.mxu0 0
        %2204 = vmatprep.subr.bf16.mxu0 0
        %2205 = vmatpush2.bf16.xpose.msra.mxu0 0
        %2206 = vmatprep.subr.bf16.mxu0 0
        %2207 = vmatpush2.bf16.xpose.msra.mxu0 0
        %2208 = vmatprep.subr.bf16.mxu0 0
        %2209 = vmatpush2.bf16.xpose.msra.mxu0 0
        %2210 = vmatprep.subr.bf16.mxu0 0
        %2211 = vmatpush2.bf16.xpose.msra.mxu0 0
        %2212 = vmatprep.subr.bf16.mxu0 0
        %2213 = vmatpush2.bf16.xpose.msra.mxu0 0
        %2214 = vmatprep.mubr.bf16.mxu0 0
        %2215 = vmatmul.mubr.bf16.gmra.mxu0 %v2177
        %v2216 = vpop.f32.mrf.mxu0
        %v2217 = vadd.f32 0.0, %v2216
        %v2218 = vpop.f32.mrf.mxu0
        %v2219 = vpop.f32.mrf.mxu0
        %v2220 = vadd.f32 0.0, %v2219
        %v2221 = vpop.f32.mrf.mxu0
        %2222 = vmatprep.mubr.bf16.mxu0 0
        %2223 = vmatmul.mubr.bf16.gmra.mxu0 %v2180
        %v2224 = vpop.f32.mrf.mxu0
        %v2225 = vadd.f32 0.0, %v2224
        %v2226 = vpop.f32.mrf.mxu0
        %v2227 = vpop.f32.mrf.mxu0
        %v2228 = vadd.f32 0.0, %v2227
        %v2229 = vpop.f32.mrf.mxu0
        %2230 = vdwg.mxu0
        %v2232 = vsel %vm1936, %v2117, 0
        %v2235 = vsel %vm1936, %v2118, 0
        %2237 = vmatprep.subr.bf16.mxu0 0
        %2238 = vmatpush1.bf16.xpose.msra.mxu0 0
        %2239 = vmatprep.subr.bf16.mxu0 0
        %2240 = vmatpush1.bf16.xpose.msra.mxu0 0
        %2241 = vmatprep.subr.bf16.mxu0 0
        %2242 = vmatpush1.bf16.xpose.msra.mxu0 0
        %2243 = vmatprep.subr.bf16.mxu0 0
        %2244 = vmatpush1.bf16.xpose.msra.mxu0 0
        %2245 = vmatprep.subr.bf16.mxu0 0
        %2246 = vmatpush1.bf16.xpose.msra.mxu0 0
        %2247 = vmatprep.subr.bf16.mxu0 0
        %2248 = vmatpush1.bf16.xpose.msra.mxu0 0
        %2249 = vmatprep.subr.bf16.mxu0 0
        %2250 = vmatpush1.bf16.xpose.msra.mxu0 %v2235
        %2251 = vmatprep.subr.bf16.mxu0 0
        %2252 = vmatpush1.bf16.xpose.msra.mxu0 %v2232
        %2253 = vmatprep.subr.bf16.mxu0 0
        %2254 = vmatpush2.bf16.xpose.msra.mxu0 0
        %2255 = vmatprep.subr.bf16.mxu0 0
        %2256 = vmatpush2.bf16.xpose.msra.mxu0 0
        %2257 = vmatprep.subr.bf16.mxu0 0
        %2258 = vmatpush2.bf16.xpose.msra.mxu0 0
        %2259 = vmatprep.subr.bf16.mxu0 0
        %2260 = vmatpush2.bf16.xpose.msra.mxu0 0
        %2261 = vmatprep.subr.bf16.mxu0 0
        %2262 = vmatpush2.bf16.xpose.msra.mxu0 0
        %2263 = vmatprep.subr.bf16.mxu0 0
        %2264 = vmatpush2.bf16.xpose.msra.mxu0 0
        %2265 = vmatprep.subr.bf16.mxu0 0
        %2266 = vmatpush2.bf16.xpose.msra.mxu0 0
        %2267 = vmatprep.subr.bf16.mxu0 0
        %2268 = vmatpush2.bf16.xpose.msra.mxu0 0
        %2269 = vmatprep.mubr.bf16.mxu0 0
        %2270 = vmatmul.mubr.bf16.gmra.mxu0 %v2232
        %v2271 = vpop.f32.mrf.mxu0
        %v2272 = vadd.f32 0.0, %v2271
        %v2273 = vpop.f32.mrf.mxu0
        %v2274 = vpop.f32.mrf.mxu0
        %v2275 = vadd.f32 0.0, %v2274
        %v2276 = vpop.f32.mrf.mxu0
        %2277 = vmatprep.mubr.bf16.mxu0 0
        %2278 = vmatmul.mubr.bf16.gmra.mxu0 %v2235
        %v2279 = vpop.f32.mrf.mxu0
        %v2280 = vadd.f32 0.0, %v2279
        %v2281 = vpop.f32.mrf.mxu0
        %v2282 = vpop.f32.mrf.mxu0
        %v2283 = vadd.f32 0.0, %v2282
        %v2284 = vpop.f32.mrf.mxu0
        %2285 = vdwg.mxu0
        %v2287 = vsel %vm1936, %v2119, 0
        %v2290 = vsel %vm1936, %v2120, 0
        %2292 = vmatprep.subr.bf16.mxu0 0
        %2293 = vmatpush1.bf16.xpose.msra.mxu0 0
        %2294 = vmatprep.subr.bf16.mxu0 0
        %2295 = vmatpush1.bf16.xpose.msra.mxu0 0
        %2296 = vmatprep.subr.bf16.mxu0 0
        %2297 = vmatpush1.bf16.xpose.msra.mxu0 0
        %2298 = vmatprep.subr.bf16.mxu0 0
        %2299 = vmatpush1.bf16.xpose.msra.mxu0 0
        %2300 = vmatprep.subr.bf16.mxu0 0
        %2301 = vmatpush1.bf16.xpose.msra.mxu0 0
        %2302 = vmatprep.subr.bf16.mxu0 0
        %2303 = vmatpush1.bf16.xpose.msra.mxu0 0
        %2304 = vmatprep.subr.bf16.mxu0 0
        %2305 = vmatpush1.bf16.xpose.msra.mxu0 %v2290
        %2306 = vmatprep.subr.bf16.mxu0 0
        %2307 = vmatpush1.bf16.xpose.msra.mxu0 %v2287
        %2308 = vmatprep.subr.bf16.mxu0 0
        %2309 = vmatpush2.bf16.xpose.msra.mxu0 0
        %2310 = vmatprep.subr.bf16.mxu0 0
        %2311 = vmatpush2.bf16.xpose.msra.mxu0 0
        %2312 = vmatprep.subr.bf16.mxu0 0
        %2313 = vmatpush2.bf16.xpose.msra.mxu0 0
        %2314 = vmatprep.subr.bf16.mxu0 0
        %2315 = vmatpush2.bf16.xpose.msra.mxu0 0
        %2316 = vmatprep.subr.bf16.mxu0 0
        %2317 = vmatpush2.bf16.xpose.msra.mxu0 0
        %2318 = vmatprep.subr.bf16.mxu0 0
        %2319 = vmatpush2.bf16.xpose.msra.mxu0 0
        %2320 = vmatprep.subr.bf16.mxu0 0
        %2321 = vmatpush2.bf16.xpose.msra.mxu0 0
        %2322 = vmatprep.subr.bf16.mxu0 0
        %2323 = vmatpush2.bf16.xpose.msra.mxu0 0
        %2324 = vmatprep.mubr.bf16.mxu0 0
        %2325 = vmatmul.mubr.bf16.gmra.mxu0 %v2287
        %v2326 = vpop.f32.mrf.mxu0
        %v2327 = vadd.f32 0.0, %v2326
        %v2328 = vpop.f32.mrf.mxu0
        %v2329 = vpop.f32.mrf.mxu0
        %v2330 = vadd.f32 0.0, %v2329
        %v2331 = vpop.f32.mrf.mxu0
        %2332 = vmatprep.mubr.bf16.mxu0 0
        %2333 = vmatmul.mubr.bf16.gmra.mxu0 %v2290
        %v2334 = vpop.f32.mrf.mxu0
        %v2335 = vadd.f32 0.0, %v2334
        %v2336 = vpop.f32.mrf.mxu0
        %v2337 = vpop.f32.mrf.mxu0
        %v2338 = vadd.f32 0.0, %v2337
        %v2339 = vpop.f32.mrf.mxu0
        %2340 = vdwg.mxu0
        %v2341 = vmul.f32 %v1375, %v2162
        %v2342 = vmul.f32 %v1378, %v2165
        %v2343 = vmul.f32 %v1383, %v2170
        %v2344 = vmul.f32 %v1386, %v2173
        %v2345 = vmul.f32 %v1436, %v2217
        %v2346 = vmul.f32 %v1439, %v2220
        %v2347 = vmul.f32 %v1444, %v2225
        %v2348 = vmul.f32 %v1447, %v2228
        %v2349 = vmul.f32 %v1497, %v2272
        %v2350 = vmul.f32 %v1500, %v2275
        %v2351 = vmul.f32 %v1505, %v2280
        %v2352 = vmul.f32 %v1508, %v2283
        %v2353 = vmul.f32 %v1558, %v2327
        %v2354 = vmul.f32 %v1561, %v2330
        %v2355 = vmul.f32 %v1566, %v2335
        %v2356 = vmul.f32 %v1569, %v2338
        %v2357 = vsel %vm1327, %v2341, -inf
        %2358 = vmax.xlane.f32.xlu0 %v2357
        %v2359 = vpop.xlane.xlu0 %2358
        %v2360 = vsel %vm1327, %v2342, -inf
        %2361 = vmax.xlane.f32.xlu0 %v2360
        %v2362 = vpop.xlane.xlu0 %2361
        %v2363 = vsel %vm1327, %v2343, -inf
        %2364 = vmax.xlane.f32.xlu0 %v2363
        %v2365 = vpop.xlane.xlu0 %2364
        %v2366 = vsel %vm1327, %v2344, -inf
        %2367 = vmax.xlane.f32.xlu0 %v2366
        %v2368 = vpop.xlane.xlu0 %2367
        %v2369 = vsel %vm1327, %v2345, -inf
        %2370 = vmax.xlane.f32.xlu0 %v2369
        %v2371 = vpop.xlane.xlu0 %2370
        %v2372 = vsel %vm1327, %v2346, -inf
        %2373 = vmax.xlane.f32.xlu0 %v2372
        %v2374 = vpop.xlane.xlu0 %2373
        %v2375 = vsel %vm1327, %v2347, -inf
        %2376 = vmax.xlane.f32.xlu0 %v2375
        %v2377 = vpop.xlane.xlu0 %2376
        %v2378 = vsel %vm1327, %v2348, -inf
        %2379 = vmax.xlane.f32.xlu0 %v2378
        %v2380 = vpop.xlane.xlu0 %2379
        %v2381 = vsel %vm1327, %v2349, -inf
        %2382 = vmax.xlane.f32.xlu0 %v2381
        %v2383 = vpop.xlane.xlu0 %2382
        %v2384 = vsel %vm1327, %v2350, -inf
        %2385 = vmax.xlane.f32.xlu0 %v2384
        %v2386 = vpop.xlane.xlu0 %2385
        %v2387 = vsel %vm1327, %v2351, -inf
        %2388 = vmax.xlane.f32.xlu0 %v2387
        %v2389 = vpop.xlane.xlu0 %2388
        %v2390 = vsel %vm1327, %v2352, -inf
        %2391 = vmax.xlane.f32.xlu0 %v2390
        %v2392 = vpop.xlane.xlu0 %2391
        %v2393 = vsel %vm1327, %v2353, -inf
        %2394 = vmax.xlane.f32.xlu0 %v2393
        %v2395 = vpop.xlane.xlu0 %2394
        %v2396 = vsel %vm1327, %v2354, -inf
        %2397 = vmax.xlane.f32.xlu0 %v2396
        %v2398 = vpop.xlane.xlu0 %2397
        %v2399 = vsel %vm1327, %v2355, -inf
        %2400 = vmax.xlane.f32.xlu0 %v2399
        %v2401 = vpop.xlane.xlu0 %2400
        %v2402 = vsel %vm1327, %v2356, -inf
        %2403 = vmax.xlane.f32.xlu0 %v2402
        %v2404 = vpop.xlane.xlu0 %2403
        %v2405 = vsub.f32 %v2341, %v2359
        %v2406 = vsub.f32 %v2342, %v2362
        %v2407 = vsub.f32 %v2343, %v2365
        %v2408 = vsub.f32 %v2344, %v2368
        %v2409 = vsub.f32 %v2345, %v2371
        %v2410 = vsub.f32 %v2346, %v2374
        %v2411 = vsub.f32 %v2347, %v2377
        %v2412 = vsub.f32 %v2348, %v2380
        %v2413 = vsub.f32 %v2349, %v2383
        %v2414 = vsub.f32 %v2350, %v2386
        %v2415 = vsub.f32 %v2351, %v2389
        %v2416 = vsub.f32 %v2352, %v2392
        %v2417 = vsub.f32 %v2353, %v2395
        %v2418 = vsub.f32 %v2354, %v2398
        %v2419 = vsub.f32 %v2355, %v2401
        %v2420 = vsub.f32 %v2356, %v2404
        %v2421 = vmul.f32 %v2405, 1.442695
        %v2422 = vpow.pop %v2421
        %v2423 = vmul.f32 %v2406, 1.442695
        %v2424 = vpow.pop %v2423
        %v2425 = vmul.f32 %v2407, 1.442695
        %v2426 = vpow.pop %v2425
        %v2427 = vmul.f32 %v2408, 1.442695
        %v2428 = vpow.pop %v2427
        %v2429 = vmul.f32 %v2409, 1.442695
        %v2430 = vpow.pop %v2429
        %v2431 = vmul.f32 %v2410, 1.442695
        %v2432 = vpow.pop %v2431
        %v2433 = vmul.f32 %v2411, 1.442695
        %v2434 = vpow.pop %v2433
        %v2435 = vmul.f32 %v2412, 1.442695
        %v2436 = vpow.pop %v2435
        %v2437 = vmul.f32 %v2413, 1.442695
        %v2438 = vpow.pop %v2437
        %v2439 = vmul.f32 %v2414, 1.442695
        %v2440 = vpow.pop %v2439
        %v2441 = vmul.f32 %v2415, 1.442695
        %v2442 = vpow.pop %v2441
        %v2443 = vmul.f32 %v2416, 1.442695
        %v2444 = vpow.pop %v2443
        %v2445 = vmul.f32 %v2417, 1.442695
        %v2446 = vpow.pop %v2445
        %v2447 = vmul.f32 %v2418, 1.442695
        %v2448 = vpow.pop %v2447
        %v2449 = vmul.f32 %v2419, 1.442695
        %v2450 = vpow.pop %v2449
        %v2451 = vmul.f32 %v2420, 1.442695
        %v2452 = vpow.pop %v2451
        %v2453 = vsel %vm1327, %v2422, 0.0
        %2454 = vadd.xlane.f32.xlu0 %v2453
        %v2455 = vpop.xlane.xlu0 %2454
        %v2456 = vsel %vm1327, %v2424, 0.0
        %2457 = vadd.xlane.f32.xlu0 %v2456
        %v2458 = vpop.xlane.xlu0 %2457
        %v2459 = vsel %vm1327, %v2426, 0.0
        %2460 = vadd.xlane.f32.xlu0 %v2459
        %v2461 = vpop.xlane.xlu0 %2460
        %v2462 = vsel %vm1327, %v2428, 0.0
        %2463 = vadd.xlane.f32.xlu0 %v2462
        %v2464 = vpop.xlane.xlu0 %2463
        %v2465 = vsel %vm1327, %v2430, 0.0
        %2466 = vadd.xlane.f32.xlu0 %v2465
        %v2467 = vpop.xlane.xlu0 %2466
        %v2468 = vsel %vm1327, %v2432, 0.0
        %2469 = vadd.xlane.f32.xlu0 %v2468
        %v2470 = vpop.xlane.xlu0 %2469
        %v2471 = vsel %vm1327, %v2434, 0.0
        %2472 = vadd.xlane.f32.xlu0 %v2471
        %v2473 = vpop.xlane.xlu0 %2472
        %v2474 = vsel %vm1327, %v2436, 0.0
        %2475 = vadd.xlane.f32.xlu0 %v2474
        %v2476 = vpop.xlane.xlu0 %2475
        %v2477 = vsel %vm1327, %v2438, 0.0
        %2478 = vadd.xlane.f32.xlu0 %v2477
        %v2479 = vpop.xlane.xlu0 %2478
        %v2480 = vsel %vm1327, %v2440, 0.0
        %2481 = vadd.xlane.f32.xlu0 %v2480
        %v2482 = vpop.xlane.xlu0 %2481
        %v2483 = vsel %vm1327, %v2442, 0.0
        %2484 = vadd.xlane.f32.xlu0 %v2483
        %v2485 = vpop.xlane.xlu0 %2484
        %v2486 = vsel %vm1327, %v2444, 0.0
        %2487 = vadd.xlane.f32.xlu0 %v2486
        %v2488 = vpop.xlane.xlu0 %2487
        %v2489 = vsel %vm1327, %v2446, 0.0
        %2490 = vadd.xlane.f32.xlu0 %v2489
        %v2491 = vpop.xlane.xlu0 %2490
        %v2492 = vsel %vm1327, %v2448, 0.0
        %2493 = vadd.xlane.f32.xlu0 %v2492
        %v2494 = vpop.xlane.xlu0 %2493
        %v2495 = vsel %vm1327, %v2450, 0.0
        %2496 = vadd.xlane.f32.xlu0 %v2495
        %v2497 = vpop.xlane.xlu0 %2496
        %v2498 = vsel %vm1327, %v2452, 0.0
        %2499 = vadd.xlane.f32.xlu0 %v2498
        %v2500 = vpop.xlane.xlu0 %2499
        %v2501 = vrcp.pop %v2455
        %v2502 = vrcp.pop %v2458
        %v2503 = vrcp.pop %v2461
        %v2504 = vrcp.pop %v2464
        %v2505 = vrcp.pop %v2467
        %v2506 = vrcp.pop %v2470
        %v2507 = vrcp.pop %v2473
        %v2508 = vrcp.pop %v2476
        %v2509 = vrcp.pop %v2479
        %v2510 = vrcp.pop %v2482
        %v2511 = vrcp.pop %v2485
        %v2512 = vrcp.pop %v2488
        %v2513 = vrcp.pop %v2491
        %v2514 = vrcp.pop %v2494
        %v2515 = vrcp.pop %v2497
        %v2516 = vrcp.pop %v2500
        %v2517 = vmul.f32 %v2422, %v2501
        %v2518 = vmul.f32 %v2424, %v2502
        %v2519 = vmul.f32 %v2426, %v2503
        %v2520 = vmul.f32 %v2428, %v2504
        %v2521 = vmul.f32 %v2430, %v2505
        %v2522 = vmul.f32 %v2432, %v2506
        %v2523 = vmul.f32 %v2434, %v2507
        %v2524 = vmul.f32 %v2436, %v2508
        %v2525 = vmul.f32 %v2438, %v2509
        %v2526 = vmul.f32 %v2440, %v2510
        %v2527 = vmul.f32 %v2442, %v2511
        %v2528 = vmul.f32 %v2444, %v2512
        %v2529 = vmul.f32 %v2446, %v2513
        %v2530 = vmul.f32 %v2448, %v2514
        %v2531 = vmul.f32 %v2450, %v2515
        %v2532 = vmul.f32 %v2452, %v2516
        %s2533 = smul.u32 %s49, 4
        %s2534 = sld [smem:[#allocation14 + %s2533]]
        %s2535 = ssub.f32 1.0, %s2534
        %v2536 = vstv %s2535
        %v2537 = vmul.f32 %v2536, %v2517
        %v2538 = vmul.f32 %v2536, %v2518
        %v2539 = vmul.f32 %v2536, %v2519
        %v2540 = vmul.f32 %v2536, %v2520
        %v2541 = vstv %s2534
        %v2542 = vmul.f32 %v2541, %v2162
        %v2543 = vmul.f32 %v2541, %v2165
        %v2544 = vmul.f32 %v2541, %v2170
        %v2545 = vmul.f32 %v2541, %v2173
        %v2546 = vadd.f32 %v2537, %v2542
        %v2547 = vadd.f32 %v2538, %v2543
        %v2548 = vadd.f32 %v2539, %v2544
        %v2549 = vadd.f32 %v2540, %v2545
        %s2550 = sadd.s32 %s2533, 1
        %s2551 = sld [smem:[#allocation14 + %s2550]]
        %s2552 = ssub.f32 1.0, %s2551
        %v2553 = vstv %s2552
        %v2554 = vmul.f32 %v2553, %v2521
        %v2555 = vmul.f32 %v2553, %v2522
        %v2556 = vmul.f32 %v2553, %v2523
        %v2557 = vmul.f32 %v2553, %v2524
        %v2558 = vstv %s2551
        %v2559 = vmul.f32 %v2558, %v2217
        %v2560 = vmul.f32 %v2558, %v2220
        %v2561 = vmul.f32 %v2558, %v2225
        %v2562 = vmul.f32 %v2558, %v2228
        %v2563 = vadd.f32 %v2554, %v2559
        %v2564 = vadd.f32 %v2555, %v2560
        %v2565 = vadd.f32 %v2556, %v2561
        %v2566 = vadd.f32 %v2557, %v2562
        %s2567 = sadd.s32 %s2533, 2
        %s2568 = sld [smem:[#allocation14 + %s2567]]
        %s2569 = ssub.f32 1.0, %s2568
        %v2570 = vstv %s2569
        %v2571 = vmul.f32 %v2570, %v2525
        %v2572 = vmul.f32 %v2570, %v2526
        %v2573 = vmul.f32 %v2570, %v2527
        %v2574 = vmul.f32 %v2570, %v2528
        %v2575 = vstv %s2568
        %v2576 = vmul.f32 %v2575, %v2272
        %v2577 = vmul.f32 %v2575, %v2275
        %v2578 = vmul.f32 %v2575, %v2280
        %v2579 = vmul.f32 %v2575, %v2283
        %v2580 = vadd.f32 %v2571, %v2576
        %v2581 = vadd.f32 %v2572, %v2577
        %v2582 = vadd.f32 %v2573, %v2578
        %v2583 = vadd.f32 %v2574, %v2579
        %s2584 = sadd.s32 %s2533, 3
        %s2585 = sld [smem:[#allocation14 + %s2584]]
        %s2586 = ssub.f32 1.0, %s2585
        %v2587 = vstv %s2586
        %v2588 = vmul.f32 %v2587, %v2529
        %v2589 = vmul.f32 %v2587, %v2530
        %v2590 = vmul.f32 %v2587, %v2531
        %v2591 = vmul.f32 %v2587, %v2532
        %v2592 = vstv %s2585
        %v2593 = vmul.f32 %v2592, %v2327
        %v2594 = vmul.f32 %v2592, %v2330
        %v2595 = vmul.f32 %v2592, %v2335
        %v2596 = vmul.f32 %v2592, %v2338
        %v2597 = vadd.f32 %v2588, %v2593
        %v2598 = vadd.f32 %v2589, %v2594
        %v2599 = vadd.f32 %v2590, %v2595
        %v2600 = vadd.f32 %v2591, %v2596
        %v2601 = vsel %vm1327, %v2546, 0.0
        %v2602 = vsel %vm1327, %v2547, 0.0
        %v2603 = vadd.f32 %v2601, %v2602
        %v2604 = vsel %vm1327, %v2548, 0.0
        %v2605 = vadd.f32 %v2603, %v2604
        %v2606 = vsel %vm1327, %v2549, 0.0
        %v2607 = vadd.f32 %v2605, %v2606
        %v2608 = vrot.slane %v2607, 4
        %v2609 = vadd.f32 %v2607, %v2608
        %v2610 = vrot.slane %v2609, 2
        %v2611 = vadd.f32 %v2609, %v2610
        %v2612 = vrot.slane %v2611, 1
        %v2613 = vadd.f32 %v2611, %v2612
        %v2614 = vsel %vm1327, %v2563, 0.0
        %v2615 = vsel %vm1327, %v2564, 0.0
        %v2616 = vadd.f32 %v2614, %v2615
        %v2617 = vsel %vm1327, %v2565, 0.0
        %v2618 = vadd.f32 %v2616, %v2617
        %v2619 = vsel %vm1327, %v2566, 0.0
        %v2620 = vadd.f32 %v2618, %v2619
        %v2621 = vrot.slane %v2620, 4
        %v2622 = vadd.f32 %v2620, %v2621
        %v2623 = vrot.slane %v2622, 2
        %v2624 = vadd.f32 %v2622, %v2623
        %v2625 = vrot.slane %v2624, 1
        %v2626 = vadd.f32 %v2624, %v2625
        %v2627 = vsel %vm1327, %v2580, 0.0
        %v2628 = vsel %vm1327, %v2581, 0.0
        %v2629 = vadd.f32 %v2627, %v2628
        %v2630 = vsel %vm1327, %v2582, 0.0
        %v2631 = vadd.f32 %v2629, %v2630
        %v2632 = vsel %vm1327, %v2583, 0.0
        %v2633 = vadd.f32 %v2631, %v2632
        %v2634 = vrot.slane %v2633, 4
        %v2635 = vadd.f32 %v2633, %v2634
        %v2636 = vrot.slane %v2635, 2
        %v2637 = vadd.f32 %v2635, %v2636
        %v2638 = vrot.slane %v2637, 1
        %v2639 = vadd.f32 %v2637, %v2638
        %v2640 = vsel %vm1327, %v2597, 0.0
        %v2641 = vsel %vm1327, %v2598, 0.0
        %v2642 = vadd.f32 %v2640, %v2641
        %v2643 = vsel %vm1327, %v2599, 0.0
        %v2644 = vadd.f32 %v2642, %v2643
        %v2645 = vsel %vm1327, %v2600, 0.0
        %v2646 = vadd.f32 %v2644, %v2645
        %v2647 = vrot.slane %v2646, 4
        %v2648 = vadd.f32 %v2646, %v2647
        %v2649 = vrot.slane %v2648, 2
        %v2650 = vadd.f32 %v2648, %v2649
        %v2651 = vrot.slane %v2650, 1
        %v2652 = vadd.f32 %v2650, %v2651
        %v2653 = vadd.f32 %v2613, 1e-08
        %v2654 = vadd.f32 %v2626, 1e-08
        %v2655 = vadd.f32 %v2639, 1e-08
        %v2656 = vadd.f32 %v2652, 1e-08
        %v2657 = vrcp.pop %v2653
        %v2658 = vrcp.pop %v2654
        %v2659 = vrcp.pop %v2655
        %v2660 = vrcp.pop %v2656
        %v2661 = vmul.f32 %v2546, %v2657
        %v2662 = vmul.f32 %v2547, %v2657
        %v2663 = vmul.f32 %v2548, %v2657
        %v2664 = vmul.f32 %v2549, %v2657
        %v2665 = vmul.f32 %v2563, %v2658
        %v2666 = vmul.f32 %v2564, %v2658
        %v2667 = vmul.f32 %v2565, %v2658
        %v2668 = vmul.f32 %v2566, %v2658
        %v2669 = vmul.f32 %v2580, %v2659
        %v2670 = vmul.f32 %v2581, %v2659
        %v2671 = vmul.f32 %v2582, %v2659
        %v2672 = vmul.f32 %v2583, %v2659
        %v2673 = vmul.f32 %v2597, %v2660
        %v2674 = vmul.f32 %v2598, %v2660
        %v2675 = vmul.f32 %v2599, %v2660
        %v2676 = vmul.f32 %v2600, %v2660
        %v2677 = vpack.c.bf16 %v2662, %v2661
        %v2678 = vpack.c.bf16 %v2664, %v2663
        %v2679 = vpack.c.bf16 %v2666, %v2665
        %v2680 = vpack.c.bf16 %v2668, %v2667
        %v2681 = vpack.c.bf16 %v2670, %v2669
        %v2682 = vpack.c.bf16 %v2672, %v2671
        %v2683 = vpack.c.bf16 %v2674, %v2673
        %v2684 = vpack.c.bf16 %v2676, %v2675
        %v2686 = vsel %vm1327, %v2677, 0
        %v2689 = vsel %vm1327, %v2678, 0
        %2691 = vmatprep.subr.bf16.mxu0 0
        %2692 = vmatpush1.bf16.msra.mxu0 0
        %2693 = vmatprep.subr.bf16.mxu0 0
        %2694 = vmatpush1.bf16.msra.mxu0 0
        %2695 = vmatprep.subr.bf16.mxu0 0
        %2696 = vmatpush1.bf16.msra.mxu0 0
        %2697 = vmatprep.subr.bf16.mxu0 0
        %2698 = vmatpush1.bf16.msra.mxu0 0
        %2699 = vmatprep.subr.bf16.mxu0 0
        %2700 = vmatpush1.bf16.msra.mxu0 0
        %2701 = vmatprep.subr.bf16.mxu0 0
        %2702 = vmatpush1.bf16.msra.mxu0 0
        %2703 = vmatprep.subr.bf16.mxu0 0
        %2704 = vmatpush1.bf16.msra.mxu0 %v1278
        %2705 = vmatprep.subr.bf16.mxu0 0
        %2706 = vmatpush1.bf16.msra.mxu0 %v1275
        %2707 = vmatprep.subr.bf16.mxu0 0
        %2708 = vmatpush2.bf16.msra.mxu0 0
        %2709 = vmatprep.subr.bf16.mxu0 0
        %2710 = vmatpush2.bf16.msra.mxu0 0
        %2711 = vmatprep.subr.bf16.mxu0 0
        %2712 = vmatpush2.bf16.msra.mxu0 0
        %2713 = vmatprep.subr.bf16.mxu0 0
        %2714 = vmatpush2.bf16.msra.mxu0 0
        %2715 = vmatprep.subr.bf16.mxu0 0
        %2716 = vmatpush2.bf16.msra.mxu0 0
        %2717 = vmatprep.subr.bf16.mxu0 0
        %2718 = vmatpush2.bf16.msra.mxu0 0
        %2719 = vmatprep.subr.bf16.mxu0 0
        %2720 = vmatpush2.bf16.msra.mxu0 0
        %2721 = vmatprep.subr.bf16.mxu0 0
        %2722 = vmatpush2.bf16.msra.mxu0 0
        %2723 = vmatprep.mubr.bf16.mxu0 0
        %2724 = vmatmul.mubr.bf16.gmra.mxu0 %v2686
        %v2725 = vpop.f32.mrf.mxu0
        %v2726 = vadd.f32 0.0, %v2725
        %v2727 = vpop.f32.mrf.mxu0
        %v2728 = vpop.f32.mrf.mxu0
        %v2729 = vadd.f32 0.0, %v2728
        %v2730 = vpop.f32.mrf.mxu0
        %2731 = vmatprep.mubr.bf16.mxu0 0
        %2732 = vmatmul.mubr.bf16.gmra.mxu0 %v2689
        %v2733 = vpop.f32.mrf.mxu0
        %v2734 = vadd.f32 0.0, %v2733
        %v2735 = vpop.f32.mrf.mxu0
        %v2736 = vpop.f32.mrf.mxu0
        %v2737 = vadd.f32 0.0, %v2736
        %v2738 = vpop.f32.mrf.mxu0
        %2739 = vdwg.mxu0
        %v2741 = vsel %vm1327, %v2679, 0
        %v2744 = vsel %vm1327, %v2680, 0
        %2746 = vmatprep.subr.bf16.mxu0 0
        %2747 = vmatpush1.bf16.msra.mxu0 0
        %2748 = vmatprep.subr.bf16.mxu0 0
        %2749 = vmatpush1.bf16.msra.mxu0 0
        %2750 = vmatprep.subr.bf16.mxu0 0
        %2751 = vmatpush1.bf16.msra.mxu0 0
        %2752 = vmatprep.subr.bf16.mxu0 0
        %2753 = vmatpush1.bf16.msra.mxu0 0
        %2754 = vmatprep.subr.bf16.mxu0 0
        %2755 = vmatpush1.bf16.msra.mxu0 0
        %2756 = vmatprep.subr.bf16.mxu0 0
        %2757 = vmatpush1.bf16.msra.mxu0 0
        %2758 = vmatprep.subr.bf16.mxu0 0
        %2759 = vmatpush1.bf16.msra.mxu0 %v1312
        %2760 = vmatprep.subr.bf16.mxu0 0
        %2761 = vmatpush1.bf16.msra.mxu0 %v1310
        %2762 = vmatprep.subr.bf16.mxu0 0
        %2763 = vmatpush2.bf16.msra.mxu0 0
        %2764 = vmatprep.subr.bf16.mxu0 0
        %2765 = vmatpush2.bf16.msra.mxu0 0
        %2766 = vmatprep.subr.bf16.mxu0 0
        %2767 = vmatpush2.bf16.msra.mxu0 0
        %2768 = vmatprep.subr.bf16.mxu0 0
        %2769 = vmatpush2.bf16.msra.mxu0 0
        %2770 = vmatprep.subr.bf16.mxu0 0
        %2771 = vmatpush2.bf16.msra.mxu0 0
        %2772 = vmatprep.subr.bf16.mxu0 0
        %2773 = vmatpush2.bf16.msra.mxu0 0
        %2774 = vmatprep.subr.bf16.mxu0 0
        %2775 = vmatpush2.bf16.msra.mxu0 0
        %2776 = vmatprep.subr.bf16.mxu0 0
        %2777 = vmatpush2.bf16.msra.mxu0 0
        %2778 = vmatprep.mubr.bf16.mxu0 0
        %2779 = vmatmul.mubr.bf16.gmra.mxu0 %v2741
        %v2780 = vpop.f32.mrf.mxu0
        %v2781 = vadd.f32 0.0, %v2780
        %v2782 = vpop.f32.mrf.mxu0
        %v2783 = vpop.f32.mrf.mxu0
        %v2784 = vadd.f32 0.0, %v2783
        %v2785 = vpop.f32.mrf.mxu0
        %2786 = vmatprep.mubr.bf16.mxu0 0
        %2787 = vmatmul.mubr.bf16.gmra.mxu0 %v2744
        %v2788 = vpop.f32.mrf.mxu0
        %v2789 = vadd.f32 0.0, %v2788
        %v2790 = vpop.f32.mrf.mxu0
        %v2791 = vpop.f32.mrf.mxu0
        %v2792 = vadd.f32 0.0, %v2791
        %v2793 = vpop.f32.mrf.mxu0
        %2794 = vdwg.mxu0
        %v2796 = vsel %vm1327, %v2681, 0
        %v2799 = vsel %vm1327, %v2682, 0
        %2801 = vmatprep.subr.bf16.mxu0 0
        %2802 = vmatpush1.bf16.msra.mxu0 0
        %2803 = vmatprep.subr.bf16.mxu0 0
        %2804 = vmatpush1.bf16.msra.mxu0 0
        %2805 = vmatprep.subr.bf16.mxu0 0
        %2806 = vmatpush1.bf16.msra.mxu0 0
        %2807 = vmatprep.subr.bf16.mxu0 0
        %2808 = vmatpush1.bf16.msra.mxu0 0
        %2809 = vmatprep.subr.bf16.mxu0 0
        %2810 = vmatpush1.bf16.msra.mxu0 0
        %2811 = vmatprep.subr.bf16.mxu0 0
        %2812 = vmatpush1.bf16.msra.mxu0 0
        %2813 = vmatprep.subr.bf16.mxu0 0
        %2814 = vmatpush1.bf16.msra.mxu0 %v1318
        %2815 = vmatprep.subr.bf16.mxu0 0
        %2816 = vmatpush1.bf16.msra.mxu0 %v1316
        %2817 = vmatprep.subr.bf16.mxu0 0
        %2818 = vmatpush2.bf16.msra.mxu0 0
        %2819 = vmatprep.subr.bf16.mxu0 0
        %2820 = vmatpush2.bf16.msra.mxu0 0
        %2821 = vmatprep.subr.bf16.mxu0 0
        %2822 = vmatpush2.bf16.msra.mxu0 0
        %2823 = vmatprep.subr.bf16.mxu0 0
        %2824 = vmatpush2.bf16.msra.mxu0 0
        %2825 = vmatprep.subr.bf16.mxu0 0
        %2826 = vmatpush2.bf16.msra.mxu0 0
        %2827 = vmatprep.subr.bf16.mxu0 0
        %2828 = vmatpush2.bf16.msra.mxu0 0
        %2829 = vmatprep.subr.bf16.mxu0 0
        %2830 = vmatpush2.bf16.msra.mxu0 0
        %2831 = vmatprep.subr.bf16.mxu0 0
        %2832 = vmatpush2.bf16.msra.mxu0 0
        %2833 = vmatprep.mubr.bf16.mxu0 0
        %2834 = vmatmul.mubr.bf16.gmra.mxu0 %v2796
        %v2835 = vpop.f32.mrf.mxu0
        %v2836 = vadd.f32 0.0, %v2835
        %v2837 = vpop.f32.mrf.mxu0
        %v2838 = vpop.f32.mrf.mxu0
        %v2839 = vadd.f32 0.0, %v2838
        %v2840 = vpop.f32.mrf.mxu0
        %2841 = vmatprep.mubr.bf16.mxu0 0
        %2842 = vmatmul.mubr.bf16.gmra.mxu0 %v2799
        %v2843 = vpop.f32.mrf.mxu0
        %v2844 = vadd.f32 0.0, %v2843
        %v2845 = vpop.f32.mrf.mxu0
        %v2846 = vpop.f32.mrf.mxu0
        %v2847 = vadd.f32 0.0, %v2846
        %v2848 = vpop.f32.mrf.mxu0
        %2849 = vdwg.mxu0
        %v2851 = vsel %vm1327, %v2683, 0
        %v2854 = vsel %vm1327, %v2684, 0
        %2856 = vmatprep.subr.bf16.mxu0 0
        %2857 = vmatpush1.bf16.msra.mxu0 0
        %2858 = vmatprep.subr.bf16.mxu0 0
        %2859 = vmatpush1.bf16.msra.mxu0 0
        %2860 = vmatprep.subr.bf16.mxu0 0
        %2861 = vmatpush1.bf16.msra.mxu0 0
        %2862 = vmatprep.subr.bf16.mxu0 0
        %2863 = vmatpush1.bf16.msra.mxu0 0
        %2864 = vmatprep.subr.bf16.mxu0 0
        %2865 = vmatpush1.bf16.msra.mxu0 0
        %2866 = vmatprep.subr.bf16.mxu0 0
        %2867 = vmatpush1.bf16.msra.mxu0 0
        %2868 = vmatprep.subr.bf16.mxu0 0
        %2869 = vmatpush1.bf16.msra.mxu0 %v1324
        %2870 = vmatprep.subr.bf16.mxu0 0
        %2871 = vmatpush1.bf16.msra.mxu0 %v1322
        %2872 = vmatprep.subr.bf16.mxu0 0
        %2873 = vmatpush2.bf16.msra.mxu0 0
        %2874 = vmatprep.subr.bf16.mxu0 0
        %2875 = vmatpush2.bf16.msra.mxu0 0
        %2876 = vmatprep.subr.bf16.mxu0 0
        %2877 = vmatpush2.bf16.msra.mxu0 0
        %2878 = vmatprep.subr.bf16.mxu0 0
        %2879 = vmatpush2.bf16.msra.mxu0 0
        %2880 = vmatprep.subr.bf16.mxu0 0
        %2881 = vmatpush2.bf16.msra.mxu0 0
        %2882 = vmatprep.subr.bf16.mxu0 0
        %2883 = vmatpush2.bf16.msra.mxu0 0
        %2884 = vmatprep.subr.bf16.mxu0 0
        %2885 = vmatpush2.bf16.msra.mxu0 0
        %2886 = vmatprep.subr.bf16.mxu0 0
        %2887 = vmatpush2.bf16.msra.mxu0 0
        %2888 = vmatprep.mubr.bf16.mxu0 0
        %2889 = vmatmul.mubr.bf16.gmra.mxu0 %v2851
        %v2890 = vpop.f32.mrf.mxu0
        %v2891 = vadd.f32 0.0, %v2890
        %v2892 = vpop.f32.mrf.mxu0
        %v2893 = vpop.f32.mrf.mxu0
        %v2894 = vadd.f32 0.0, %v2893
        %v2895 = vpop.f32.mrf.mxu0
        %2896 = vmatprep.mubr.bf16.mxu0 0
        %2897 = vmatmul.mubr.bf16.gmra.mxu0 %v2854
        %v2898 = vpop.f32.mrf.mxu0
        %v2899 = vadd.f32 0.0, %v2898
        %v2900 = vpop.f32.mrf.mxu0
        %v2901 = vpop.f32.mrf.mxu0
        %v2902 = vadd.f32 0.0, %v2901
        %v2903 = vpop.f32.mrf.mxu0
        %2904 = vdwg.mxu0
        %2909 = vrot.lane.b32.xlu0 %v2781, 32
        %v2910 = vpop.permute.xlu0 %2909
        %2911 = vrot.lane.b32.xlu0 %v2784, 32
        %v2912 = vpop.permute.xlu0 %2911
        %2913 = vrot.lane.b32.xlu0 %v2789, 32
        %v2914 = vpop.permute.xlu0 %2913
        %2915 = vrot.lane.b32.xlu0 %v2792, 32
        %v2916 = vpop.permute.xlu0 %2915
        %2925 = vrot.lane.b32.xlu0 %v2836, 64
        %v2926 = vpop.permute.xlu0 %2925
        %2927 = vrot.lane.b32.xlu0 %v2839, 64
        %v2928 = vpop.permute.xlu0 %2927
        %2929 = vrot.lane.b32.xlu0 %v2844, 64
        %v2930 = vpop.permute.xlu0 %2929
        %2931 = vrot.lane.b32.xlu0 %v2847, 64
        %v2932 = vpop.permute.xlu0 %2931
        %2941 = vrot.lane.b32.xlu0 %v2891, 96
        %v2942 = vpop.permute.xlu0 %2941
        %2943 = vrot.lane.b32.xlu0 %v2894, 96
        %v2944 = vpop.permute.xlu0 %2943
        %2945 = vrot.lane.b32.xlu0 %v2899, 96
        %v2946 = vpop.permute.xlu0 %2945
        %2947 = vrot.lane.b32.xlu0 %v2902, 96
        %v2948 = vpop.permute.xlu0 %2947
        %v2953 = vsel %vm1327, %v2726, %v2910
        %v2954 = vsel %vm1327, %v2729, %v2912
        %v2955 = vsel %vm1327, %v2734, %v2914
        %v2956 = vsel %vm1327, %v2737, %v2916
        %vm2957 = vcmask 523264
        %v2958 = vsel %vm2957, %v2953, %v2926
        %v2959 = vsel %vm2957, %v2954, %v2928
        %v2960 = vsel %vm2957, %v2955, %v2930
        %v2961 = vsel %vm2957, %v2956, %v2932
        %vm2962 = vcmask 785408
        %v2963 = vsel %vm2962, %v2958, %v2942
        %v2964 = vsel %vm2962, %v2959, %v2944
        %v2965 = vsel %vm2962, %v2960, %v2946
        %v2966 = vsel %vm2962, %v2961, %v2948
        %v2967 = vpack.c.bf16 %v2964, %v2963
        %v2968 = vpack.c.bf16 %v2966, %v2965
        %v2969 = vld [vmem:[%s893] sm:$0xf]
        %v2970 = vld [vmem:[%s893 + $0x4] sm:$0xf]
        %v2971 = vld [vmem:[%s893 + $0x8] sm:$0xf]
        %v2972 = vld [vmem:[%s893 + $0xc] sm:$0xf]
        %v2973 = vld [vmem:[%s893 + $0x10] sm:$0xf]
        %v2974 = vld [vmem:[%s893 + $0x14] sm:$0xf]
        %v2975 = vld [vmem:[%s893 + $0x18] sm:$0xf]
        %v2976 = vld [vmem:[%s893 + $0x1c] sm:$0xf]
        %v2977 = vld [vmem:[%s893 + $0x20] sm:$0xf]
        %v2978 = vld [vmem:[%s893 + $0x24] sm:$0xf]
        %v2979 = vld [vmem:[%s893 + $0x28] sm:$0xf]
        %v2980 = vld [vmem:[%s893 + $0x2c] sm:$0xf]
        %v2981 = vld [vmem:[%s893 + $0x30] sm:$0xf]
        %v2982 = vld [vmem:[%s893 + $0x34] sm:$0xf]
        %v2983 = vld [vmem:[%s893 + $0x38] sm:$0xf]
        %v2984 = vld [vmem:[%s893 + $0x3c] sm:$0xf]
        %v2985 = vld [vmem:[%s746] sm:$0x1]
        %v2987 = vlaneseq
        %v2988 = vshrl.u32 %v2987, 7
        %v2989 = vsub.s32 0, %v2988
        %v2990 = vrot.slane %v2985, %v2989
        %v3008 = vunpack.c.l.b16 %v2969
        %v3009 = vunpack.c.l.b16 %v2970
        %v3010 = vunpack.c.l.b16 %v2971
        %v3011 = vunpack.c.l.b16 %v2972
        %v3012 = vunpack.c.l.b16 %v2973
        %v3013 = vunpack.c.l.b16 %v2974
        %v3014 = vunpack.c.l.b16 %v2975
        %v3015 = vunpack.c.l.b16 %v2976
        %v3016 = vunpack.c.l.b16 %v2977
        %v3017 = vunpack.c.l.b16 %v2978
        %v3018 = vunpack.c.l.b16 %v2979
        %v3019 = vunpack.c.l.b16 %v2980
        %v3020 = vunpack.c.l.b16 %v2981
        %v3021 = vunpack.c.l.b16 %v2982
        %v3022 = vunpack.c.l.b16 %v2983
        %v3023 = vunpack.c.l.b16 %v2984
        %v3024 = vpack.c.b16 %v3009, %v3008
        %v3025 = vpack.c.b16 %v3011, %v3010
        %v3026 = vpack.c.b16 %v3013, %v3012
        %v3027 = vpack.c.b16 %v3015, %v3014
        %v3028 = vpack.c.b16 %v3017, %v3016
        %v3029 = vpack.c.b16 %v3019, %v3018
        %v3030 = vpack.c.b16 %v3021, %v3020
        %v3031 = vpack.c.b16 %v3023, %v3022
        %3040 = vmatprep.subr.bf16.mxu0 0
        %3041 = vmatpush1.bf16.msra.mxu0 %v3031
        %3042 = vmatprep.subr.bf16.mxu0 0
        %3043 = vmatpush1.bf16.msra.mxu0 %v3030
        %3044 = vmatprep.subr.bf16.mxu0 0
        %3045 = vmatpush1.bf16.msra.mxu0 %v3029
        %3046 = vmatprep.subr.bf16.mxu0 0
        %3047 = vmatpush1.bf16.msra.mxu0 %v3028
        %3048 = vmatprep.subr.bf16.mxu0 0
        %3049 = vmatpush1.bf16.msra.mxu0 %v3027
        %3050 = vmatprep.subr.bf16.mxu0 0
        %3051 = vmatpush1.bf16.msra.mxu0 %v3026
        %3052 = vmatprep.subr.bf16.mxu0 0
        %3053 = vmatpush1.bf16.msra.mxu0 %v3025
        %3054 = vmatprep.subr.bf16.mxu0 0
        %3055 = vmatpush1.bf16.msra.mxu0 %v3024
        %3056 = vmatprep.subr.bf16.mxu0 0
        %3057 = vmatpush2.bf16.msra.mxu0 0
        %3058 = vmatprep.subr.bf16.mxu0 0
        %3059 = vmatpush2.bf16.msra.mxu0 0
        %3060 = vmatprep.subr.bf16.mxu0 0
        %3061 = vmatpush2.bf16.msra.mxu0 0
        %3062 = vmatprep.subr.bf16.mxu0 0
        %3063 = vmatpush2.bf16.msra.mxu0 0
        %3064 = vmatprep.subr.bf16.mxu0 0
        %3065 = vmatpush2.bf16.msra.mxu0 0
        %3066 = vmatprep.subr.bf16.mxu0 0
        %3067 = vmatpush2.bf16.msra.mxu0 0
        %3068 = vmatprep.subr.bf16.mxu0 0
        %3069 = vmatpush2.bf16.msra.mxu0 0
        %3070 = vmatprep.subr.bf16.mxu0 0
        %3071 = vmatpush2.bf16.msra.mxu0 0
        %3072 = vmatprep.mubr.bf16.mxu0 0
        %3073 = vmatmul.mubr.bf16.gmra.mxu0 %v2967
        %v3074 = vpop.f32.mrf.mxu0
        %v3075 = vadd.f32 %v2990, %v3074
        %v3076 = vpop.f32.mrf.mxu0
        %v3077 = vpop.f32.mrf.mxu0
        %v3078 = vadd.f32 %v2990, %v3077
        %v3079 = vpop.f32.mrf.mxu0
        %3080 = vmatprep.mubr.bf16.mxu0 0
        %3081 = vmatmul.mubr.bf16.gmra.mxu0 %v2968
        %v3082 = vpop.f32.mrf.mxu0
        %v3083 = vadd.f32 %v2990, %v3082
        %v3084 = vpop.f32.mrf.mxu0
        %v3085 = vpop.f32.mrf.mxu0
        %v3086 = vadd.f32 %v2990, %v3085
        %v3087 = vpop.f32.mrf.mxu0
        %3088 = vdwg.mxu0
        %v3089 = vadd.f32 %v921, %v3075
        %v3090 = vadd.f32 %v922, %v3078
        %v3091 = vadd.f32 %v923, %v3083
        %v3092 = vadd.f32 %v924, %v3086
        %v3093 = vld [vmem:[%s896] sm:$0x1]
        %v3094 = vld [vmem:[%s899] sm:$0x1]
        %3095 = vadd.xlane.f32.xlu0 %v3089
        %v3096 = vpop.xlane.xlu0 %3095
        %3097 = vadd.xlane.f32.xlu0 %v3090
        %v3098 = vpop.xlane.xlu0 %3097
        %3099 = vadd.xlane.f32.xlu0 %v3091
        %v3100 = vpop.xlane.xlu0 %3099
        %3101 = vadd.xlane.f32.xlu0 %v3092
        %v3102 = vpop.xlane.xlu0 %3101
        %v3103 = vmul.f32 %v3096, %v935
        %v3104 = vmul.f32 %v3098, %v935
        %v3105 = vmul.f32 %v3100, %v935
        %v3106 = vmul.f32 %v3102, %v935
        %v3107 = vsub.f32 %v3089, %v3103
        %v3108 = vsub.f32 %v3090, %v3104
        %v3109 = vsub.f32 %v3091, %v3105
        %v3110 = vsub.f32 %v3092, %v3106
        %v3111 = vmul.f32 %v3107, %v3107
        %v3112 = vmul.f32 %v3108, %v3108
        %v3113 = vmul.f32 %v3109, %v3109
        %v3114 = vmul.f32 %v3110, %v3110
        %3115 = vadd.xlane.f32.xlu0 %v3111
        %v3116 = vpop.xlane.xlu0 %3115
        %3117 = vadd.xlane.f32.xlu0 %v3112
        %v3118 = vpop.xlane.xlu0 %3117
        %3119 = vadd.xlane.f32.xlu0 %v3113
        %v3120 = vpop.xlane.xlu0 %3119
        %3121 = vadd.xlane.f32.xlu0 %v3114
        %v3122 = vpop.xlane.xlu0 %3121
        %v3123 = vmul.f32 %v3116, %v935
        %v3124 = vmul.f32 %v3118, %v935
        %v3125 = vmul.f32 %v3120, %v935
        %v3126 = vmul.f32 %v3122, %v935
        %v3127 = vadd.f32 %v3123, 1e-05
        %v3128 = vadd.f32 %v3124, 1e-05
        %v3129 = vadd.f32 %v3125, 1e-05
        %v3130 = vadd.f32 %v3126, 1e-05
        %v3131 = vrsqrt.pop %v3127
        %v3132 = vrsqrt.pop %v3128
        %v3133 = vrsqrt.pop %v3129
        %v3134 = vrsqrt.pop %v3130
        %v3135 = vmul.f32 %v3107, %v3131
        %v3136 = vmul.f32 %v3108, %v3132
        %v3137 = vmul.f32 %v3109, %v3133
        %v3138 = vmul.f32 %v3110, %v3134
        %v3140 = vlaneseq
        %v3141 = vshrl.u32 %v3140, 7
        %v3142 = vsub.s32 0, %v3141
        %v3143 = vrot.slane %v3093, %v3142
        %v3145 = vmul.f32 %v3135, %v3143
        %v3146 = vmul.f32 %v3136, %v3143
        %v3147 = vmul.f32 %v3137, %v3143
        %v3148 = vmul.f32 %v3138, %v3143
        %v3150 = vlaneseq
        %v3151 = vshrl.u32 %v3150, 7
        %v3152 = vsub.s32 0, %v3151
        %v3153 = vrot.slane %v3094, %v3152
        %v3155 = vadd.f32 %v3145, %v3153
        %v3156 = vadd.f32 %v3146, %v3153
        %v3157 = vadd.f32 %v3147, %v3153
        %v3158 = vadd.f32 %v3148, %v3153
        %v3159 = vpack.c.bf16 %v3156, %v3155
        %v3160 = vpack.c.bf16 %v3158, %v3157
        %v3161 = vld [vmem:[%s755] sm:$0xff]
        %v3162 = vld [vmem:[%s755 + $0x8] sm:$0xff]
        %v3163 = vld [vmem:[%s755 + $0x10] sm:$0xff]
        %v3164 = vld [vmem:[%s755 + $0x18] sm:$0xff]
        %v3165 = vld [vmem:[%s755 + $0x20] sm:$0xff]
        %v3166 = vld [vmem:[%s755 + $0x28] sm:$0xff]
        %v3167 = vld [vmem:[%s755 + $0x30] sm:$0xff]
        %v3168 = vld [vmem:[%s755 + $0x38] sm:$0xff]
        %v3169 = vld [vmem:[%s755 + $0x40] sm:$0xff]
        %v3170 = vld [vmem:[%s755 + $0x48] sm:$0xff]
        %v3171 = vld [vmem:[%s755 + $0x50] sm:$0xff]
        %v3172 = vld [vmem:[%s755 + $0x58] sm:$0xff]
        %v3173 = vld [vmem:[%s755 + $0x60] sm:$0xff]
        %v3174 = vld [vmem:[%s755 + $0x68] sm:$0xff]
        %v3175 = vld [vmem:[%s755 + $0x70] sm:$0xff]
        %v3176 = vld [vmem:[%s755 + $0x78] sm:$0xff]
        %v3177 = vld [vmem:[%s903] sm:$0x3]
        %v3179 = vlaneseq
        %v3180 = vshrl.u32 %v3179, 7
        %v3181 = vsub.s32 0, %v3180
        %v3182 = vrot.slane %v3177, %v3181
        %v3183 = vlaneseq
        %v3184 = vshrl.u32 %v3183, 7
        %v3185 = vsub.s32 1, %v3184
        %v3186 = vrot.slane %v3177, %v3185
        %v3205 = vunpack.c.l.b16 %v3161
        %v3206 = vunpack.c.h.b16 %v3161
        %v3207 = vunpack.c.l.b16 %v3162
        %v3208 = vunpack.c.h.b16 %v3162
        %v3209 = vunpack.c.l.b16 %v3163
        %v3210 = vunpack.c.h.b16 %v3163
        %v3211 = vunpack.c.l.b16 %v3164
        %v3212 = vunpack.c.h.b16 %v3164
        %v3213 = vunpack.c.l.b16 %v3165
        %v3214 = vunpack.c.h.b16 %v3165
        %v3215 = vunpack.c.l.b16 %v3166
        %v3216 = vunpack.c.h.b16 %v3166
        %v3217 = vunpack.c.l.b16 %v3167
        %v3218 = vunpack.c.h.b16 %v3167
        %v3219 = vunpack.c.l.b16 %v3168
        %v3220 = vunpack.c.h.b16 %v3168
        %v3221 = vunpack.c.l.b16 %v3169
        %v3222 = vunpack.c.h.b16 %v3169
        %v3223 = vunpack.c.l.b16 %v3170
        %v3224 = vunpack.c.h.b16 %v3170
        %v3225 = vunpack.c.l.b16 %v3171
        %v3226 = vunpack.c.h.b16 %v3171
        %v3227 = vunpack.c.l.b16 %v3172
        %v3228 = vunpack.c.h.b16 %v3172
        %v3229 = vunpack.c.l.b16 %v3173
        %v3230 = vunpack.c.h.b16 %v3173
        %v3231 = vunpack.c.l.b16 %v3174
        %v3232 = vunpack.c.h.b16 %v3174
        %v3233 = vunpack.c.l.b16 %v3175
        %v3234 = vunpack.c.h.b16 %v3175
        %v3235 = vunpack.c.l.b16 %v3176
        %v3236 = vunpack.c.h.b16 %v3176
        %v3237 = vpack.c.b16 %v3207, %v3205
        %v3238 = vpack.c.b16 %v3208, %v3206
        %v3239 = vpack.c.b16 %v3211, %v3209
        %v3240 = vpack.c.b16 %v3212, %v3210
        %v3241 = vpack.c.b16 %v3215, %v3213
        %v3242 = vpack.c.b16 %v3216, %v3214
        %v3243 = vpack.c.b16 %v3219, %v3217
        %v3244 = vpack.c.b16 %v3220, %v3218
        %v3245 = vpack.c.b16 %v3223, %v3221
        %v3246 = vpack.c.b16 %v3224, %v3222
        %v3247 = vpack.c.b16 %v3227, %v3225
        %v3248 = vpack.c.b16 %v3228, %v3226
        %v3249 = vpack.c.b16 %v3231, %v3229
        %v3250 = vpack.c.b16 %v3232, %v3230
        %v3251 = vpack.c.b16 %v3235, %v3233
        %v3252 = vpack.c.b16 %v3236, %v3234
        %3269 = vmatprep.subr.bf16.mxu0 %v3252
        %3270 = vmatpush1.bf16.msra.mxu0 %v3251
        %3271 = vmatprep.subr.bf16.mxu0 %v3250
        %3272 = vmatpush1.bf16.msra.mxu0 %v3249
        %3273 = vmatprep.subr.bf16.mxu0 %v3248
        %3274 = vmatpush1.bf16.msra.mxu0 %v3247
        %3275 = vmatprep.subr.bf16.mxu0 %v3246
        %3276 = vmatpush1.bf16.msra.mxu0 %v3245
        %3277 = vmatprep.subr.bf16.mxu0 %v3244
        %3278 = vmatpush1.bf16.msra.mxu0 %v3243
        %3279 = vmatprep.subr.bf16.mxu0 %v3242
        %3280 = vmatpush1.bf16.msra.mxu0 %v3241
        %3281 = vmatprep.subr.bf16.mxu0 %v3240
        %3282 = vmatpush1.bf16.msra.mxu0 %v3239
        %3283 = vmatprep.subr.bf16.mxu0 %v3238
        %3284 = vmatpush1.bf16.msra.mxu0 %v3237
        %3285 = vmatprep.subr.bf16.mxu0 0
        %3286 = vmatpush2.bf16.msra.mxu0 0
        %3287 = vmatprep.subr.bf16.mxu0 0
        %3288 = vmatpush2.bf16.msra.mxu0 0
        %3289 = vmatprep.subr.bf16.mxu0 0
        %3290 = vmatpush2.bf16.msra.mxu0 0
        %3291 = vmatprep.subr.bf16.mxu0 0
        %3292 = vmatpush2.bf16.msra.mxu0 0
        %3293 = vmatprep.subr.bf16.mxu0 0
        %3294 = vmatpush2.bf16.msra.mxu0 0
        %3295 = vmatprep.subr.bf16.mxu0 0
        %3296 = vmatpush2.bf16.msra.mxu0 0
        %3297 = vmatprep.subr.bf16.mxu0 0
        %3298 = vmatpush2.bf16.msra.mxu0 0
        %3299 = vmatprep.subr.bf16.mxu0 0
        %3300 = vmatpush2.bf16.msra.mxu0 0
        %3301 = vmatprep.mubr.bf16.mxu0 0
        %3302 = vmatmul.mubr.bf16.gmra.mxu0 %v3159
        %v3303 = vpop.f32.mrf.mxu0
        %v3304 = vadd.f32 %v3182, %v3303
        %v3305 = vpop.f32.mrf.mxu0
        %v3306 = vadd.f32 %v3186, %v3305
        %v3307 = vpop.f32.mrf.mxu0
        %v3308 = vadd.f32 %v3182, %v3307
        %v3309 = vpop.f32.mrf.mxu0
        %v3310 = vadd.f32 %v3186, %v3309
        %3311 = vmatprep.mubr.bf16.mxu0 0
        %3312 = vmatmul.mubr.bf16.gmra.mxu0 %v3160
        %v3313 = vpop.f32.mrf.mxu0
        %v3314 = vadd.f32 %v3182, %v3313
        %v3315 = vpop.f32.mrf.mxu0
        %v3316 = vadd.f32 %v3186, %v3315
        %v3317 = vpop.f32.mrf.mxu0
        %v3318 = vadd.f32 %v3182, %v3317
        %v3319 = vpop.f32.mrf.mxu0
        %v3320 = vadd.f32 %v3186, %v3319
        %3321 = vdwg.mxu0
        %v3322 = vmul.f32 %v3304, 0.5
        %v3323 = vmul.f32 %v3306, 0.5
        %v3324 = vmul.f32 %v3308, 0.5
        %v3325 = vmul.f32 %v3310, 0.5
        %v3326 = vmul.f32 %v3314, 0.5
        %v3327 = vmul.f32 %v3316, 0.5
        %v3328 = vmul.f32 %v3318, 0.5
        %v3329 = vmul.f32 %v3320, 0.5
        %v3330 = vmul.f32 %v3304, 0.70710677
        %v3331 = vmul.f32 %v3306, 0.70710677
        %v3332 = vmul.f32 %v3308, 0.70710677
        %v3333 = vmul.f32 %v3310, 0.70710677
        %v3334 = vmul.f32 %v3314, 0.70710677
        %v3335 = vmul.f32 %v3316, 0.70710677
        %v3336 = vmul.f32 %v3318, 0.70710677
        %v3337 = vmul.f32 %v3320, 0.70710677
        %v3338 = verf.f32.pop %v3330
        %v3339 = verf.f32.pop %v3331
        %v3340 = verf.f32.pop %v3332
        %v3341 = verf.f32.pop %v3333
        %v3342 = verf.f32.pop %v3334
        %v3343 = verf.f32.pop %v3335
        %v3344 = verf.f32.pop %v3336
        %v3345 = verf.f32.pop %v3337
        %v3346 = vadd.f32 %v3338, 1.0
        %v3347 = vadd.f32 %v3339, 1.0
        %v3348 = vadd.f32 %v3340, 1.0
        %v3349 = vadd.f32 %v3341, 1.0
        %v3350 = vadd.f32 %v3342, 1.0
        %v3351 = vadd.f32 %v3343, 1.0
        %v3352 = vadd.f32 %v3344, 1.0
        %v3353 = vadd.f32 %v3345, 1.0
        %v3354 = vmul.f32 %v3322, %v3346
        %v3355 = vmul.f32 %v3323, %v3347
        %v3356 = vmul.f32 %v3324, %v3348
        %v3357 = vmul.f32 %v3325, %v3349
        %v3358 = vmul.f32 %v3326, %v3350
        %v3359 = vmul.f32 %v3327, %v3351
        %v3360 = vmul.f32 %v3328, %v3352
        %v3361 = vmul.f32 %v3329, %v3353
        %v3362 = vpack.c.bf16 %v3356, %v3354
        %v3363 = vpack.c.bf16 %v3357, %v3355
        %v3364 = vpack.c.bf16 %v3360, %v3358
        %v3365 = vpack.c.bf16 %v3361, %v3359
        %v3366 = vld [vmem:[%s764] sm:$0xf]
        %v3367 = vld [vmem:[%s764 + $0x4] sm:$0xf]
        %v3368 = vld [vmem:[%s764 + $0x8] sm:$0xf]
        %v3369 = vld [vmem:[%s764 + $0xc] sm:$0xf]
        %v3370 = vld [vmem:[%s764 + $0x10] sm:$0xf]
        %v3371 = vld [vmem:[%s764 + $0x14] sm:$0xf]
        %v3372 = vld [vmem:[%s764 + $0x18] sm:$0xf]
        %v3373 = vld [vmem:[%s764 + $0x1c] sm:$0xf]
        %v3374 = vld [vmem:[%s764 + $0x20] sm:$0xf]
        %v3375 = vld [vmem:[%s764 + $0x24] sm:$0xf]
        %v3376 = vld [vmem:[%s764 + $0x28] sm:$0xf]
        %v3377 = vld [vmem:[%s764 + $0x2c] sm:$0xf]
        %v3378 = vld [vmem:[%s764 + $0x30] sm:$0xf]
        %v3379 = vld [vmem:[%s764 + $0x34] sm:$0xf]
        %v3380 = vld [vmem:[%s764 + $0x38] sm:$0xf]
        %v3381 = vld [vmem:[%s764 + $0x3c] sm:$0xf]
        %v3382 = vld [vmem:[%s764 + $0x40] sm:$0xf]
        %v3383 = vld [vmem:[%s764 + $0x44] sm:$0xf]
        %v3384 = vld [vmem:[%s764 + $0x48] sm:$0xf]
        %v3385 = vld [vmem:[%s764 + $0x4c] sm:$0xf]
        %v3386 = vld [vmem:[%s764 + $0x50] sm:$0xf]
        %v3387 = vld [vmem:[%s764 + $0x54] sm:$0xf]
        %v3388 = vld [vmem:[%s764 + $0x58] sm:$0xf]
        %v3389 = vld [vmem:[%s764 + $0x5c] sm:$0xf]
        %v3390 = vld [vmem:[%s764 + $0x60] sm:$0xf]
        %v3391 = vld [vmem:[%s764 + $0x64] sm:$0xf]
        %v3392 = vld [vmem:[%s764 + $0x68] sm:$0xf]
        %v3393 = vld [vmem:[%s764 + $0x6c] sm:$0xf]
        %v3394 = vld [vmem:[%s764 + $0x70] sm:$0xf]
        %v3395 = vld [vmem:[%s764 + $0x74] sm:$0xf]
        %v3396 = vld [vmem:[%s764 + $0x78] sm:$0xf]
        %v3397 = vld [vmem:[%s764 + $0x7c] sm:$0xf]
        %v3398 = vld [vmem:[%s906] sm:$0x1]
        %v3400 = vlaneseq
        %v3401 = vshrl.u32 %v3400, 7
        %v3402 = vsub.s32 0, %v3401
        %v3403 = vrot.slane %v3398, %v3402
        %v3437 = vunpack.c.l.b16 %v3366
        %v3438 = vunpack.c.l.b16 %v3367
        %v3439 = vunpack.c.l.b16 %v3368
        %v3440 = vunpack.c.l.b16 %v3369
        %v3441 = vunpack.c.l.b16 %v3370
        %v3442 = vunpack.c.l.b16 %v3371
        %v3443 = vunpack.c.l.b16 %v3372
        %v3444 = vunpack.c.l.b16 %v3373
        %v3445 = vunpack.c.l.b16 %v3374
        %v3446 = vunpack.c.l.b16 %v3375
        %v3447 = vunpack.c.l.b16 %v3376
        %v3448 = vunpack.c.l.b16 %v3377
        %v3449 = vunpack.c.l.b16 %v3378
        %v3450 = vunpack.c.l.b16 %v3379
        %v3451 = vunpack.c.l.b16 %v3380
        %v3452 = vunpack.c.l.b16 %v3381
        %v3453 = vunpack.c.l.b16 %v3382
        %v3454 = vunpack.c.l.b16 %v3383
        %v3455 = vunpack.c.l.b16 %v3384
        %v3456 = vunpack.c.l.b16 %v3385
        %v3457 = vunpack.c.l.b16 %v3386
        %v3458 = vunpack.c.l.b16 %v3387
        %v3459 = vunpack.c.l.b16 %v3388
        %v3460 = vunpack.c.l.b16 %v3389
        %v3461 = vunpack.c.l.b16 %v3390
        %v3462 = vunpack.c.l.b16 %v3391
        %v3463 = vunpack.c.l.b16 %v3392
        %v3464 = vunpack.c.l.b16 %v3393
        %v3465 = vunpack.c.l.b16 %v3394
        %v3466 = vunpack.c.l.b16 %v3395
        %v3467 = vunpack.c.l.b16 %v3396
        %v3468 = vunpack.c.l.b16 %v3397
        %v3469 = vpack.c.b16 %v3438, %v3437
        %v3470 = vpack.c.b16 %v3440, %v3439
        %v3471 = vpack.c.b16 %v3442, %v3441
        %v3472 = vpack.c.b16 %v3444, %v3443
        %v3473 = vpack.c.b16 %v3446, %v3445
        %v3474 = vpack.c.b16 %v3448, %v3447
        %v3475 = vpack.c.b16 %v3450, %v3449
        %v3476 = vpack.c.b16 %v3452, %v3451
        %v3477 = vpack.c.b16 %v3454, %v3453
        %v3478 = vpack.c.b16 %v3456, %v3455
        %v3479 = vpack.c.b16 %v3458, %v3457
        %v3480 = vpack.c.b16 %v3460, %v3459
        %v3481 = vpack.c.b16 %v3462, %v3461
        %v3482 = vpack.c.b16 %v3464, %v3463
        %v3483 = vpack.c.b16 %v3466, %v3465
        %v3484 = vpack.c.b16 %v3468, %v3467
        %3501 = vmatprep.subr.bf16.mxu0 0
        %3502 = vmatpush1.bf16.msra.mxu0 %v3476
        %3503 = vmatprep.subr.bf16.mxu0 0
        %3504 = vmatpush1.bf16.msra.mxu0 %v3475
        %3505 = vmatprep.subr.bf16.mxu0 0
        %3506 = vmatpush1.bf16.msra.mxu0 %v3474
        %3507 = vmatprep.subr.bf16.mxu0 0
        %3508 = vmatpush1.bf16.msra.mxu0 %v3473
        %3509 = vmatprep.subr.bf16.mxu0 0
        %3510 = vmatpush1.bf16.msra.mxu0 %v3472
        %3511 = vmatprep.subr.bf16.mxu0 0
        %3512 = vmatpush1.bf16.msra.mxu0 %v3471
        %3513 = vmatprep.subr.bf16.mxu0 0
        %3514 = vmatpush1.bf16.msra.mxu0 %v3470
        %3515 = vmatprep.subr.bf16.mxu0 0
        %3516 = vmatpush1.bf16.msra.mxu0 %v3469
        %3517 = vmatprep.subr.bf16.mxu0 0
        %3518 = vmatpush2.bf16.msra.mxu0 %v3484
        %3519 = vmatprep.subr.bf16.mxu0 0
        %3520 = vmatpush2.bf16.msra.mxu0 %v3483
        %3521 = vmatprep.subr.bf16.mxu0 0
        %3522 = vmatpush2.bf16.msra.mxu0 %v3482
        %3523 = vmatprep.subr.bf16.mxu0 0
        %3524 = vmatpush2.bf16.msra.mxu0 %v3481
        %3525 = vmatprep.subr.bf16.mxu0 0
        %3526 = vmatpush2.bf16.msra.mxu0 %v3480
        %3527 = vmatprep.subr.bf16.mxu0 0
        %3528 = vmatpush2.bf16.msra.mxu0 %v3479
        %3529 = vmatprep.subr.bf16.mxu0 0
        %3530 = vmatpush2.bf16.msra.mxu0 %v3478
        %3531 = vmatprep.subr.bf16.mxu0 0
        %3532 = vmatpush2.bf16.msra.mxu0 %v3477
        %3533 = vmatprep.mubr.bf16.mxu0 %v3363
        %3534 = vmatmul.mubr.bf16.gmra.mxu0 %v3362
        %v3535 = vpop.f32.mrf.mxu0
        %v3536 = vadd.f32 %v3403, %v3535
        %v3537 = vpop.f32.mrf.mxu0
        %v3538 = vpop.f32.mrf.mxu0
        %v3539 = vadd.f32 %v3403, %v3538
        %v3540 = vpop.f32.mrf.mxu0
        %3541 = vmatprep.mubr.bf16.mxu0 %v3365
        %3542 = vmatmul.mubr.bf16.gmra.mxu0 %v3364
        %v3543 = vpop.f32.mrf.mxu0
        %v3544 = vadd.f32 %v3403, %v3543
        %v3545 = vpop.f32.mrf.mxu0
        %v3546 = vpop.f32.mrf.mxu0
        %v3547 = vadd.f32 %v3403, %v3546
        %v3548 = vpop.f32.mrf.mxu0
        %3549 = vdwg.mxu0
        %v3550 = vadd.f32 %v3089, %v3536
        %v3551 = vadd.f32 %v3090, %v3539
        %v3552 = vadd.f32 %v3091, %v3544
        %v3553 = vadd.f32 %v3092, %v3547
        %p3554 = scmp.lt.s32.totalorder %s49, 1
        // Predicated region
        $region121: #{tpu_custom_call.1} parent=87 // pred_check
          %p3555 = pneg %p3554
        $region122: #{tpu_custom_call.1} parent=87 // pred_check_branch
          %3557 = sbr.rel (%p3555) target = $region124
        $region123: #{tpu_custom_call.1} parent=87 // pred_region
          %3558 = vst [vmem:[%s873] sm:$0xff] %v3550
          %3559 = vst [vmem:[%s873 + $0x8] sm:$0xff] %v3551
          %3560 = vst [vmem:[%s873 + $0x10] sm:$0xff] %v3552
          %3561 = vst [vmem:[%s873 + $0x18] sm:$0xff] %v3553
        $region124: #{tpu_custom_call.1} parent=87 // pred_fallthru
          _
        %p3562 = scmp.eq.s32.totalorder %s49, 1
        // Predicated region
        $region125: #{tpu_custom_call.1} parent=87 // pred_check
          %p3563 = pneg %p3562
        $region126: #{tpu_custom_call.1} parent=87 // pred_check_branch
          %3565 = sbr.rel (%p3563) target = $region128
        $region127: #{tpu_custom_call.1} parent=87 // pred_region
          %v3566 = vld [vmem:[%s14] sm:$0x1]
          %v3567 = vld [vmem:[%s15] sm:$0x1]
          %3568 = vadd.xlane.f32.xlu0 %v3550
          %v3569 = vpop.xlane.xlu0 %3568
          %3570 = vadd.xlane.f32.xlu0 %v3551
          %v3571 = vpop.xlane.xlu0 %3570
          %3572 = vadd.xlane.f32.xlu0 %v3552
          %v3573 = vpop.xlane.xlu0 %3572
          %3574 = vadd.xlane.f32.xlu0 %v3553
          %v3575 = vpop.xlane.xlu0 %3574
          %v3576 = vmul.f32 %v3569, %v935
          %v3577 = vmul.f32 %v3571, %v935
          %v3578 = vmul.f32 %v3573, %v935
          %v3579 = vmul.f32 %v3575, %v935
          %v3580 = vsub.f32 %v3550, %v3576
          %v3581 = vsub.f32 %v3551, %v3577
          %v3582 = vsub.f32 %v3552, %v3578
          %v3583 = vsub.f32 %v3553, %v3579
          %v3584 = vmul.f32 %v3580, %v3580
          %v3585 = vmul.f32 %v3581, %v3581
          %v3586 = vmul.f32 %v3582, %v3582
          %v3587 = vmul.f32 %v3583, %v3583
          %3588 = vadd.xlane.f32.xlu0 %v3584
          %v3589 = vpop.xlane.xlu0 %3588
          %3590 = vadd.xlane.f32.xlu0 %v3585
          %v3591 = vpop.xlane.xlu0 %3590
          %3592 = vadd.xlane.f32.xlu0 %v3586
          %v3593 = vpop.xlane.xlu0 %3592
          %3594 = vadd.xlane.f32.xlu0 %v3587
          %v3595 = vpop.xlane.xlu0 %3594
          %v3596 = vmul.f32 %v3589, %v935
          %v3597 = vmul.f32 %v3591, %v935
          %v3598 = vmul.f32 %v3593, %v935
          %v3599 = vmul.f32 %v3595, %v935
          %v3600 = vadd.f32 %v3596, 1e-05
          %v3601 = vadd.f32 %v3597, 1e-05
          %v3602 = vadd.f32 %v3598, 1e-05
          %v3603 = vadd.f32 %v3599, 1e-05
          %v3604 = vrsqrt.pop %v3600
          %v3605 = vrsqrt.pop %v3601
          %v3606 = vrsqrt.pop %v3602
          %v3607 = vrsqrt.pop %v3603
          %v3608 = vmul.f32 %v3580, %v3604
          %v3609 = vmul.f32 %v3581, %v3605
          %v3610 = vmul.f32 %v3582, %v3606
          %v3611 = vmul.f32 %v3583, %v3607
          %v3613 = vlaneseq
          %v3614 = vshrl.u32 %v3613, 7
          %v3615 = vsub.s32 0, %v3614
          %v3616 = vrot.slane %v3566, %v3615
          %v3618 = vmul.f32 %v3608, %v3616
          %v3619 = vmul.f32 %v3609, %v3616
          %v3620 = vmul.f32 %v3610, %v3616
          %v3621 = vmul.f32 %v3611, %v3616
          %v3623 = vlaneseq
          %v3624 = vshrl.u32 %v3623, 7
          %v3625 = vsub.s32 0, %v3624
          %v3626 = vrot.slane %v3567, %v3625
          %v3628 = vadd.f32 %v3618, %v3626
          %v3629 = vadd.f32 %v3619, %v3626
          %v3630 = vadd.f32 %v3620, %v3626
          %v3631 = vadd.f32 %v3621, %v3626
          %3632 = vst [vmem:[%s873] sm:$0xff] %v3628
          %3633 = vst [vmem:[%s873 + $0x8] sm:$0xff] %v3629
          %3634 = vst [vmem:[%s873 + $0x10] sm:$0xff] %v3630
          %3635 = vst [vmem:[%s873 + $0x18] sm:$0xff] %v3631
        $region128: #{tpu_custom_call.1} parent=87 // pred_fallthru
          _
        %s3636 = sand.u32 %s491, 1
        %s3637 = scalar_lea.sflag [#allocation4], %s3636
        %s3638 = sand.u32 %s491, 1
        %s3639 = smul.addr %s3638, 32
        %s3640 = scalar_lea.vmem [#allocation15], %s3639
        // Predicated region
        $region129: #{tpu_custom_call.1} parent=87 // pred_check
          %p3641 = pneg %p501
        $region130: #{tpu_custom_call.1} parent=87 // pred_check_branch
          %3643 = sbr.rel (%p3641) target = $region132
        $region131: #{tpu_custom_call.1} parent=87 // pred_region
          %s3644 = smul.u32 4, %s48
          %s3646 = ssub.s32 512, 512
          %3647 = vsyncadd %s3637, %s3646
          %s3648 = smul.addr %s3644, 128
          %s3649 = scalar_lea.hbm %s17, %s3648
          %s3650 = sshll.u32 %s3640, 4
          %s3651 = int_to_ptr.vmem [resolvable:$true] %s3650
          %3656 = dma.vmem_to_hbm [thread:$0]  %s3651, 512, %s3649, %s3637, 128, 128, 8
        $region132: #{tpu_custom_call.1} parent=87 // pred_fallthru
          _
      $region88: #{tpu_custom_call.1} parent=5 // pred_fallthru
        _
      %p3657 = scmp.le.s32.totalorder 2, %s39
      // Predicated region
      $region133: #{tpu_custom_call.1} parent=5 // pred_check
        %p3658 = pneg %p3657
      $region134: #{tpu_custom_call.1} parent=5 // pred_check_branch
        %3660 = sbr.rel (%p3658) target = $region136
      $region135: #{tpu_custom_call.1} parent=5 // pred_region
        %s3661 = ssub.s32 %s39, 2
        // Predicated region
        $region137: #{tpu_custom_call.1} parent=135 // pred_check
          %p3662 = pneg %p507
        $region138: #{tpu_custom_call.1} parent=135 // pred_check_branch
          %3664 = sbr.rel (%p3662) target = $region140
        $region139: #{tpu_custom_call.1} parent=135 // pred_region
          %s3665 = sand.u32 %s492, 1
          %s3666 = scalar_lea.sflag [#allocation4], %s3665
          %s3667 = sand.u32 %s492, 1
          %s3668 = smul.addr %s3667, 32
          %s3669 = scalar_lea.vmem [#allocation15], %s3668
          %3670 = dma.done %s3666, 512
        $region140: #{tpu_custom_call.1} parent=135 // pred_fallthru
          _
      $region136: #{tpu_custom_call.1} parent=5 // pred_fallthru
        _
    $region6: #{tpu_custom_call.1} parent=1 // loop_footer
      %s43 = sadd.s32 1, %s39
    $region7: #{tpu_custom_call.1} parent=1 // loop_footer_branch
      %38 = sbr.rel target = $region3
    $region8: #{tpu_custom_call.1} parent=1 // loop_exit
      _
    %3671 = vsyncpa [#allocation3], 1
    %s3672 = scalar_lea.sflag [#allocation3], 1
    %3673 = vsyncpa %s3672, 1
    %3674 = vsyncpa [#allocation7], 1
    %s3675 = scalar_lea.sflag [#allocation7], 1
    %3676 = vsyncpa %s3675, 1
    %3677 = vsyncpa [#allocation10], 1
    %s3678 = scalar_lea.sflag [#allocation10], 1
    %3679 = vsyncpa %s3678, 1
    %3680 = vsyncpa [#allocation13], 1
    %s3681 = scalar_lea.sflag [#allocation13], 1
    %3682 = vsyncpa %s3681, 1
    %3683 = vsyncpa [#allocation4], 1
    %s3684 = scalar_lea.sflag [#allocation4], 1
    %3685 = vsyncpa %s3684, 1
    %3686 = vsyncpa [#allocation5], 1
    %s3687 = scalar_lea.sflag [#allocation5], 1
    %3688 = vsyncpa %s3687, 1

</llo_original>
